<compile_context>
chip_gen: v6e
topology: v6e:2x2x1
jax: 0.10.0
libtpu: 0.0.40
codegen_flags: <defaults>
</compile_context>

<pallas_src>
import functools

import jax
import jax.numpy as jnp
from jax.experimental import pallas as pl
from jax.experimental.pallas import tpu as pltpu


def _round_up(v, m):
    return -(-v // m) * m


def _pick_batch_tile(nb, max_tile=8):
    """Largest divisor of nb (<= max_tile) that still leaves >= 2 grid steps."""
    best = 1
    for t in range(1, min(nb, max_tile) + 1):
        if nb % t == 0 and nb // t >= 2:
            best = t
    return best


def _bundle_layer_kernel(x_ref, w_ref, b_ref, mask_ref, o_ref, *,
                         n_bundles, c_out, kw, width, inv_count):
    # x_ref:    (Btile, C_in, H*W) f32   raw flattened samples (no im2col)
    # w_ref:    (kh*kw, M, C_in)   f32   per-tap stacked weights, M = nb*c_out
    # b_ref:    (M, 1)             f32   stacked biases
    # mask_ref: (H*W, 1)           f32   1.0 on valid output positions
    # o_ref:    (Btile, c_out, H*W) f32  full-grid output (invalid cols sliced
    #                                    off by the wrapper)
    btile, _, hw = x_ref.shape
    taps = w_ref.shape[0]
    m = n_bundles * c_out

    # ---- hoisted, grid-step-invariant values (built once per step) ----------
    bias = b_ref[...]                                     # (M, 1)
    mask_col = mask_ref[...]                              # (HW, 1)

    # Bundle-selector matrices from 2-D iotas (no reshapes, no integer div):
    #   g_bm[b, i] = 1  iff row i belongs to bundle b        (n_bundles, M)
    #   g_mb[i, b] = 1  iff row i belongs to bundle b        (M, n_bundles)
    ri = jax.lax.broadcasted_iota(jnp.int32, (n_bundles, m), 1)
    bi = jax.lax.broadcasted_iota(jnp.int32, (n_bundles, m), 0)
    g_bm = ((ri >= bi * c_out) & (ri < (bi + 1) * c_out)).astype(jnp.float32)
    ri2 = jax.lax.broadcasted_iota(jnp.int32, (m, n_bundles), 0)
    bi2 = jax.lax.broadcasted_iota(jnp.int32, (m, n_bundles), 1)
    g_mb = ((ri2 >= bi2 * c_out) & (ri2 < (bi2 + 1) * c_out)).astype(jnp.float32)

    for s in range(btile):                                # static unroll
        xs = x_ref[s]                                     # (C_in, HW)

        # Bias folded into the accumulator init (no extra VPU bias pass).
        acc = jnp.broadcast_to(bias, (m, hw))

        # In-kernel im2col: one lane-rolled view + one MXU matmul per tap.
        # Rolled-in wraparound only hits lanes with y >= Ho or x >= Wo, which
        # are never valid outputs, so valid positions are exact.
        for t in range(taps):
            ky, kx = divmod(t, kw)
            off = ky * width + kx
            xt = xs if off == 0 else pltpu.roll(xs, hw - off, 1)
            acc = acc + jnp.dot(w_ref[t], xt,
                                preferred_element_type=jnp.float32)

        # ---- vectorized gate epilogue (review item 3) -----------------------
        # Masked row sums over the valid window via one MXU matvec.
        rowsum = jnp.dot(acc, mask_col,
                         preferred_element_type=jnp.float32)          # (M, 1)
        bsum = jnp.dot(g_bm, rowsum,
                       preferred_element_type=jnp.float32)            # (nb, 1)
        gates = jax.nn.sigmoid(bsum * inv_count)                      # (nb, 1)
        row_gates = jnp.dot(g_mb, gates,
                            preferred_element_type=jnp.float32)       # (M, 1)
        gated = acc * row_gates                                       # lane bcast

        # Sum the gated bundles (vreg-aligned static slices, cheap adds).
        y = gated[0:c_out, :]
        for b in range(1, n_bundles):
            y = y + gated[b * c_out:(b + 1) * c_out, :]
        o_ref[s] = y


def neuron_bundle_layer(x, weights, biases):
    """
    x:       (N, C_in, H, W)                   float32 (NCHW, as in PyTorch)
    weights: (n_bundles, C_out, C_in, kh, kw)  float32
    biases:  (n_bundles, C_out)                float32
    returns  (N, C_out, H_out, W_out)          float32
    """
    NB, C_in, H, W = x.shape
    n_bundles, C_out, _, kh, kw = weights.shape
    Ho, Wo = H - kh + 1, W - kw + 1
    HW, T, M = H * W, kh * kw, n_bundles * C_out

    # --- wrapper-side prep: free reshapes + tiny constants, NO im2col --------
    x_flat = x.reshape(NB, C_in, HW).astype(jnp.float32)          # free reshape
    w_taps = jnp.transpose(weights.reshape(M, C_in, T),
                           (2, 0, 1)).astype(jnp.float32)         # (T, M, C_in)
    b_col = biases.reshape(M, 1).astype(jnp.float32)              # (M, 1)
    p = jnp.arange(HW, dtype=jnp.int32)
    valid = ((p % W) < Wo) & ((p // W) < Ho)
    mask_col = valid.astype(jnp.float32).reshape(HW, 1)           # (HW, 1)

    btile = _pick_batch_tile(NB)
    grid = (NB // btile,)

    # --- explicit VMEM budgeting (v7x: 64 MiB physical / 32 MiB scoped) ------
    f32b, lane, sub = 4, 128, 8
    x_blk = btile * _round_up(C_in, sub) * _round_up(HW, lane) * f32b
    o_blk = btile * _round_up(C_out, sub) * _round_up(HW, lane) * f32b
    w_blk = T * _round_up(M, sub) * _round_up(C_in, lane) * f32b
    b_blk = _round_up(M, sub) * lane * f32b
    m_blk = _round_up(HW, sub) * lane * f32b
    live = 2 * _round_up(M, sub) * _round_up(HW, lane) * f32b     # acc + gated
    vmem_needed = 2 * (x_blk + o_blk) + 2 * (w_blk + b_blk + m_blk) + live
    if vmem_needed > 56 * 2 ** 20:
        # TODO(synk): add a P-tiled two-pass path (per-bundle partial sums in
        # scratch, gates applied in a second pass) for outputs too large to
        # keep one whole sample resident; a naive P tiling would make the
        # whole-sample gate mean wrong.
        raise ValueError(
            f"per-step VMEM estimate {vmem_needed} B exceeds the v7x budget; "
            "whole-sample residency is required for an exact gate mean")
    vmem_limit = int(min(64 * 2 ** 20, max(32 * 2 ** 20, 2 * vmem_needed)))

    kernel = functools.partial(
        _bundle_layer_kernel, n_bundles=n_bundles, c_out=C_out, kw=kw,
        width=W, inv_count=1.0 / float(C_out * Ho * Wo))

    cost = pl.CostEstimate(
        flops=2 * NB * M * C_in * T * HW + 4 * NB * M * HW,
        transcendentals=NB * n_bundles,
        bytes_accessed=4 * (x_flat.size + w_taps.size + b_col.size
                            + mask_col.size + NB * C_out * HW),
    )

    def _call(single_buffer_invariants):
        inv_kwargs = ({"pipeline_mode": pl.Buffered(1)}
                      if single_buffer_invariants else {})
        in_specs = [
            pl.BlockSpec((btile, C_in, HW), lambda n: (n, 0, 0)),
            pl.BlockSpec((T, M, C_in), lambda n: (0, 0, 0), **inv_kwargs),
            pl.BlockSpec((M, 1), lambda n: (0, 0), **inv_kwargs),
            pl.BlockSpec((HW, 1), lambda n: (0, 0), **inv_kwargs),
        ]
        out_spec = pl.BlockSpec((btile, C_out, HW), lambda n: (n, 0, 0))
        return pl.pallas_call(
            kernel,
            out_shape=jax.ShapeDtypeStruct((NB, C_out, HW), jnp.float32),
            grid_spec=pltpu.PrefetchScalarGridSpec(
                num_scalar_prefetch=0, grid=grid,
                in_specs=in_specs, out_specs=out_spec),
            compiler_params=pltpu.CompilerParams(
                dimension_semantics=("parallel",),   # v7x: shard steps on 2 TCs
                vmem_limit_bytes=vmem_limit),
            cost_estimate=cost,
        )(x_flat, w_taps, b_col, mask_col)

    try:
        out_flat = _call(True)          # single-buffer the invariant operands
    except Exception:                   # pragma: no cover
        # Fallback for JAX versions without BlockSpec.pipeline_mode support.
        out_flat = _call(False)

    # (NB, C_out, H*W) -> (NB, C_out, H, W): free reshape; then drop the
    # invalid (y>=Ho or x>=Wo) columns produced by the full-grid conv.
    return out_flat.reshape(NB, C_out, H, W)[:, :, :Ho, :Wo]


def _reference(x, weights, biases):
    """Pure-JAX reference mirroring the PyTorch NeuronBundleLayer."""
    def bundle(w, b):
        out = jax.lax.conv_general_dilated(
            x, w, window_strides=(1, 1), padding="VALID",
            dimension_numbers=("NCHW", "OIHW", "NCHW"))
        out = out + b.reshape(1, -1, 1, 1)
        gate = jax.nn.sigmoid(jnp.mean(out, axis=(1, 2, 3), keepdims=True))
        return out * gate

    outs = [bundle(weights[i], biases[i]) for i in range(weights.shape[0])]
    return jnp.sum(jnp.stack(outs, axis=0), axis=0)


if __name__ == "__main__":
    # Small deterministic shapes consistent with the module.
    NB, C_in, H, W = 2, 4, 16, 16
    C_out, ksize, n_bundles = 8, 3, 3

    key = jax.random.PRNGKey(0)
    kx_, kw_, kb_ = jax.random.split(key, 3)
    x = jax.random.normal(kx_, (NB, C_in, H, W), dtype=jnp.float32)
    fan_in = C_in * ksize * ksize
    bound = 1.0 / (fan_in ** 0.5)
    weights = jax.random.uniform(kw_, (n_bundles, C_out, C_in, ksize, ksize),
                                 minval=-bound, maxval=bound, dtype=jnp.float32)
    biases = jax.random.uniform(kb_, (n_bundles, C_out),
                                minval=-bound, maxval=bound, dtype=jnp.float32)

    out = neuron_bundle_layer(x, weights, biases)
    out = jax.block_until_ready(out)

    ref = _reference(x, weights, biases)
    assert out.shape == ref.shape == (NB, C_out, H - ksize + 1, W - ksize + 1)
    # f32 operands with f32 accumulation (MXU default precision) -> tight match.
    assert jnp.allclose(out, ref, atol=2e-2, rtol=2e-2), float(
        jnp.max(jnp.abs(out - ref)))

    print("KERNEL_OK")
</pallas_src>

<mosaic_0001>
module attributes {stable_mosaic.version = 11 : i64} {
  func.func @_bundle_layer_kernel(%arg0: i32, %arg1: memref<1x4x256xf32, #tpu.memory_space<vmem>>, %arg2: memref<9x24x4xf32, #tpu.memory_space<vmem>>, %arg3: memref<24x1xf32, #tpu.memory_space<vmem>>, %arg4: memref<256x1xf32, #tpu.memory_space<vmem>>, %arg5: memref<1x8x256xf32, #tpu.memory_space<vmem>>) attributes {dimension_semantics = [#tpu.dimension_semantics<parallel>], iteration_bounds = array<i64: 2>, scalar_prefetch = 0 : i64, scratch_operands = 0 : i64, tpu.core_type = #tpu.core_type<tc>, window_params = [{transform_indices = @transform_0, window_bounds = array<i64: 1, 4, 256>}, {pipeline_mode = #tpu.pipeline_mode<synchronous>, transform_indices = @transform_1, window_bounds = array<i64: 9, 24, 4>}, {pipeline_mode = #tpu.pipeline_mode<synchronous>, transform_indices = @transform_2, window_bounds = array<i64: 24, 1>}, {pipeline_mode = #tpu.pipeline_mode<synchronous>, transform_indices = @transform_3, window_bounds = array<i64: 256, 1>}, {transform_indices = @transform_4, window_bounds = array<i64: 1, 8, 256>}]} {
    %c0 = arith.constant 0 : index
    %c0_0 = arith.constant 0 : index
    %0 = vector.load %arg3[%c0, %c0_0] : memref<24x1xf32, #tpu.memory_space<vmem>>, vector<24x1xf32>
    %c0_1 = arith.constant 0 : index
    %c0_2 = arith.constant 0 : index
    %1 = vector.load %arg4[%c0_1, %c0_2] : memref<256x1xf32, #tpu.memory_space<vmem>>, vector<256x1xf32>
    %2 = tpu.iota {dimensions = array<i32: 1>} : vector<3x24xi32>
    %3 = tpu.iota {dimensions = array<i32: 0>} : vector<3x24xi32>
    %c8_i32 = arith.constant 8 : i32
    %4 = vector.broadcast %c8_i32 : i32 to vector<3x24xi32>
    %5 = arith.muli %3, %4 : vector<3x24xi32>
    %6 = arith.cmpi sge, %2, %5 : vector<3x24xi32>
    %c1_i32 = arith.constant 1 : i32
    %7 = vector.broadcast %c1_i32 : i32 to vector<3x24xi32>
    %8 = arith.addi %3, %7 : vector<3x24xi32>
    %c8_i32_3 = arith.constant 8 : i32
    %9 = vector.broadcast %c8_i32_3 : i32 to vector<3x24xi32>
    %10 = arith.muli %8, %9 : vector<3x24xi32>
    %11 = arith.cmpi slt, %2, %10 : vector<3x24xi32>
    %12 = arith.andi %6, %11 : vector<3x24xi1>
    %13 = arith.extui %12 : vector<3x24xi1> to vector<3x24xi32>
    %14 = arith.sitofp %13 : vector<3x24xi32> to vector<3x24xf32>
    %15 = tpu.iota {dimensions = array<i32: 0>} : vector<24x3xi32>
    %16 = tpu.iota {dimensions = array<i32: 1>} : vector<24x3xi32>
    %c8_i32_4 = arith.constant 8 : i32
    %17 = vector.broadcast %c8_i32_4 : i32 to vector<24x3xi32>
    %18 = arith.muli %16, %17 : vector<24x3xi32>
    %19 = arith.cmpi sge, %15, %18 : vector<24x3xi32>
    %c1_i32_5 = arith.constant 1 : i32
    %20 = vector.broadcast %c1_i32_5 : i32 to vector<24x3xi32>
    %21 = arith.addi %16, %20 : vector<24x3xi32>
    %c8_i32_6 = arith.constant 8 : i32
    %22 = vector.broadcast %c8_i32_6 : i32 to vector<24x3xi32>
    %23 = arith.muli %21, %22 : vector<24x3xi32>
    %24 = arith.cmpi slt, %15, %23 : vector<24x3xi32>
    %25 = arith.andi %19, %24 : vector<24x3xi1>
    %26 = arith.extui %25 : vector<24x3xi1> to vector<24x3xi32>
    %27 = arith.sitofp %26 : vector<24x3xi32> to vector<24x3xf32>
    %c0_7 = arith.constant 0 : index
    %c0_8 = arith.constant 0 : index
    %c0_9 = arith.constant 0 : index
    %28 = vector.load %arg1[%c0_7, %c0_8, %c0_9] : memref<1x4x256xf32, #tpu.memory_space<vmem>>, vector<1x4x256xf32>
    %29 = vector.shape_cast %28 : vector<1x4x256xf32> to vector<4x256xf32>
    %30 = vector.shape_cast %0 : vector<24x1xf32> to vector<24x1xf32>
    %31 = vector.broadcast %30 : vector<24x1xf32> to vector<24x256xf32>
    %c0_10 = arith.constant 0 : index
    %c0_11 = arith.constant 0 : index
    %c0_12 = arith.constant 0 : index
    %32 = vector.load %arg2[%c0_10, %c0_11, %c0_12] : memref<9x24x4xf32, #tpu.memory_space<vmem>>, vector<1x24x4xf32>
    %33 = vector.shape_cast %32 : vector<1x24x4xf32> to vector<24x4xf32>
    %cst = arith.constant dense<0.000000e+00> : vector<24x256xf32>
    %34 = tpu.matmul %33, %29, %cst {dimension_numbers = #tpu.dot_dimension_numbers<[1], [0], [0], [1], [0, 0, 1, 1], [], []>} : vector<24x4xf32>, vector<4x256xf32>, vector<24x256xf32> -> vector<24x256xf32>
    %35 = arith.addf %31, %34 : vector<24x256xf32>
    %c255_i32 = arith.constant 255 : i32
    %36 = tpu.dynamic_rotate %29 by %c255_i32 dim 1 : vector<4x256xf32>, i32 -> vector<4x256xf32>
    %c1 = arith.constant 1 : index
    %c0_13 = arith.constant 0 : index
    %c0_14 = arith.constant 0 : index
    %37 = vector.load %arg2[%c1, %c0_13, %c0_14] : memref<9x24x4xf32, #tpu.memory_space<vmem>>, vector<1x24x4xf32>
    %38 = vector.shape_cast %37 : vector<1x24x4xf32> to vector<24x4xf32>
    %cst_15 = arith.constant dense<0.000000e+00> : vector<24x256xf32>
    %39 = tpu.matmul %38, %36, %cst_15 {dimension_numbers = #tpu.dot_dimension_numbers<[1], [0], [0], [1], [0, 0, 1, 1], [], []>} : vector<24x4xf32>, vector<4x256xf32>, vector<24x256xf32> -> vector<24x256xf32>
    %40 = arith.addf %35, %39 : vector<24x256xf32>
    %c254_i32 = arith.constant 254 : i32
    %41 = tpu.dynamic_rotate %29 by %c254_i32 dim 1 : vector<4x256xf32>, i32 -> vector<4x256xf32>
    %c2 = arith.constant 2 : index
    %c0_16 = arith.constant 0 : index
    %c0_17 = arith.constant 0 : index
    %42 = vector.load %arg2[%c2, %c0_16, %c0_17] : memref<9x24x4xf32, #tpu.memory_space<vmem>>, vector<1x24x4xf32>
    %43 = vector.shape_cast %42 : vector<1x24x4xf32> to vector<24x4xf32>
    %cst_18 = arith.constant dense<0.000000e+00> : vector<24x256xf32>
    %44 = tpu.matmul %43, %41, %cst_18 {dimension_numbers = #tpu.dot_dimension_numbers<[1], [0], [0], [1], [0, 0, 1, 1], [], []>} : vector<24x4xf32>, vector<4x256xf32>, vector<24x256xf32> -> vector<24x256xf32>
    %45 = arith.addf %40, %44 : vector<24x256xf32>
    %c240_i32 = arith.constant 240 : i32
    %46 = tpu.dynamic_rotate %29 by %c240_i32 dim 1 : vector<4x256xf32>, i32 -> vector<4x256xf32>
    %c3 = arith.constant 3 : index
    %c0_19 = arith.constant 0 : index
    %c0_20 = arith.constant 0 : index
    %47 = vector.load %arg2[%c3, %c0_19, %c0_20] : memref<9x24x4xf32, #tpu.memory_space<vmem>>, vector<1x24x4xf32>
    %48 = vector.shape_cast %47 : vector<1x24x4xf32> to vector<24x4xf32>
    %cst_21 = arith.constant dense<0.000000e+00> : vector<24x256xf32>
    %49 = tpu.matmul %48, %46, %cst_21 {dimension_numbers = #tpu.dot_dimension_numbers<[1], [0], [0], [1], [0, 0, 1, 1], [], []>} : vector<24x4xf32>, vector<4x256xf32>, vector<24x256xf32> -> vector<24x256xf32>
    %50 = arith.addf %45, %49 : vector<24x256xf32>
    %c239_i32 = arith.constant 239 : i32
    %51 = tpu.dynamic_rotate %29 by %c239_i32 dim 1 : vector<4x256xf32>, i32 -> vector<4x256xf32>
    %c4 = arith.constant 4 : index
    %c0_22 = arith.constant 0 : index
    %c0_23 = arith.constant 0 : index
    %52 = vector.load %arg2[%c4, %c0_22, %c0_23] : memref<9x24x4xf32, #tpu.memory_space<vmem>>, vector<1x24x4xf32>
    %53 = vector.shape_cast %52 : vector<1x24x4xf32> to vector<24x4xf32>
    %cst_24 = arith.constant dense<0.000000e+00> : vector<24x256xf32>
    %54 = tpu.matmul %53, %51, %cst_24 {dimension_numbers = #tpu.dot_dimension_numbers<[1], [0], [0], [1], [0, 0, 1, 1], [], []>} : vector<24x4xf32>, vector<4x256xf32>, vector<24x256xf32> -> vector<24x256xf32>
    %55 = arith.addf %50, %54 : vector<24x256xf32>
    %c238_i32 = arith.constant 238 : i32
    %56 = tpu.dynamic_rotate %29 by %c238_i32 dim 1 : vector<4x256xf32>, i32 -> vector<4x256xf32>
    %c5 = arith.constant 5 : index
    %c0_25 = arith.constant 0 : index
    %c0_26 = arith.constant 0 : index
    %57 = vector.load %arg2[%c5, %c0_25, %c0_26] : memref<9x24x4xf32, #tpu.memory_space<vmem>>, vector<1x24x4xf32>
    %58 = vector.shape_cast %57 : vector<1x24x4xf32> to vector<24x4xf32>
    %cst_27 = arith.constant dense<0.000000e+00> : vector<24x256xf32>
    %59 = tpu.matmul %58, %56, %cst_27 {dimension_numbers = #tpu.dot_dimension_numbers<[1], [0], [0], [1], [0, 0, 1, 1], [], []>} : vector<24x4xf32>, vector<4x256xf32>, vector<24x256xf32> -> vector<24x256xf32>
    %60 = arith.addf %55, %59 : vector<24x256xf32>
    %c224_i32 = arith.constant 224 : i32
    %61 = tpu.dynamic_rotate %29 by %c224_i32 dim 1 : vector<4x256xf32>, i32 -> vector<4x256xf32>
    %c6 = arith.constant 6 : index
    %c0_28 = arith.constant 0 : index
    %c0_29 = arith.constant 0 : index
    %62 = vector.load %arg2[%c6, %c0_28, %c0_29] : memref<9x24x4xf32, #tpu.memory_space<vmem>>, vector<1x24x4xf32>
    %63 = vector.shape_cast %62 : vector<1x24x4xf32> to vector<24x4xf32>
    %cst_30 = arith.constant dense<0.000000e+00> : vector<24x256xf32>
    %64 = tpu.matmul %63, %61, %cst_30 {dimension_numbers = #tpu.dot_dimension_numbers<[1], [0], [0], [1], [0, 0, 1, 1], [], []>} : vector<24x4xf32>, vector<4x256xf32>, vector<24x256xf32> -> vector<24x256xf32>
    %65 = arith.addf %60, %64 : vector<24x256xf32>
    %c223_i32 = arith.constant 223 : i32
    %66 = tpu.dynamic_rotate %29 by %c223_i32 dim 1 : vector<4x256xf32>, i32 -> vector<4x256xf32>
    %c7 = arith.constant 7 : index
    %c0_31 = arith.constant 0 : index
    %c0_32 = arith.constant 0 : index
    %67 = vector.load %arg2[%c7, %c0_31, %c0_32] : memref<9x24x4xf32, #tpu.memory_space<vmem>>, vector<1x24x4xf32>
    %68 = vector.shape_cast %67 : vector<1x24x4xf32> to vector<24x4xf32>
    %cst_33 = arith.constant dense<0.000000e+00> : vector<24x256xf32>
    %69 = tpu.matmul %68, %66, %cst_33 {dimension_numbers = #tpu.dot_dimension_numbers<[1], [0], [0], [1], [0, 0, 1, 1], [], []>} : vector<24x4xf32>, vector<4x256xf32>, vector<24x256xf32> -> vector<24x256xf32>
    %70 = arith.addf %65, %69 : vector<24x256xf32>
    %c222_i32 = arith.constant 222 : i32
    %71 = tpu.dynamic_rotate %29 by %c222_i32 dim 1 : vector<4x256xf32>, i32 -> vector<4x256xf32>
    %c8 = arith.constant 8 : index
    %c0_34 = arith.constant 0 : index
    %c0_35 = arith.constant 0 : index
    %72 = vector.load %arg2[%c8, %c0_34, %c0_35] : memref<9x24x4xf32, #tpu.memory_space<vmem>>, vector<1x24x4xf32>
    %73 = vector.shape_cast %72 : vector<1x24x4xf32> to vector<24x4xf32>
    %cst_36 = arith.constant dense<0.000000e+00> : vector<24x256xf32>
    %74 = tpu.matmul %73, %71, %cst_36 {dimension_numbers = #tpu.dot_dimension_numbers<[1], [0], [0], [1], [0, 0, 1, 1], [], []>} : vector<24x4xf32>, vector<4x256xf32>, vector<24x256xf32> -> vector<24x256xf32>
    %75 = arith.addf %70, %74 : vector<24x256xf32>
    %cst_37 = arith.constant dense<0.000000e+00> : vector<24x1xf32>
    %76 = tpu.matmul %75, %1, %cst_37 {dimension_numbers = #tpu.dot_dimension_numbers<[1], [0], [0], [1], [0, 0, 1, 1], [], []>} : vector<24x256xf32>, vector<256x1xf32>, vector<24x1xf32> -> vector<24x1xf32>
    %cst_38 = arith.constant dense<0.000000e+00> : vector<3x1xf32>
    %77 = tpu.matmul %14, %76, %cst_38 {dimension_numbers = #tpu.dot_dimension_numbers<[1], [0], [0], [1], [0, 0, 1, 1], [], []>} : vector<3x24xf32>, vector<24x1xf32>, vector<3x1xf32> -> vector<3x1xf32>
    %cst_39 = arith.constant 6.37755089E-4 : f32
    %78 = vector.broadcast %cst_39 : f32 to vector<3x1xf32>
    %79 = arith.mulf %77, %78 : vector<3x1xf32>
    %80 = arith.negf %79 : vector<3x1xf32>
    %81 = math.exp %80 : vector<3x1xf32>
    %cst_40 = arith.constant 1.000000e+00 : f32
    %82 = vector.broadcast %cst_40 : f32 to vector<3x1xf32>
    %83 = arith.addf %82, %81 : vector<3x1xf32>
    %84 = arith.divf %82, %83 : vector<3x1xf32>
    %cst_41 = arith.constant dense<0.000000e+00> : vector<24x1xf32>
    %85 = tpu.matmul %27, %84, %cst_41 {dimension_numbers = #tpu.dot_dimension_numbers<[1], [0], [0], [1], [0, 0, 1, 1], [], []>} : vector<24x3xf32>, vector<3x1xf32>, vector<24x1xf32> -> vector<24x1xf32>
    %86 = vector.broadcast %85 : vector<24x1xf32> to vector<24x256xf32>
    %87 = arith.mulf %75, %86 : vector<24x256xf32>
    %88 = vector.extract_strided_slice %87 {offsets = [0, 0], sizes = [8, 256], strides = [1, 1]} : vector<24x256xf32> to vector<8x256xf32>
    %89 = vector.extract_strided_slice %87 {offsets = [8, 0], sizes = [8, 256], strides = [1, 1]} : vector<24x256xf32> to vector<8x256xf32>
    %90 = arith.addf %88, %89 : vector<8x256xf32>
    %91 = vector.extract_strided_slice %87 {offsets = [16, 0], sizes = [8, 256], strides = [1, 1]} : vector<24x256xf32> to vector<8x256xf32>
    %92 = arith.addf %90, %91 : vector<8x256xf32>
    %c0_42 = arith.constant 0 : index
    %c0_43 = arith.constant 0 : index
    %c0_44 = arith.constant 0 : index
    %93 = vector.load %arg5[%c0_42, %c0_43, %c0_44] : memref<1x8x256xf32, #tpu.memory_space<vmem>>, vector<1x8x256xf32>
    %94 = vector.shape_cast %93 : vector<1x8x256xf32> to vector<8x256xf32>
    %95 = vector.shape_cast %92 : vector<8x256xf32> to vector<1x8x256xf32>
    tpu.vector_store %arg5[%c0_42, %c0_43, %c0_44], %95 {strides = array<i32>} : memref<1x8x256xf32, #tpu.memory_space<vmem>>, vector<1x8x256xf32>,
    return
  }
  func.func @transform_0(%arg0: i32) -> (i32, i32, i32) {
    %c0_i32 = arith.constant 0 : i32
    %c0_i32_0 = arith.constant 0 : i32
    %c0_i32_1 = arith.constant 0 : i32
    return %arg0, %c0_i32, %c0_i32_0 : i32, i32, i32
  }
  func.func @transform_1(%arg0: i32) -> (i32, i32, i32) {
    %c0_i32 = arith.constant 0 : i32
    %c0_i32_0 = arith.constant 0 : i32
    %c0_i32_1 = arith.constant 0 : i32
    %c0_i32_2 = arith.constant 0 : i32
    return %c0_i32, %c0_i32_0, %c0_i32_1 : i32, i32, i32
  }
  func.func @transform_2(%arg0: i32) -> (i32, i32) {
    %c0_i32 = arith.constant 0 : i32
    %c0_i32_0 = arith.constant 0 : i32
    %c0_i32_1 = arith.constant 0 : i32
    return %c0_i32, %c0_i32_0 : i32, i32
  }
  func.func @transform_3(%arg0: i32) -> (i32, i32) {
    %c0_i32 = arith.constant 0 : i32
    %c0_i32_0 = arith.constant 0 : i32
    %c0_i32_1 = arith.constant 0 : i32
    return %c0_i32, %c0_i32_0 : i32, i32
  }
  func.func @transform_4(%arg0: i32) -> (i32, i32, i32) {
    %c0_i32 = arith.constant 0 : i32
    %c0_i32_0 = arith.constant 0 : i32
    %c0_i32_1 = arith.constant 0 : i32
    return %arg0, %c0_i32, %c0_i32_0 : i32, i32, i32
  }
}

module attributes {stable_mosaic.version = 11 : i64} {
  func.func @_bundle_layer_kernel(%arg0: i32, %arg1: memref<1x4x256xf32, #tpu.memory_space<vmem>>, %arg2: memref<9x24x4xf32, #tpu.memory_space<vmem>>, %arg3: memref<24x1xf32, #tpu.memory_space<vmem>>, %arg4: memref<256x1xf32, #tpu.memory_space<vmem>>, %arg5: memref<1x8x256xf32, #tpu.memory_space<vmem>>) attributes {dimension_semantics = [#tpu.dimension_semantics<parallel>], iteration_bounds = array<i64: 2>, scalar_prefetch = 0 : i64, scratch_operands = 0 : i64, tpu.core_type = #tpu.core_type<tc>, window_params = [{transform_indices = @transform_0, window_bounds = array<i64: 1, 4, 256>}, {pipeline_mode = #tpu.pipeline_mode<synchronous>, transform_indices = @transform_1, window_bounds = array<i64: 9, 24, 4>}, {pipeline_mode = #tpu.pipeline_mode<synchronous>, transform_indices = @transform_2, window_bounds = array<i64: 24, 1>}, {pipeline_mode = #tpu.pipeline_mode<synchronous>, transform_indices = @transform_3, window_bounds = array<i64: 256, 1>}, {transform_indices = @transform_4, window_bounds = array<i64: 1, 8, 256>}]} {
    %c0 = arith.constant 0 : index
    %c0_0 = arith.constant 0 : index
    %0 = vector.load %arg3[%c0, %c0_0] : memref<24x1xf32, #tpu.memory_space<vmem>>, vector<24x1xf32>
    %c0_1 = arith.constant 0 : index
    %c0_2 = arith.constant 0 : index
    %1 = vector.load %arg4[%c0_1, %c0_2] : memref<256x1xf32, #tpu.memory_space<vmem>>, vector<256x1xf32>
    %2 = tpu.iota {dimensions = array<i32: 1>} : vector<3x24xi32>
    %3 = tpu.iota {dimensions = array<i32: 0>} : vector<3x24xi32>
    %c8_i32 = arith.constant 8 : i32
    %4 = vector.broadcast %c8_i32 : i32 to vector<3x24xi32>
    %5 = arith.muli %3, %4 : vector<3x24xi32>
    %6 = arith.cmpi sge, %2, %5 : vector<3x24xi32>
    %c1_i32 = arith.constant 1 : i32
    %7 = vector.broadcast %c1_i32 : i32 to vector<3x24xi32>
    %8 = arith.addi %3, %7 : vector<3x24xi32>
    %c8_i32_3 = arith.constant 8 : i32
    %9 = vector.broadcast %c8_i32_3 : i32 to vector<3x24xi32>
    %10 = arith.muli %8, %9 : vector<3x24xi32>
    %11 = arith.cmpi slt, %2, %10 : vector<3x24xi32>
    %12 = arith.andi %6, %11 : vector<3x24xi1>
    %13 = arith.extui %12 : vector<3x24xi1> to vector<3x24xi32>
    %14 = arith.sitofp %13 : vector<3x24xi32> to vector<3x24xf32>
    %15 = tpu.iota {dimensions = array<i32: 0>} : vector<24x3xi32>
    %16 = tpu.iota {dimensions = array<i32: 1>} : vector<24x3xi32>
    %c8_i32_4 = arith.constant 8 : i32
    %17 = vector.broadcast %c8_i32_4 : i32 to vector<24x3xi32>
    %18 = arith.muli %16, %17 : vector<24x3xi32>
    %19 = arith.cmpi sge, %15, %18 : vector<24x3xi32>
    %c1_i32_5 = arith.constant 1 : i32
    %20 = vector.broadcast %c1_i32_5 : i32 to vector<24x3xi32>
    %21 = arith.addi %16, %20 : vector<24x3xi32>
    %c8_i32_6 = arith.constant 8 : i32
    %22 = vector.broadcast %c8_i32_6 : i32 to vector<24x3xi32>
    %23 = arith.muli %21, %22 : vector<24x3xi32>
    %24 = arith.cmpi slt, %15, %23 : vector<24x3xi32>
    %25 = arith.andi %19, %24 : vector<24x3xi1>
    %26 = arith.extui %25 : vector<24x3xi1> to vector<24x3xi32>
    %27 = arith.sitofp %26 : vector<24x3xi32> to vector<24x3xf32>
    %c0_7 = arith.constant 0 : index
    %c0_8 = arith.constant 0 : index
    %c0_9 = arith.constant 0 : index
    %28 = vector.load %arg1[%c0_7, %c0_8, %c0_9] : memref<1x4x256xf32, #tpu.memory_space<vmem>>, vector<1x4x256xf32>
    %29 = vector.shape_cast %28 : vector<1x4x256xf32> to vector<4x256xf32>
    %30 = vector.shape_cast %0 : vector<24x1xf32> to vector<24x1xf32>
    %31 = vector.broadcast %30 : vector<24x1xf32> to vector<24x256xf32>
    %c0_10 = arith.constant 0 : index
    %c0_11 = arith.constant 0 : index
    %c0_12 = arith.constant 0 : index
    %32 = vector.load %arg2[%c0_10, %c0_11, %c0_12] : memref<9x24x4xf32, #tpu.memory_space<vmem>>, vector<1x24x4xf32>
    %33 = vector.shape_cast %32 : vector<1x24x4xf32> to vector<24x4xf32>
    %cst = arith.constant dense<0.000000e+00> : vector<24x256xf32>
    %34 = tpu.matmul %33, %29, %cst {dimension_numbers = #tpu.dot_dimension_numbers<[1], [0], [0], [1], [0, 0, 1, 1], [], []>} : vector<24x4xf32>, vector<4x256xf32>, vector<24x256xf32> -> vector<24x256xf32>
    %35 = arith.addf %31, %34 : vector<24x256xf32>
    %c255_i32 = arith.constant 255 : i32
    %36 = tpu.dynamic_rotate %29 by %c255_i32 dim 1 : vector<4x256xf32>, i32 -> vector<4x256xf32>
    %c1 = arith.constant 1 : index
    %c0_13 = arith.constant 0 : index
    %c0_14 = arith.constant 0 : index
    %37 = vector.load %arg2[%c1, %c0_13, %c0_14] : memref<9x24x4xf32, #tpu.memory_space<vmem>>, vector<1x24x4xf32>
    %38 = vector.shape_cast %37 : vector<1x24x4xf32> to vector<24x4xf32>
    %cst_15 = arith.constant dense<0.000000e+00> : vector<24x256xf32>
    %39 = tpu.matmul %38, %36, %cst_15 {dimension_numbers = #tpu.dot_dimension_numbers<[1], [0], [0], [1], [0, 0, 1, 1], [], []>} : vector<24x4xf32>, vector<4x256xf32>, vector<24x256xf32> -> vector<24x256xf32>
    %40 = arith.addf %35, %39 : vector<24x256xf32>
    %c254_i32 = arith.constant 254 : i32
    %41 = tpu.dynamic_rotate %29 by %c254_i32 dim 1 : vector<4x256xf32>, i32 -> vector<4x256xf32>
    %c2 = arith.constant 2 : index
    %c0_16 = arith.constant 0 : index
    %c0_17 = arith.constant 0 : index
    %42 = vector.load %arg2[%c2, %c0_16, %c0_17] : memref<9x24x4xf32, #tpu.memory_space<vmem>>, vector<1x24x4xf32>
    %43 = vector.shape_cast %42 : vector<1x24x4xf32> to vector<24x4xf32>
    %cst_18 = arith.constant dense<0.000000e+00> : vector<24x256xf32>
    %44 = tpu.matmul %43, %41, %cst_18 {dimension_numbers = #tpu.dot_dimension_numbers<[1], [0], [0], [1], [0, 0, 1, 1], [], []>} : vector<24x4xf32>, vector<4x256xf32>, vector<24x256xf32> -> vector<24x256xf32>
    %45 = arith.addf %40, %44 : vector<24x256xf32>
    %c240_i32 = arith.constant 240 : i32
    %46 = tpu.dynamic_rotate %29 by %c240_i32 dim 1 : vector<4x256xf32>, i32 -> vector<4x256xf32>
    %c3 = arith.constant 3 : index
    %c0_19 = arith.constant 0 : index
    %c0_20 = arith.constant 0 : index
    %47 = vector.load %arg2[%c3, %c0_19, %c0_20] : memref<9x24x4xf32, #tpu.memory_space<vmem>>, vector<1x24x4xf32>
    %48 = vector.shape_cast %47 : vector<1x24x4xf32> to vector<24x4xf32>
    %cst_21 = arith.constant dense<0.000000e+00> : vector<24x256xf32>
    %49 = tpu.matmul %48, %46, %cst_21 {dimension_numbers = #tpu.dot_dimension_numbers<[1], [0], [0], [1], [0, 0, 1, 1], [], []>} : vector<24x4xf32>, vector<4x256xf32>, vector<24x256xf32> -> vector<24x256xf32>
    %50 = arith.addf %45, %49 : vector<24x256xf32>
    %c239_i32 = arith.constant 239 : i32
    %51 = tpu.dynamic_rotate %29 by %c239_i32 dim 1 : vector<4x256xf32>, i32 -> vector<4x256xf32>
    %c4 = arith.constant 4 : index
    %c0_22 = arith.constant 0 : index
    %c0_23 = arith.constant 0 : index
    %52 = vector.load %arg2[%c4, %c0_22, %c0_23] : memref<9x24x4xf32, #tpu.memory_space<vmem>>, vector<1x24x4xf32>
    %53 = vector.shape_cast %52 : vector<1x24x4xf32> to vector<24x4xf32>
    %cst_24 = arith.constant dense<0.000000e+00> : vector<24x256xf32>
    %54 = tpu.matmul %53, %51, %cst_24 {dimension_numbers = #tpu.dot_dimension_numbers<[1], [0], [0], [1], [0, 0, 1, 1], [], []>} : vector<24x4xf32>, vector<4x256xf32>, vector<24x256xf32> -> vector<24x256xf32>
    %55 = arith.addf %50, %54 : vector<24x256xf32>
    %c238_i32 = arith.constant 238 : i32
    %56 = tpu.dynamic_rotate %29 by %c238_i32 dim 1 : vector<4x256xf32>, i32 -> vector<4x256xf32>
    %c5 = arith.constant 5 : index
    %c0_25 = arith.constant 0 : index
    %c0_26 = arith.constant 0 : index
    %57 = vector.load %arg2[%c5, %c0_25, %c0_26] : memref<9x24x4xf32, #tpu.memory_space<vmem>>, vector<1x24x4xf32>
    %58 = vector.shape_cast %57 : vector<1x24x4xf32> to vector<24x4xf32>
    %cst_27 = arith.constant dense<0.000000e+00> : vector<24x256xf32>
    %59 = tpu.matmul %58, %56, %cst_27 {dimension_numbers = #tpu.dot_dimension_numbers<[1], [0], [0], [1], [0, 0, 1, 1], [], []>} : vector<24x4xf32>, vector<4x256xf32>, vector<24x256xf32> -> vector<24x256xf32>
    %60 = arith.addf %55, %59 : vector<24x256xf32>
    %c224_i32 = arith.constant 224 : i32
    %61 = tpu.dynamic_rotate %29 by %c224_i32 dim 1 : vector<4x256xf32>, i32 -> vector<4x256xf32>
    %c6 = arith.constant 6 : index
    %c0_28 = arith.constant 0 : index
    %c0_29 = arith.constant 0 : index
    %62 = vector.load %arg2[%c6, %c0_28, %c0_29] : memref<9x24x4xf32, #tpu.memory_space<vmem>>, vector<1x24x4xf32>
    %63 = vector.shape_cast %62 : vector<1x24x4xf32> to vector<24x4xf32>
    %cst_30 = arith.constant dense<0.000000e+00> : vector<24x256xf32>
    %64 = tpu.matmul %63, %61, %cst_30 {dimension_numbers = #tpu.dot_dimension_numbers<[1], [0], [0], [1], [0, 0, 1, 1], [], []>} : vector<24x4xf32>, vector<4x256xf32>, vector<24x256xf32> -> vector<24x256xf32>
    %65 = arith.addf %60, %64 : vector<24x256xf32>
    %c223_i32 = arith.constant 223 : i32
    %66 = tpu.dynamic_rotate %29 by %c223_i32 dim 1 : vector<4x256xf32>, i32 -> vector<4x256xf32>
    %c7 = arith.constant 7 : index
    %c0_31 = arith.constant 0 : index
    %c0_32 = arith.constant 0 : index
    %67 = vector.load %arg2[%c7, %c0_31, %c0_32] : memref<9x24x4xf32, #tpu.memory_space<vmem>>, vector<1x24x4xf32>
    %68 = vector.shape_cast %67 : vector<1x24x4xf32> to vector<24x4xf32>
    %cst_33 = arith.constant dense<0.000000e+00> : vector<24x256xf32>
    %69 = tpu.matmul %68, %66, %cst_33 {dimension_numbers = #tpu.dot_dimension_numbers<[1], [0], [0], [1], [0, 0, 1, 1], [], []>} : vector<24x4xf32>, vector<4x256xf32>, vector<24x256xf32> -> vector<24x256xf32>
    %70 = arith.addf %65, %69 : vector<24x256xf32>
    %c222_i32 = arith.constant 222 : i32
    %71 = tpu.dynamic_rotate %29 by %c222_i32 dim 1 : vector<4x256xf32>, i32 -> vector<4x256xf32>
    %c8 = arith.constant 8 : index
    %c0_34 = arith.constant 0 : index
    %c0_35 = arith.constant 0 : index
    %72 = vector.load %arg2[%c8, %c0_34, %c0_35] : memref<9x24x4xf32, #tpu.memory_space<vmem>>, vector<1x24x4xf32>
    %73 = vector.shape_cast %72 : vector<1x24x4xf32> to vector<24x4xf32>
    %cst_36 = arith.constant dense<0.000000e+00> : vector<24x256xf32>
    %74 = tpu.matmul %73, %71, %cst_36 {dimension_numbers = #tpu.dot_dimension_numbers<[1], [0], [0], [1], [0, 0, 1, 1], [], []>} : vector<24x4xf32>, vector<4x256xf32>, vector<24x256xf32> -> vector<24x256xf32>
    %75 = arith.addf %70, %74 : vector<24x256xf32>
    %cst_37 = arith.constant dense<0.000000e+00> : vector<24x1xf32>
    %76 = tpu.matmul %75, %1, %cst_37 {dimension_numbers = #tpu.dot_dimension_numbers<[1], [0], [0], [1], [0, 0, 1, 1], [], []>} : vector<24x256xf32>, vector<256x1xf32>, vector<24x1xf32> -> vector<24x1xf32>
    %cst_38 = arith.constant dense<0.000000e+00> : vector<3x1xf32>
    %77 = tpu.matmul %14, %76, %cst_38 {dimension_numbers = #tpu.dot_dimension_numbers<[1], [0], [0], [1], [0, 0, 1, 1], [], []>} : vector<3x24xf32>, vector<24x1xf32>, vector<3x1xf32> -> vector<3x1xf32>
    %cst_39 = arith.constant 6.37755089E-4 : f32
    %78 = vector.broadcast %cst_39 : f32 to vector<3x1xf32>
    %79 = arith.mulf %77, %78 : vector<3x1xf32>
    %80 = arith.negf %79 : vector<3x1xf32>
    %81 = math.exp %80 : vector<3x1xf32>
    %cst_40 = arith.constant 1.000000e+00 : f32
    %82 = vector.broadcast %cst_40 : f32 to vector<3x1xf32>
    %83 = arith.addf %82, %81 : vector<3x1xf32>
    %84 = arith.divf %82, %83 : vector<3x1xf32>
    %cst_41 = arith.constant dense<0.000000e+00> : vector<24x1xf32>
    %85 = tpu.matmul %27, %84, %cst_41 {dimension_numbers = #tpu.dot_dimension_numbers<[1], [0], [0], [1], [0, 0, 1, 1], [], []>} : vector<24x3xf32>, vector<3x1xf32>, vector<24x1xf32> -> vector<24x1xf32>
    %86 = vector.broadcast %85 : vector<24x1xf32> to vector<24x256xf32>
    %87 = arith.mulf %75, %86 : vector<24x256xf32>
    %88 = vector.extract_strided_slice %87 {offsets = [0, 0], sizes = [8, 256], strides = [1, 1]} : vector<24x256xf32> to vector<8x256xf32>
    %89 = vector.extract_strided_slice %87 {offsets = [8, 0], sizes = [8, 256], strides = [1, 1]} : vector<24x256xf32> to vector<8x256xf32>
    %90 = arith.addf %88, %89 : vector<8x256xf32>
    %91 = vector.extract_strided_slice %87 {offsets = [16, 0], sizes = [8, 256], strides = [1, 1]} : vector<24x256xf32> to vector<8x256xf32>
    %92 = arith.addf %90, %91 : vector<8x256xf32>
    %c0_42 = arith.constant 0 : index
    %c0_43 = arith.constant 0 : index
    %c0_44 = arith.constant 0 : index
    %93 = vector.load %arg5[%c0_42, %c0_43, %c0_44] : memref<1x8x256xf32, #tpu.memory_space<vmem>>, vector<1x8x256xf32>
    %94 = vector.shape_cast %93 : vector<1x8x256xf32> to vector<8x256xf32>
    %95 = vector.shape_cast %92 : vector<8x256xf32> to vector<1x8x256xf32>
    tpu.vector_store %arg5[%c0_42, %c0_43, %c0_44], %95 {strides = array<i32>} : memref<1x8x256xf32, #tpu.memory_space<vmem>>, vector<1x8x256xf32>,
    return
  }
  func.func @transform_0(%arg0: i32) -> (i32, i32, i32) {
    %c0_i32 = arith.constant 0 : i32
    %c0_i32_0 = arith.constant 0 : i32
    %c0_i32_1 = arith.constant 0 : i32
    return %arg0, %c0_i32, %c0_i32_0 : i32, i32, i32
  }
  func.func @transform_1(%arg0: i32) -> (i32, i32, i32) {
    %c0_i32 = arith.constant 0 : i32
    %c0_i32_0 = arith.constant 0 : i32
    %c0_i32_1 = arith.constant 0 : i32
    %c0_i32_2 = arith.constant 0 : i32
    return %c0_i32, %c0_i32_0, %c0_i32_1 : i32, i32, i32
  }
  func.func @transform_2(%arg0: i32) -> (i32, i32) {
    %c0_i32 = arith.constant 0 : i32
    %c0_i32_0 = arith.constant 0 : i32
    %c0_i32_1 = arith.constant 0 : i32
    return %c0_i32, %c0_i32_0 : i32, i32
  }
  func.func @transform_3(%arg0: i32) -> (i32, i32) {
    %c0_i32 = arith.constant 0 : i32
    %c0_i32_0 = arith.constant 0 : i32
    %c0_i32_1 = arith.constant 0 : i32
    return %c0_i32, %c0_i32_0 : i32, i32
  }
  func.func @transform_4(%arg0: i32) -> (i32, i32, i32) {
    %c0_i32 = arith.constant 0 : i32
    %c0_i32_0 = arith.constant 0 : i32
    %c0_i32_1 = arith.constant 0 : i32
    return %arg0, %c0_i32, %c0_i32_0 : i32, i32, i32
  }
}

</mosaic_0001>

<llo_original>
// kernel: tpu_custom_call.1
$region0: #{tpu_custom_call.1}
  #allocation0 [shape = 'u32[]', space=smem, size = 0x4, offset = 0x4, fixed_abs, tag = 'smem constant byte address 0x4 - core index']
  #allocation1 [shape = 'u32[144,128]{1,0:T(1,128)}', space=vmem, size = 0x12000, scoped, tag = 'internal scratch']
  %s0 = inlined_call_operand.vmem [shape: f32[2,4,256], index: 0, kind: input, shape index: {}]
  %s1 = inlined_call_operand.vmem [shape: f32[9,24,4], index: 1, kind: input, shape index: {}]
  %s2 = inlined_call_operand.vmem [shape: f32[24,1], index: 2, kind: input, shape index: {}]
  %s3 = inlined_call_operand.vmem [shape: f32[256,1], index: 3, kind: input, shape index: {}]
  %s4 = inlined_call_operand.hbm [shape: f32[2,8,256], index: 4, kind: output, shape index: {}]
  %s5 = sld [smem:[#allocation0]]
  $region49: #{tpu_custom_call.1} parent=0
    _
  %s7 = ssub.s32 1, %s5
  %s8 = scalar_select 0, %s7, %s5
  $region1: #{tpu_custom_call.1} parent=0
    #allocation2 [shape = 'u8[16384]{0}', space=vmem, size = 0x4000, scoped, tag = 'output window, operand 0']
    #allocation3 [shape = 's32[2]{0}', space=sflag, size = 0x8, scoped, tag = 'scoped memory for tpu_custom_call.1']
    %9 = vsyncpa [#allocation3], 0
    %s10 = scalar_lea.sflag [#allocation3], 1
    %11 = vsyncpa %s10, 0
    loop: start=0, step=1, limit=4
    $region2: #{tpu_custom_call.1} parent=1 // loop_pre_header
      _
    $region3: #{tpu_custom_call.1} parent=1 // loop_header
      %s13 = sphi 0, %s17
      %p14 = scmp.ge.s32.totalorder %s13, 4
      %s23 = sphi 0, %s25
      %s26 = sphi 0, %s23
      %s27 = sphi 0, %s26
      %s43 = sphi 0, %s27
      %s47 = sphi 0, %s47
      %s49 = sphi 0, %s47
      %s50 = sphi 0, %s49
      %s64 = sphi 0, %s50
      %s68 = sphi 0, %s68
      %s70 = sphi 0, %s68
      %s71 = sphi 0, %s70
      %s85 = sphi 0, %s71
      %s89 = sphi 0, %s89
      %s91 = sphi 0, %s89
      %s92 = sphi 0, %s91
      %s106 = sphi 0, %s92
      %s112 = sphi 0, %s114
      %s115 = sphi 0, %s112
      %s116 = sphi 0, %s115
      %s132 = sphi 0, %s116
    $region4: #{tpu_custom_call.1} parent=1 // loop_header_branch
      %16 = sbr.rel (%p14) target = $region8
    $region5: #{tpu_custom_call.1} parent=1 // loop_body
      %s18 = ssub.s32 %s13, 1
      %s19 = ssub.s32 %s13, 2
      %s20 = sadd.s32 %s13, 1
      %s21 = ssub.s32 %s13, %s20
      %p22 = scmp.eq.s32.totalorder %s21, 0
      %s24 = sadd.s32 %s23, 1
      %s25 = scalar_select %p22, %s23, %s24
      %p28 = pneg %p22
      %p29 = scmp.eq.s32.totalorder %s13, 1
      %p30 = por %p28, %p29
      %p31 = scmp.ne.s32.totalorder %s23, %s26
      %p32 = scmp.eq.s32.totalorder %s13, 0
      %p33 = por %p31, %p32
      %p34 = scmp.ne.s32.totalorder %s23, %s26
      %p35 = scmp.eq.s32.totalorder %s18, 1
      %p36 = por %p34, %p35
      %p37 = scmp.ne.s32.totalorder %s26, %s27
      %p38 = scmp.eq.s32.totalorder %s18, 0
      %p39 = por %p37, %p38
      %p40 = scmp.ne.s32.totalorder %s26, %s27
      %p41 = scmp.eq.s32.totalorder %s19, 1
      %p42 = por %p40, %p41
      %p44 = scmp.ne.s32.totalorder %s27, %s43
      %p45 = scmp.eq.s32.totalorder %s19, 0
      %p46 = por %p44, %p45
      %s48 = sadd.s32 %s47, 1
      %p51 = scmp.eq.s32.totalorder %s13, 1
      %p52 = scmp.ne.s32.totalorder %s47, %s49
      %p53 = scmp.eq.s32.totalorder %s13, 0
      %p54 = por %p52, %p53
      %p55 = scmp.ne.s32.totalorder %s47, %s49
      %p56 = scmp.eq.s32.totalorder %s18, 1
      %p57 = por %p55, %p56
      %p58 = scmp.ne.s32.totalorder %s49, %s50
      %p59 = scmp.eq.s32.totalorder %s18, 0
      %p60 = por %p58, %p59
      %p61 = scmp.ne.s32.totalorder %s49, %s50
      %p62 = scmp.eq.s32.totalorder %s19, 1
      %p63 = por %p61, %p62
      %p65 = scmp.ne.s32.totalorder %s50, %s64
      %p66 = scmp.eq.s32.totalorder %s19, 0
      %p67 = por %p65, %p66
      %s69 = sadd.s32 %s68, 1
      %p72 = scmp.eq.s32.totalorder %s13, 1
      %p73 = scmp.ne.s32.totalorder %s68, %s70
      %p74 = scmp.eq.s32.totalorder %s13, 0
      %p75 = por %p73, %p74
      %p76 = scmp.ne.s32.totalorder %s68, %s70
      %p77 = scmp.eq.s32.totalorder %s18, 1
      %p78 = por %p76, %p77
      %p79 = scmp.ne.s32.totalorder %s70, %s71
      %p80 = scmp.eq.s32.totalorder %s18, 0
      %p81 = por %p79, %p80
      %p82 = scmp.ne.s32.totalorder %s70, %s71
      %p83 = scmp.eq.s32.totalorder %s19, 1
      %p84 = por %p82, %p83
      %p86 = scmp.ne.s32.totalorder %s71, %s85
      %p87 = scmp.eq.s32.totalorder %s19, 0
      %p88 = por %p86, %p87
      %s90 = sadd.s32 %s89, 1
      %p93 = scmp.eq.s32.totalorder %s13, 1
      %p94 = scmp.ne.s32.totalorder %s89, %s91
      %p95 = scmp.eq.s32.totalorder %s13, 0
      %p96 = por %p94, %p95
      %p97 = scmp.ne.s32.totalorder %s89, %s91
      %p98 = scmp.eq.s32.totalorder %s18, 1
      %p99 = por %p97, %p98
      %p100 = scmp.ne.s32.totalorder %s91, %s92
      %p101 = scmp.eq.s32.totalorder %s18, 0
      %p102 = por %p100, %p101
      %p103 = scmp.ne.s32.totalorder %s91, %s92
      %p104 = scmp.eq.s32.totalorder %s19, 1
      %p105 = por %p103, %p104
      %p107 = scmp.ne.s32.totalorder %s92, %s106
      %p108 = scmp.eq.s32.totalorder %s19, 0
      %p109 = por %p107, %p108
      %s110 = ssub.s32 %s13, %s20
      %p111 = scmp.eq.s32.totalorder %s110, 0
      %s113 = sadd.s32 %s112, 1
      %s114 = scalar_select %p111, %s112, %s113
      %p117 = pneg %p111
      %p118 = scmp.eq.s32.totalorder %s13, 1
      %p119 = por %p117, %p118
      %p120 = scmp.ne.s32.totalorder %s112, %s115
      %p121 = scmp.eq.s32.totalorder %s13, 0
      %p122 = por %p120, %p121
      %p123 = scmp.ne.s32.totalorder %s112, %s115
      %p124 = scmp.eq.s32.totalorder %s18, 1
      %p125 = por %p123, %p124
      %p126 = scmp.ne.s32.totalorder %s115, %s116
      %p127 = scmp.eq.s32.totalorder %s18, 0
      %p128 = por %p126, %p127
      %p129 = scmp.ne.s32.totalorder %s115, %s116
      %p130 = scmp.eq.s32.totalorder %s19, 1
      %p131 = por %p129, %p130
      %p133 = scmp.ne.s32.totalorder %s116, %s132
      %p134 = scmp.eq.s32.totalorder %s19, 0
      %p135 = por %p133, %p134
      %p136 = scmp.le.s32.totalorder 1, %s13
      %p137 = scmp.lt.s32.totalorder %s13, 3
      %p138 = pnand %p136, %p137
      %p139 = pneg %p138
      // Predicated region
      $region9: #{tpu_custom_call.1} parent=5 // pred_check
        _
      $region10: #{tpu_custom_call.1} parent=5 // pred_check_branch
        %141 = sbr.rel (%p138) target = $region12
      $region11: #{tpu_custom_call.1} parent=5 // pred_region
        %s142 = ssub.s32 %s13, 1
        // Predicated region
        $region13: #{tpu_custom_call.1} parent=11 // pred_check
          %p143 = pneg %p60
        $region14: #{tpu_custom_call.1} parent=11 // pred_check_branch
          %145 = sbr.rel (%p143) target = $region16
        $region15: #{tpu_custom_call.1} parent=11 // pred_region
          _
        $region16: #{tpu_custom_call.1} parent=11 // pred_fallthru
          _
        // Predicated region
        $region17: #{tpu_custom_call.1} parent=11 // pred_check
          %p146 = pneg %p81
        $region18: #{tpu_custom_call.1} parent=11 // pred_check_branch
          %148 = sbr.rel (%p146) target = $region20
        $region19: #{tpu_custom_call.1} parent=11 // pred_region
          _
        $region20: #{tpu_custom_call.1} parent=11 // pred_fallthru
          _
        // Predicated region
        $region21: #{tpu_custom_call.1} parent=11 // pred_check
          %p149 = pneg %p102
        $region22: #{tpu_custom_call.1} parent=11 // pred_check_branch
          %151 = sbr.rel (%p149) target = $region24
        $region23: #{tpu_custom_call.1} parent=11 // pred_region
          _
        $region24: #{tpu_custom_call.1} parent=11 // pred_fallthru
          _
      $region12: #{tpu_custom_call.1} parent=5 // pred_fallthru
        _
      %p152 = scmp.lt.s32.totalorder %s13, 2
      // Predicated region
      $region25: #{tpu_custom_call.1} parent=5 // pred_check
        %p153 = pneg %p152
      $region26: #{tpu_custom_call.1} parent=5 // pred_check_branch
        %155 = sbr.rel (%p153) target = $region28
      $region27: #{tpu_custom_call.1} parent=5 // pred_region
        // Predicated region
        $region29: #{tpu_custom_call.1} parent=27 // pred_check
          %p156 = pneg %p33
        $region30: #{tpu_custom_call.1} parent=27 // pred_check_branch
          %158 = sbr.rel (%p156) target = $region32
        $region31: #{tpu_custom_call.1} parent=27 // pred_region
          %p159 = scmp.lt.s32.totalorder %s13, 1
          %s160 = scalar_select %p159, %s13, 1
          %s161 = smul.addr %s160, 2
          %s162 = smul.addr %s161, 4
          %s163 = scalar_lea.vmem %s0, %s162
        $region32: #{tpu_custom_call.1} parent=27 // pred_fallthru
          _
      $region28: #{tpu_custom_call.1} parent=5 // pred_fallthru
        _
      %p164 = scmp.le.s32.totalorder 1, %s13
      %p165 = scmp.lt.s32.totalorder %s13, 3
      %p166 = pnand %p164, %p165
      %p167 = pneg %p166
      // Predicated region
      $region33: #{tpu_custom_call.1} parent=5 // pred_check
        _
      $region34: #{tpu_custom_call.1} parent=5 // pred_check_branch
        %169 = sbr.rel (%p166) target = $region36
      $region35: #{tpu_custom_call.1} parent=5 // pred_region
        %s170 = ssub.s32 %s13, 1
        %p171 = scmp.lt.s32.totalorder %s18, 1
        %s172 = scalar_select %p171, %s18, 1
        %s173 = smul.addr %s172, 2
        %s174 = smul.addr %s173, 4
        %s175 = scalar_lea.vmem %s0, %s174
        %p176 = pneg %p39
        %p177 = pneg %p36
        %p178 = pneg %p60
        %p179 = pneg %p57
        %p180 = pneg %p81
        %p181 = pneg %p78
        %p182 = pneg %p102
        %p183 = pneg %p99
        %p184 = pneg %p128
        %p185 = pneg %p125
        %s186 = sand.u32 %s115, 1
        %s187 = scalar_lea.sflag [#allocation3], %s186
        %s188 = sand.u32 %s115, 1
        %s189 = smul.addr %s188, 16
        %s190 = scalar_lea.vmem [#allocation2], %s189
        %p191 = scmp.lt.s32.totalorder %s18, 1
        %s192 = scalar_select %p191, %s18, 1
        %s193 = smul.addr %s192, 2
        %s194 = smul.addr %s193, 4
        %s195 = scalar_lea.vmem %s0, %s194
        %v196 = vld [vmem:[%s2] sm:$0xff]
        %v197 = vld [vmem:[%s2 + $0x8] sm:$0xff]
        %v198 = vld [vmem:[%s2 + $0x10] sm:$0xff]
        %v199 = vld [vmem:[%s3] sm:$0xff]
        %v200 = vld [vmem:[%s3 + $0x8] sm:$0xff]
        %v201 = vld [vmem:[%s3 + $0x10] sm:$0xff]
        %v202 = vld [vmem:[%s3 + $0x18] sm:$0xff]
        %v203 = vld [vmem:[%s3 + $0x20] sm:$0xff]
        %v204 = vld [vmem:[%s3 + $0x28] sm:$0xff]
        %v205 = vld [vmem:[%s3 + $0x30] sm:$0xff]
        %v206 = vld [vmem:[%s3 + $0x38] sm:$0xff]
        %v207 = vld [vmem:[%s3 + $0x40] sm:$0xff]
        %v208 = vld [vmem:[%s3 + $0x48] sm:$0xff]
        %v209 = vld [vmem:[%s3 + $0x50] sm:$0xff]
        %v210 = vld [vmem:[%s3 + $0x58] sm:$0xff]
        %v211 = vld [vmem:[%s3 + $0x60] sm:$0xff]
        %v212 = vld [vmem:[%s3 + $0x68] sm:$0xff]
        %v213 = vld [vmem:[%s3 + $0x70] sm:$0xff]
        %v214 = vld [vmem:[%s3 + $0x78] sm:$0xff]
        %v215 = vld [vmem:[%s3 + $0x80] sm:$0xff]
        %v216 = vld [vmem:[%s3 + $0x88] sm:$0xff]
        %v217 = vld [vmem:[%s3 + $0x90] sm:$0xff]
        %v218 = vld [vmem:[%s3 + $0x98] sm:$0xff]
        %v219 = vld [vmem:[%s3 + $0xa0] sm:$0xff]
        %v220 = vld [vmem:[%s3 + $0xa8] sm:$0xff]
        %v221 = vld [vmem:[%s3 + $0xb0] sm:$0xff]
        %v222 = vld [vmem:[%s3 + $0xb8] sm:$0xff]
        %v223 = vld [vmem:[%s3 + $0xc0] sm:$0xff]
        %v224 = vld [vmem:[%s3 + $0xc8] sm:$0xff]
        %v225 = vld [vmem:[%s3 + $0xd0] sm:$0xff]
        %v226 = vld [vmem:[%s3 + $0xd8] sm:$0xff]
        %v227 = vld [vmem:[%s3 + $0xe0] sm:$0xff]
        %v228 = vld [vmem:[%s3 + $0xe8] sm:$0xff]
        %v229 = vld [vmem:[%s3 + $0xf0] sm:$0xff]
        %v230 = vld [vmem:[%s3 + $0xf8] sm:$0xff]
        %v231 = vlaneseq
        %v232 = vand.u32 %v231, 127
        %v233 = vlaneseq
        %v234 = vshrl.u32 %v233, 7
        %v235 = vmul.u32 %v234, 8
        %vm236 = vcmp.ge.s32.totalorder %v232, %v235
        %v237 = vadd.s32 %v234, 1
        %v238 = vmul.u32 %v237, 8
        %vm239 = vcmp.lt.s32.totalorder %v232, %v238
        %vm240 = vmand %vm236, %vm239
        %v241 = vsel %vm240, 1, 0
        %v242 = vcvt.s32.f32 %v241
        %v243 = vadd.s32 %v234, 8
        %v244 = vadd.s32 %v234, 16
        %v245 = vmul.u32 %v232, 8
        %vm246 = vcmp.ge.s32.totalorder %v234, %v245
        %vm247 = vcmp.ge.s32.totalorder %v243, %v245
        %vm248 = vcmp.ge.s32.totalorder %v244, %v245
        %v249 = vadd.s32 %v232, 1
        %v250 = vmul.u32 %v249, 8
        %vm251 = vcmp.lt.s32.totalorder %v234, %v250
        %vm252 = vcmp.lt.s32.totalorder %v243, %v250
        %vm253 = vcmp.lt.s32.totalorder %v244, %v250
        %vm254 = vmand %vm246, %vm251
        %vm255 = vmand %vm247, %vm252
        %vm256 = vmand %vm248, %vm253
        %v257 = vsel %vm254, 1, 0
        %v258 = vsel %vm255, 1, 0
        %v259 = vsel %vm256, 1, 0
        %v260 = vcvt.s32.f32 %v257
        %v261 = vcvt.s32.f32 %v258
        %v262 = vcvt.s32.f32 %v259
        %v263 = vld [vmem:[%s195] sm:$0xff]
        %265 = vset.pattern.permute.xlu0 0
        %266 = vperm.xlu0 %265, %v196
        %v267 = vpop.permute.xlu0 %266
        %270 = vset.pattern.permute.xlu0 0
        %271 = vperm.xlu0 %270, %v197
        %v272 = vpop.permute.xlu0 %271
        %275 = vset.pattern.permute.xlu0 0
        %276 = vperm.xlu0 %275, %v198
        %v277 = vpop.permute.xlu0 %276
        %v279 = vld [vmem:[%s1] sm:$0xff]
        %v280 = vld [vmem:[%s1 + $0x8] sm:$0xff]
        %v281 = vld [vmem:[%s1 + $0x10] sm:$0xff]
        %v283 = vcombine.high %v263, %v263
        %vm284 = vcmask 31744
        %v286 = vsel %vm284, %v279, 0
        %v289 = vsel %vm284, %v280, 0
        %v292 = vsel %vm284, %v281, 0
        %vm294 = vcmask 1043456
        %v295 = vsel %vm294, %v263, 0
        %v297 = vsel %vm294, %v283, 0
        %299 = vmatprep.subr.mxu0 0.0
        %300 = vmatpush1.msra.mxu0 0.0
        %301 = vmatprep.subr.mxu0 0.0
        %302 = vmatpush1.msra.mxu0 0.0
        %303 = vmatprep.subr.mxu0 0.0
        %304 = vmatpush1.msra.mxu0 0.0
        %305 = vmatprep.subr.mxu0 0.0
        %306 = vmatpush1.msra.mxu0 0.0
        %307 = vmatprep.subr.mxu0 0.0
        %308 = vmatpush1.msra.mxu0 0.0
        %309 = vmatprep.subr.mxu0 0.0
        %310 = vmatpush1.msra.mxu0 0.0
        %311 = vmatprep.subr.mxu0 0.0
        %312 = vmatpush1.msra.mxu0 0.0
        %313 = vmatprep.subr.mxu0 0.0
        %314 = vmatpush1.msra.mxu0 0.0
        %315 = vmatprep.subr.mxu0 0.0
        %316 = vmatpush1.msra.mxu0 0.0
        %317 = vmatprep.subr.mxu0 0.0
        %318 = vmatpush1.msra.mxu0 0.0
        %319 = vmatprep.subr.mxu0 0.0
        %320 = vmatpush1.msra.mxu0 0.0
        %321 = vmatprep.subr.mxu0 0.0
        %322 = vmatpush1.msra.mxu0 0.0
        %323 = vmatprep.subr.mxu0 0.0
        %324 = vmatpush1.msra.mxu0 0.0
        %325 = vmatprep.subr.mxu0 0.0
        %326 = vmatpush1.msra.mxu0 0.0
        %327 = vmatprep.subr.mxu0 0.0
        %328 = vmatpush1.msra.mxu0 0.0
        %329 = vmatprep.subr.mxu0 %v297
        %330 = vmatpush1.msra.mxu0 %v295
        %331 = vmatprep.subr.mxu0 0.0
        %332 = vmatpush2.msra.mxu0 0.0
        %333 = vmatprep.subr.mxu0 0.0
        %334 = vmatpush2.msra.mxu0 0.0
        %335 = vmatprep.subr.mxu0 0.0
        %336 = vmatpush2.msra.mxu0 0.0
        %337 = vmatprep.subr.mxu0 0.0
        %338 = vmatpush2.msra.mxu0 0.0
        %339 = vmatprep.subr.mxu0 0.0
        %340 = vmatpush2.msra.mxu0 0.0
        %341 = vmatprep.subr.mxu0 0.0
        %342 = vmatpush2.msra.mxu0 0.0
        %343 = vmatprep.subr.mxu0 0.0
        %344 = vmatpush2.msra.mxu0 0.0
        %345 = vmatprep.subr.mxu0 0.0
        %346 = vmatpush2.msra.mxu0 0.0
        %347 = vmatprep.subr.mxu0 0.0
        %348 = vmatpush2.msra.mxu0 0.0
        %349 = vmatprep.subr.mxu0 0.0
        %350 = vmatpush2.msra.mxu0 0.0
        %351 = vmatprep.subr.mxu0 0.0
        %352 = vmatpush2.msra.mxu0 0.0
        %353 = vmatprep.subr.mxu0 0.0
        %354 = vmatpush2.msra.mxu0 0.0
        %355 = vmatprep.subr.mxu0 0.0
        %356 = vmatpush2.msra.mxu0 0.0
        %357 = vmatprep.subr.mxu0 0.0
        %358 = vmatpush2.msra.mxu0 0.0
        %359 = vmatprep.subr.mxu0 0.0
        %360 = vmatpush2.msra.mxu0 0.0
        %361 = vmatprep.subr.mxu0 0.0
        %362 = vmatpush2.msra.mxu0 0.0
        %363 = vmatprep.mubr.f32.mxu0 0.0
        %364 = vmatmul.mubr.f32.gmra.mxu0 %v286
        %v365 = vpop.f32.mrf.mxu0
        %v366 = vadd.f32 0.0, %v365
        %v367 = vpop.f32.mrf.mxu0
        %v368 = vadd.f32 0.0, %v367
        %369 = vmatprep.mubr.f32.mxu0 0.0
        %370 = vmatmul.mubr.f32.gmra.mxu0 %v289
        %v371 = vpop.f32.mrf.mxu0
        %v372 = vadd.f32 0.0, %v371
        %v373 = vpop.f32.mrf.mxu0
        %v374 = vadd.f32 0.0, %v373
        %375 = vmatprep.mubr.f32.mxu0 0.0
        %376 = vmatmul.mubr.f32.gmra.mxu0 %v292
        %v377 = vpop.f32.mrf.mxu0
        %v378 = vadd.f32 0.0, %v377
        %v379 = vpop.f32.mrf.mxu0
        %v380 = vadd.f32 0.0, %v379
        %381 = vdwg.mxu0
        %v382 = vadd.f32 %v267, %v366
        %v383 = vadd.f32 %v267, %v368
        %v384 = vadd.f32 %v272, %v372
        %v385 = vadd.f32 %v272, %v374
        %v386 = vadd.f32 %v277, %v378
        %v387 = vadd.f32 %v277, %v380
        %389 = vrot.lane.b32.xlu0 %v263, 127
        %v390 = vpop.permute.xlu0 %389
        %391 = vrot.lane.b32.xlu0 %v283, 127
        %v392 = vpop.permute.xlu0 %391
        %vm393 = vcmp.lt.s32.totalorder %v232, 127
        %v394 = vsel %vm393, %v390, %v392
        %v395 = vsel %vm393, %v392, %v390
        %s396 = scalar_lea.vmem %s1, 24
        %v397 = vld [vmem:[%s396] sm:$0xff]
        %v398 = vld [vmem:[%s396 + $0x8] sm:$0xff]
        %v399 = vld [vmem:[%s396 + $0x10] sm:$0xff]
        %v401 = vsel %vm284, %v397, 0
        %v404 = vsel %vm284, %v398, 0
        %v407 = vsel %vm284, %v399, 0
        %v410 = vsel %vm294, %v394, 0
        %v413 = vsel %vm294, %v395, 0
        %415 = vmatprep.subr.mxu0 0.0
        %416 = vmatpush1.msra.mxu0 0.0
        %417 = vmatprep.subr.mxu0 0.0
        %418 = vmatpush1.msra.mxu0 0.0
        %419 = vmatprep.subr.mxu0 0.0
        %420 = vmatpush1.msra.mxu0 0.0
        %421 = vmatprep.subr.mxu0 0.0
        %422 = vmatpush1.msra.mxu0 0.0
        %423 = vmatprep.subr.mxu0 0.0
        %424 = vmatpush1.msra.mxu0 0.0
        %425 = vmatprep.subr.mxu0 0.0
        %426 = vmatpush1.msra.mxu0 0.0
        %427 = vmatprep.subr.mxu0 0.0
        %428 = vmatpush1.msra.mxu0 0.0
        %429 = vmatprep.subr.mxu0 0.0
        %430 = vmatpush1.msra.mxu0 0.0
        %431 = vmatprep.subr.mxu0 0.0
        %432 = vmatpush1.msra.mxu0 0.0
        %433 = vmatprep.subr.mxu0 0.0
        %434 = vmatpush1.msra.mxu0 0.0
        %435 = vmatprep.subr.mxu0 0.0
        %436 = vmatpush1.msra.mxu0 0.0
        %437 = vmatprep.subr.mxu0 0.0
        %438 = vmatpush1.msra.mxu0 0.0
        %439 = vmatprep.subr.mxu0 0.0
        %440 = vmatpush1.msra.mxu0 0.0
        %441 = vmatprep.subr.mxu0 0.0
        %442 = vmatpush1.msra.mxu0 0.0
        %443 = vmatprep.subr.mxu0 0.0
        %444 = vmatpush1.msra.mxu0 0.0
        %445 = vmatprep.subr.mxu0 %v413
        %446 = vmatpush1.msra.mxu0 %v410
        %447 = vmatprep.subr.mxu0 0.0
        %448 = vmatpush2.msra.mxu0 0.0
        %449 = vmatprep.subr.mxu0 0.0
        %450 = vmatpush2.msra.mxu0 0.0
        %451 = vmatprep.subr.mxu0 0.0
        %452 = vmatpush2.msra.mxu0 0.0
        %453 = vmatprep.subr.mxu0 0.0
        %454 = vmatpush2.msra.mxu0 0.0
        %455 = vmatprep.subr.mxu0 0.0
        %456 = vmatpush2.msra.mxu0 0.0
        %457 = vmatprep.subr.mxu0 0.0
        %458 = vmatpush2.msra.mxu0 0.0
        %459 = vmatprep.subr.mxu0 0.0
        %460 = vmatpush2.msra.mxu0 0.0
        %461 = vmatprep.subr.mxu0 0.0
        %462 = vmatpush2.msra.mxu0 0.0
        %463 = vmatprep.subr.mxu0 0.0
        %464 = vmatpush2.msra.mxu0 0.0
        %465 = vmatprep.subr.mxu0 0.0
        %466 = vmatpush2.msra.mxu0 0.0
        %467 = vmatprep.subr.mxu0 0.0
        %468 = vmatpush2.msra.mxu0 0.0
        %469 = vmatprep.subr.mxu0 0.0
        %470 = vmatpush2.msra.mxu0 0.0
        %471 = vmatprep.subr.mxu0 0.0
        %472 = vmatpush2.msra.mxu0 0.0
        %473 = vmatprep.subr.mxu0 0.0
        %474 = vmatpush2.msra.mxu0 0.0
        %475 = vmatprep.subr.mxu0 0.0
        %476 = vmatpush2.msra.mxu0 0.0
        %477 = vmatprep.subr.mxu0 0.0
        %478 = vmatpush2.msra.mxu0 0.0
        %479 = vmatprep.mubr.f32.mxu0 0.0
        %480 = vmatmul.mubr.f32.gmra.mxu0 %v401
        %v481 = vpop.f32.mrf.mxu0
        %v482 = vadd.f32 0.0, %v481
        %v483 = vpop.f32.mrf.mxu0
        %v484 = vadd.f32 0.0, %v483
        %485 = vmatprep.mubr.f32.mxu0 0.0
        %486 = vmatmul.mubr.f32.gmra.mxu0 %v404
        %v487 = vpop.f32.mrf.mxu0
        %v488 = vadd.f32 0.0, %v487
        %v489 = vpop.f32.mrf.mxu0
        %v490 = vadd.f32 0.0, %v489
        %491 = vmatprep.mubr.f32.mxu0 0.0
        %492 = vmatmul.mubr.f32.gmra.mxu0 %v407
        %v493 = vpop.f32.mrf.mxu0
        %v494 = vadd.f32 0.0, %v493
        %v495 = vpop.f32.mrf.mxu0
        %v496 = vadd.f32 0.0, %v495
        %497 = vdwg.mxu0
        %v498 = vadd.f32 %v382, %v482
        %v499 = vadd.f32 %v383, %v484
        %v500 = vadd.f32 %v384, %v488
        %v501 = vadd.f32 %v385, %v490
        %v502 = vadd.f32 %v386, %v494
        %v503 = vadd.f32 %v387, %v496
        %504 = vrot.lane.b32.xlu0 %v263, 126
        %v505 = vpop.permute.xlu0 %504
        %506 = vrot.lane.b32.xlu0 %v283, 126
        %v507 = vpop.permute.xlu0 %506
        %vm508 = vcmp.lt.s32.totalorder %v232, 126
        %v509 = vsel %vm508, %v505, %v507
        %v510 = vsel %vm508, %v507, %v505
        %s511 = scalar_lea.vmem %s1, 48
        %v512 = vld [vmem:[%s511] sm:$0xff]
        %v513 = vld [vmem:[%s511 + $0x8] sm:$0xff]
        %v514 = vld [vmem:[%s511 + $0x10] sm:$0xff]
        %v516 = vsel %vm284, %v512, 0
        %v519 = vsel %vm284, %v513, 0
        %v522 = vsel %vm284, %v514, 0
        %v525 = vsel %vm294, %v509, 0
        %v528 = vsel %vm294, %v510, 0
        %530 = vmatprep.subr.mxu0 0.0
        %531 = vmatpush1.msra.mxu0 0.0
        %532 = vmatprep.subr.mxu0 0.0
        %533 = vmatpush1.msra.mxu0 0.0
        %534 = vmatprep.subr.mxu0 0.0
        %535 = vmatpush1.msra.mxu0 0.0
        %536 = vmatprep.subr.mxu0 0.0
        %537 = vmatpush1.msra.mxu0 0.0
        %538 = vmatprep.subr.mxu0 0.0
        %539 = vmatpush1.msra.mxu0 0.0
        %540 = vmatprep.subr.mxu0 0.0
        %541 = vmatpush1.msra.mxu0 0.0
        %542 = vmatprep.subr.mxu0 0.0
        %543 = vmatpush1.msra.mxu0 0.0
        %544 = vmatprep.subr.mxu0 0.0
        %545 = vmatpush1.msra.mxu0 0.0
        %546 = vmatprep.subr.mxu0 0.0
        %547 = vmatpush1.msra.mxu0 0.0
        %548 = vmatprep.subr.mxu0 0.0
        %549 = vmatpush1.msra.mxu0 0.0
        %550 = vmatprep.subr.mxu0 0.0
        %551 = vmatpush1.msra.mxu0 0.0
        %552 = vmatprep.subr.mxu0 0.0
        %553 = vmatpush1.msra.mxu0 0.0
        %554 = vmatprep.subr.mxu0 0.0
        %555 = vmatpush1.msra.mxu0 0.0
        %556 = vmatprep.subr.mxu0 0.0
        %557 = vmatpush1.msra.mxu0 0.0
        %558 = vmatprep.subr.mxu0 0.0
        %559 = vmatpush1.msra.mxu0 0.0
        %560 = vmatprep.subr.mxu0 %v528
        %561 = vmatpush1.msra.mxu0 %v525
        %562 = vmatprep.subr.mxu0 0.0
        %563 = vmatpush2.msra.mxu0 0.0
        %564 = vmatprep.subr.mxu0 0.0
        %565 = vmatpush2.msra.mxu0 0.0
        %566 = vmatprep.subr.mxu0 0.0
        %567 = vmatpush2.msra.mxu0 0.0
        %568 = vmatprep.subr.mxu0 0.0
        %569 = vmatpush2.msra.mxu0 0.0
        %570 = vmatprep.subr.mxu0 0.0
        %571 = vmatpush2.msra.mxu0 0.0
        %572 = vmatprep.subr.mxu0 0.0
        %573 = vmatpush2.msra.mxu0 0.0
        %574 = vmatprep.subr.mxu0 0.0
        %575 = vmatpush2.msra.mxu0 0.0
        %576 = vmatprep.subr.mxu0 0.0
        %577 = vmatpush2.msra.mxu0 0.0
        %578 = vmatprep.subr.mxu0 0.0
        %579 = vmatpush2.msra.mxu0 0.0
        %580 = vmatprep.subr.mxu0 0.0
        %581 = vmatpush2.msra.mxu0 0.0
        %582 = vmatprep.subr.mxu0 0.0
        %583 = vmatpush2.msra.mxu0 0.0
        %584 = vmatprep.subr.mxu0 0.0
        %585 = vmatpush2.msra.mxu0 0.0
        %586 = vmatprep.subr.mxu0 0.0
        %587 = vmatpush2.msra.mxu0 0.0
        %588 = vmatprep.subr.mxu0 0.0
        %589 = vmatpush2.msra.mxu0 0.0
        %590 = vmatprep.subr.mxu0 0.0
        %591 = vmatpush2.msra.mxu0 0.0
        %592 = vmatprep.subr.mxu0 0.0
        %593 = vmatpush2.msra.mxu0 0.0
        %594 = vmatprep.mubr.f32.mxu0 0.0
        %595 = vmatmul.mubr.f32.gmra.mxu0 %v516
        %v596 = vpop.f32.mrf.mxu0
        %v597 = vadd.f32 0.0, %v596
        %v598 = vpop.f32.mrf.mxu0
        %v599 = vadd.f32 0.0, %v598
        %600 = vmatprep.mubr.f32.mxu0 0.0
        %601 = vmatmul.mubr.f32.gmra.mxu0 %v519
        %v602 = vpop.f32.mrf.mxu0
        %v603 = vadd.f32 0.0, %v602
        %v604 = vpop.f32.mrf.mxu0
        %v605 = vadd.f32 0.0, %v604
        %606 = vmatprep.mubr.f32.mxu0 0.0
        %607 = vmatmul.mubr.f32.gmra.mxu0 %v522
        %v608 = vpop.f32.mrf.mxu0
        %v609 = vadd.f32 0.0, %v608
        %v610 = vpop.f32.mrf.mxu0
        %v611 = vadd.f32 0.0, %v610
        %612 = vdwg.mxu0
        %v613 = vadd.f32 %v498, %v597
        %v614 = vadd.f32 %v499, %v599
        %v615 = vadd.f32 %v500, %v603
        %v616 = vadd.f32 %v501, %v605
        %v617 = vadd.f32 %v502, %v609
        %v618 = vadd.f32 %v503, %v611
        %619 = vrot.lane.b32.xlu0 %v263, 112
        %v620 = vpop.permute.xlu0 %619
        %621 = vrot.lane.b32.xlu0 %v283, 112
        %v622 = vpop.permute.xlu0 %621
        %vm623 = vcmp.lt.s32.totalorder %v232, 112
        %v624 = vsel %vm623, %v620, %v622
        %v625 = vsel %vm623, %v622, %v620
        %s626 = scalar_lea.vmem %s1, 72
        %v627 = vld [vmem:[%s626] sm:$0xff]
        %v628 = vld [vmem:[%s626 + $0x8] sm:$0xff]
        %v629 = vld [vmem:[%s626 + $0x10] sm:$0xff]
        %v631 = vsel %vm284, %v627, 0
        %v634 = vsel %vm284, %v628, 0
        %v637 = vsel %vm284, %v629, 0
        %v640 = vsel %vm294, %v624, 0
        %v643 = vsel %vm294, %v625, 0
        %645 = vmatprep.subr.mxu0 0.0
        %646 = vmatpush1.msra.mxu0 0.0
        %647 = vmatprep.subr.mxu0 0.0
        %648 = vmatpush1.msra.mxu0 0.0
        %649 = vmatprep.subr.mxu0 0.0
        %650 = vmatpush1.msra.mxu0 0.0
        %651 = vmatprep.subr.mxu0 0.0
        %652 = vmatpush1.msra.mxu0 0.0
        %653 = vmatprep.subr.mxu0 0.0
        %654 = vmatpush1.msra.mxu0 0.0
        %655 = vmatprep.subr.mxu0 0.0
        %656 = vmatpush1.msra.mxu0 0.0
        %657 = vmatprep.subr.mxu0 0.0
        %658 = vmatpush1.msra.mxu0 0.0
        %659 = vmatprep.subr.mxu0 0.0
        %660 = vmatpush1.msra.mxu0 0.0
        %661 = vmatprep.subr.mxu0 0.0
        %662 = vmatpush1.msra.mxu0 0.0
        %663 = vmatprep.subr.mxu0 0.0
        %664 = vmatpush1.msra.mxu0 0.0
        %665 = vmatprep.subr.mxu0 0.0
        %666 = vmatpush1.msra.mxu0 0.0
        %667 = vmatprep.subr.mxu0 0.0
        %668 = vmatpush1.msra.mxu0 0.0
        %669 = vmatprep.subr.mxu0 0.0
        %670 = vmatpush1.msra.mxu0 0.0
        %671 = vmatprep.subr.mxu0 0.0
        %672 = vmatpush1.msra.mxu0 0.0
        %673 = vmatprep.subr.mxu0 0.0
        %674 = vmatpush1.msra.mxu0 0.0
        %675 = vmatprep.subr.mxu0 %v643
        %676 = vmatpush1.msra.mxu0 %v640
        %677 = vmatprep.subr.mxu0 0.0
        %678 = vmatpush2.msra.mxu0 0.0
        %679 = vmatprep.subr.mxu0 0.0
        %680 = vmatpush2.msra.mxu0 0.0
        %681 = vmatprep.subr.mxu0 0.0
        %682 = vmatpush2.msra.mxu0 0.0
        %683 = vmatprep.subr.mxu0 0.0
        %684 = vmatpush2.msra.mxu0 0.0
        %685 = vmatprep.subr.mxu0 0.0
        %686 = vmatpush2.msra.mxu0 0.0
        %687 = vmatprep.subr.mxu0 0.0
        %688 = vmatpush2.msra.mxu0 0.0
        %689 = vmatprep.subr.mxu0 0.0
        %690 = vmatpush2.msra.mxu0 0.0
        %691 = vmatprep.subr.mxu0 0.0
        %692 = vmatpush2.msra.mxu0 0.0
        %693 = vmatprep.subr.mxu0 0.0
        %694 = vmatpush2.msra.mxu0 0.0
        %695 = vmatprep.subr.mxu0 0.0
        %696 = vmatpush2.msra.mxu0 0.0
        %697 = vmatprep.subr.mxu0 0.0
        %698 = vmatpush2.msra.mxu0 0.0
        %699 = vmatprep.subr.mxu0 0.0
        %700 = vmatpush2.msra.mxu0 0.0
        %701 = vmatprep.subr.mxu0 0.0
        %702 = vmatpush2.msra.mxu0 0.0
        %703 = vmatprep.subr.mxu0 0.0
        %704 = vmatpush2.msra.mxu0 0.0
        %705 = vmatprep.subr.mxu0 0.0
        %706 = vmatpush2.msra.mxu0 0.0
        %707 = vmatprep.subr.mxu0 0.0
        %708 = vmatpush2.msra.mxu0 0.0
        %709 = vmatprep.mubr.f32.mxu0 0.0
        %710 = vmatmul.mubr.f32.gmra.mxu0 %v631
        %v711 = vpop.f32.mrf.mxu0
        %v712 = vadd.f32 0.0, %v711
        %v713 = vpop.f32.mrf.mxu0
        %v714 = vadd.f32 0.0, %v713
        %715 = vmatprep.mubr.f32.mxu0 0.0
        %716 = vmatmul.mubr.f32.gmra.mxu0 %v634
        %v717 = vpop.f32.mrf.mxu0
        %v718 = vadd.f32 0.0, %v717
        %v719 = vpop.f32.mrf.mxu0
        %v720 = vadd.f32 0.0, %v719
        %721 = vmatprep.mubr.f32.mxu0 0.0
        %722 = vmatmul.mubr.f32.gmra.mxu0 %v637
        %v723 = vpop.f32.mrf.mxu0
        %v724 = vadd.f32 0.0, %v723
        %v725 = vpop.f32.mrf.mxu0
        %v726 = vadd.f32 0.0, %v725
        %727 = vdwg.mxu0
        %v728 = vadd.f32 %v613, %v712
        %v729 = vadd.f32 %v614, %v714
        %v730 = vadd.f32 %v615, %v718
        %v731 = vadd.f32 %v616, %v720
        %v732 = vadd.f32 %v617, %v724
        %v733 = vadd.f32 %v618, %v726
        %734 = vrot.lane.b32.xlu0 %v263, 111
        %v735 = vpop.permute.xlu0 %734
        %736 = vrot.lane.b32.xlu0 %v283, 111
        %v737 = vpop.permute.xlu0 %736
        %vm738 = vcmp.lt.s32.totalorder %v232, 111
        %v739 = vsel %vm738, %v735, %v737
        %v740 = vsel %vm738, %v737, %v735
        %s741 = scalar_lea.vmem %s1, 96
        %v742 = vld [vmem:[%s741] sm:$0xff]
        %v743 = vld [vmem:[%s741 + $0x8] sm:$0xff]
        %v744 = vld [vmem:[%s741 + $0x10] sm:$0xff]
        %v746 = vsel %vm284, %v742, 0
        %v749 = vsel %vm284, %v743, 0
        %v752 = vsel %vm284, %v744, 0
        %v755 = vsel %vm294, %v739, 0
        %v758 = vsel %vm294, %v740, 0
        %760 = vmatprep.subr.mxu0 0.0
        %761 = vmatpush1.msra.mxu0 0.0
        %762 = vmatprep.subr.mxu0 0.0
        %763 = vmatpush1.msra.mxu0 0.0
        %764 = vmatprep.subr.mxu0 0.0
        %765 = vmatpush1.msra.mxu0 0.0
        %766 = vmatprep.subr.mxu0 0.0
        %767 = vmatpush1.msra.mxu0 0.0
        %768 = vmatprep.subr.mxu0 0.0
        %769 = vmatpush1.msra.mxu0 0.0
        %770 = vmatprep.subr.mxu0 0.0
        %771 = vmatpush1.msra.mxu0 0.0
        %772 = vmatprep.subr.mxu0 0.0
        %773 = vmatpush1.msra.mxu0 0.0
        %774 = vmatprep.subr.mxu0 0.0
        %775 = vmatpush1.msra.mxu0 0.0
        %776 = vmatprep.subr.mxu0 0.0
        %777 = vmatpush1.msra.mxu0 0.0
        %778 = vmatprep.subr.mxu0 0.0
        %779 = vmatpush1.msra.mxu0 0.0
        %780 = vmatprep.subr.mxu0 0.0
        %781 = vmatpush1.msra.mxu0 0.0
        %782 = vmatprep.subr.mxu0 0.0
        %783 = vmatpush1.msra.mxu0 0.0
        %784 = vmatprep.subr.mxu0 0.0
        %785 = vmatpush1.msra.mxu0 0.0
        %786 = vmatprep.subr.mxu0 0.0
        %787 = vmatpush1.msra.mxu0 0.0
        %788 = vmatprep.subr.mxu0 0.0
        %789 = vmatpush1.msra.mxu0 0.0
        %790 = vmatprep.subr.mxu0 %v758
        %791 = vmatpush1.msra.mxu0 %v755
        %792 = vmatprep.subr.mxu0 0.0
        %793 = vmatpush2.msra.mxu0 0.0
        %794 = vmatprep.subr.mxu0 0.0
        %795 = vmatpush2.msra.mxu0 0.0
        %796 = vmatprep.subr.mxu0 0.0
        %797 = vmatpush2.msra.mxu0 0.0
        %798 = vmatprep.subr.mxu0 0.0
        %799 = vmatpush2.msra.mxu0 0.0
        %800 = vmatprep.subr.mxu0 0.0
        %801 = vmatpush2.msra.mxu0 0.0
        %802 = vmatprep.subr.mxu0 0.0
        %803 = vmatpush2.msra.mxu0 0.0
        %804 = vmatprep.subr.mxu0 0.0
        %805 = vmatpush2.msra.mxu0 0.0
        %806 = vmatprep.subr.mxu0 0.0
        %807 = vmatpush2.msra.mxu0 0.0
        %808 = vmatprep.subr.mxu0 0.0
        %809 = vmatpush2.msra.mxu0 0.0
        %810 = vmatprep.subr.mxu0 0.0
        %811 = vmatpush2.msra.mxu0 0.0
        %812 = vmatprep.subr.mxu0 0.0
        %813 = vmatpush2.msra.mxu0 0.0
        %814 = vmatprep.subr.mxu0 0.0
        %815 = vmatpush2.msra.mxu0 0.0
        %816 = vmatprep.subr.mxu0 0.0
        %817 = vmatpush2.msra.mxu0 0.0
        %818 = vmatprep.subr.mxu0 0.0
        %819 = vmatpush2.msra.mxu0 0.0
        %820 = vmatprep.subr.mxu0 0.0
        %821 = vmatpush2.msra.mxu0 0.0
        %822 = vmatprep.subr.mxu0 0.0
        %823 = vmatpush2.msra.mxu0 0.0
        %824 = vmatprep.mubr.f32.mxu0 0.0
        %825 = vmatmul.mubr.f32.gmra.mxu0 %v746
        %v826 = vpop.f32.mrf.mxu0
        %v827 = vadd.f32 0.0, %v826
        %v828 = vpop.f32.mrf.mxu0
        %v829 = vadd.f32 0.0, %v828
        %830 = vmatprep.mubr.f32.mxu0 0.0
        %831 = vmatmul.mubr.f32.gmra.mxu0 %v749
        %v832 = vpop.f32.mrf.mxu0
        %v833 = vadd.f32 0.0, %v832
        %v834 = vpop.f32.mrf.mxu0
        %v835 = vadd.f32 0.0, %v834
        %836 = vmatprep.mubr.f32.mxu0 0.0
        %837 = vmatmul.mubr.f32.gmra.mxu0 %v752
        %v838 = vpop.f32.mrf.mxu0
        %v839 = vadd.f32 0.0, %v838
        %v840 = vpop.f32.mrf.mxu0
        %v841 = vadd.f32 0.0, %v840
        %842 = vdwg.mxu0
        %v843 = vadd.f32 %v728, %v827
        %v844 = vadd.f32 %v729, %v829
        %v845 = vadd.f32 %v730, %v833
        %v846 = vadd.f32 %v731, %v835
        %v847 = vadd.f32 %v732, %v839
        %v848 = vadd.f32 %v733, %v841
        %849 = vrot.lane.b32.xlu0 %v263, 110
        %v850 = vpop.permute.xlu0 %849
        %851 = vrot.lane.b32.xlu0 %v283, 110
        %v852 = vpop.permute.xlu0 %851
        %vm853 = vcmp.lt.s32.totalorder %v232, 110
        %v854 = vsel %vm853, %v850, %v852
        %v855 = vsel %vm853, %v852, %v850
        %s856 = scalar_lea.vmem %s1, 120
        %v857 = vld [vmem:[%s856] sm:$0xff]
        %v858 = vld [vmem:[%s856 + $0x8] sm:$0xff]
        %v859 = vld [vmem:[%s856 + $0x10] sm:$0xff]
        %v861 = vsel %vm284, %v857, 0
        %v864 = vsel %vm284, %v858, 0
        %v867 = vsel %vm284, %v859, 0
        %v870 = vsel %vm294, %v854, 0
        %v873 = vsel %vm294, %v855, 0
        %875 = vmatprep.subr.mxu0 0.0
        %876 = vmatpush1.msra.mxu0 0.0
        %877 = vmatprep.subr.mxu0 0.0
        %878 = vmatpush1.msra.mxu0 0.0
        %879 = vmatprep.subr.mxu0 0.0
        %880 = vmatpush1.msra.mxu0 0.0
        %881 = vmatprep.subr.mxu0 0.0
        %882 = vmatpush1.msra.mxu0 0.0
        %883 = vmatprep.subr.mxu0 0.0
        %884 = vmatpush1.msra.mxu0 0.0
        %885 = vmatprep.subr.mxu0 0.0
        %886 = vmatpush1.msra.mxu0 0.0
        %887 = vmatprep.subr.mxu0 0.0
        %888 = vmatpush1.msra.mxu0 0.0
        %889 = vmatprep.subr.mxu0 0.0
        %890 = vmatpush1.msra.mxu0 0.0
        %891 = vmatprep.subr.mxu0 0.0
        %892 = vmatpush1.msra.mxu0 0.0
        %893 = vmatprep.subr.mxu0 0.0
        %894 = vmatpush1.msra.mxu0 0.0
        %895 = vmatprep.subr.mxu0 0.0
        %896 = vmatpush1.msra.mxu0 0.0
        %897 = vmatprep.subr.mxu0 0.0
        %898 = vmatpush1.msra.mxu0 0.0
        %899 = vmatprep.subr.mxu0 0.0
        %900 = vmatpush1.msra.mxu0 0.0
        %901 = vmatprep.subr.mxu0 0.0
        %902 = vmatpush1.msra.mxu0 0.0
        %903 = vmatprep.subr.mxu0 0.0
        %904 = vmatpush1.msra.mxu0 0.0
        %905 = vmatprep.subr.mxu0 %v873
        %906 = vmatpush1.msra.mxu0 %v870
        %907 = vmatprep.subr.mxu0 0.0
        %908 = vmatpush2.msra.mxu0 0.0
        %909 = vmatprep.subr.mxu0 0.0
        %910 = vmatpush2.msra.mxu0 0.0
        %911 = vmatprep.subr.mxu0 0.0
        %912 = vmatpush2.msra.mxu0 0.0
        %913 = vmatprep.subr.mxu0 0.0
        %914 = vmatpush2.msra.mxu0 0.0
        %915 = vmatprep.subr.mxu0 0.0
        %916 = vmatpush2.msra.mxu0 0.0
        %917 = vmatprep.subr.mxu0 0.0
        %918 = vmatpush2.msra.mxu0 0.0
        %919 = vmatprep.subr.mxu0 0.0
        %920 = vmatpush2.msra.mxu0 0.0
        %921 = vmatprep.subr.mxu0 0.0
        %922 = vmatpush2.msra.mxu0 0.0
        %923 = vmatprep.subr.mxu0 0.0
        %924 = vmatpush2.msra.mxu0 0.0
        %925 = vmatprep.subr.mxu0 0.0
        %926 = vmatpush2.msra.mxu0 0.0
        %927 = vmatprep.subr.mxu0 0.0
        %928 = vmatpush2.msra.mxu0 0.0
        %929 = vmatprep.subr.mxu0 0.0
        %930 = vmatpush2.msra.mxu0 0.0
        %931 = vmatprep.subr.mxu0 0.0
        %932 = vmatpush2.msra.mxu0 0.0
        %933 = vmatprep.subr.mxu0 0.0
        %934 = vmatpush2.msra.mxu0 0.0
        %935 = vmatprep.subr.mxu0 0.0
        %936 = vmatpush2.msra.mxu0 0.0
        %937 = vmatprep.subr.mxu0 0.0
        %938 = vmatpush2.msra.mxu0 0.0
        %939 = vmatprep.mubr.f32.mxu0 0.0
        %940 = vmatmul.mubr.f32.gmra.mxu0 %v861
        %v941 = vpop.f32.mrf.mxu0
        %v942 = vadd.f32 0.0, %v941
        %v943 = vpop.f32.mrf.mxu0
        %v944 = vadd.f32 0.0, %v943
        %945 = vmatprep.mubr.f32.mxu0 0.0
        %946 = vmatmul.mubr.f32.gmra.mxu0 %v864
        %v947 = vpop.f32.mrf.mxu0
        %v948 = vadd.f32 0.0, %v947
        %v949 = vpop.f32.mrf.mxu0
        %v950 = vadd.f32 0.0, %v949
        %951 = vmatprep.mubr.f32.mxu0 0.0
        %952 = vmatmul.mubr.f32.gmra.mxu0 %v867
        %v953 = vpop.f32.mrf.mxu0
        %v954 = vadd.f32 0.0, %v953
        %v955 = vpop.f32.mrf.mxu0
        %v956 = vadd.f32 0.0, %v955
        %957 = vdwg.mxu0
        %v958 = vadd.f32 %v843, %v942
        %v959 = vadd.f32 %v844, %v944
        %v960 = vadd.f32 %v845, %v948
        %v961 = vadd.f32 %v846, %v950
        %v962 = vadd.f32 %v847, %v954
        %v963 = vadd.f32 %v848, %v956
        %964 = vrot.lane.b32.xlu0 %v263, 96
        %v965 = vpop.permute.xlu0 %964
        %966 = vrot.lane.b32.xlu0 %v283, 96
        %v967 = vpop.permute.xlu0 %966
        %vm968 = vcmp.lt.s32.totalorder %v232, 96
        %v969 = vsel %vm968, %v965, %v967
        %v970 = vsel %vm968, %v967, %v965
        %s971 = scalar_lea.vmem %s1, 144
        %v972 = vld [vmem:[%s971] sm:$0xff]
        %v973 = vld [vmem:[%s971 + $0x8] sm:$0xff]
        %v974 = vld [vmem:[%s971 + $0x10] sm:$0xff]
        %v976 = vsel %vm284, %v972, 0
        %v979 = vsel %vm284, %v973, 0
        %v982 = vsel %vm284, %v974, 0
        %v985 = vsel %vm294, %v969, 0
        %v988 = vsel %vm294, %v970, 0
        %990 = vmatprep.subr.mxu0 0.0
        %991 = vmatpush1.msra.mxu0 0.0
        %992 = vmatprep.subr.mxu0 0.0
        %993 = vmatpush1.msra.mxu0 0.0
        %994 = vmatprep.subr.mxu0 0.0
        %995 = vmatpush1.msra.mxu0 0.0
        %996 = vmatprep.subr.mxu0 0.0
        %997 = vmatpush1.msra.mxu0 0.0
        %998 = vmatprep.subr.mxu0 0.0
        %999 = vmatpush1.msra.mxu0 0.0
        %1000 = vmatprep.subr.mxu0 0.0
        %1001 = vmatpush1.msra.mxu0 0.0
        %1002 = vmatprep.subr.mxu0 0.0
        %1003 = vmatpush1.msra.mxu0 0.0
        %1004 = vmatprep.subr.mxu0 0.0
        %1005 = vmatpush1.msra.mxu0 0.0
        %1006 = vmatprep.subr.mxu0 0.0
        %1007 = vmatpush1.msra.mxu0 0.0
        %1008 = vmatprep.subr.mxu0 0.0
        %1009 = vmatpush1.msra.mxu0 0.0
        %1010 = vmatprep.subr.mxu0 0.0
        %1011 = vmatpush1.msra.mxu0 0.0
        %1012 = vmatprep.subr.mxu0 0.0
        %1013 = vmatpush1.msra.mxu0 0.0
        %1014 = vmatprep.subr.mxu0 0.0
        %1015 = vmatpush1.msra.mxu0 0.0
        %1016 = vmatprep.subr.mxu0 0.0
        %1017 = vmatpush1.msra.mxu0 0.0
        %1018 = vmatprep.subr.mxu0 0.0
        %1019 = vmatpush1.msra.mxu0 0.0
        %1020 = vmatprep.subr.mxu0 %v988
        %1021 = vmatpush1.msra.mxu0 %v985
        %1022 = vmatprep.subr.mxu0 0.0
        %1023 = vmatpush2.msra.mxu0 0.0
        %1024 = vmatprep.subr.mxu0 0.0
        %1025 = vmatpush2.msra.mxu0 0.0
        %1026 = vmatprep.subr.mxu0 0.0
        %1027 = vmatpush2.msra.mxu0 0.0
        %1028 = vmatprep.subr.mxu0 0.0
        %1029 = vmatpush2.msra.mxu0 0.0
        %1030 = vmatprep.subr.mxu0 0.0
        %1031 = vmatpush2.msra.mxu0 0.0
        %1032 = vmatprep.subr.mxu0 0.0
        %1033 = vmatpush2.msra.mxu0 0.0
        %1034 = vmatprep.subr.mxu0 0.0
        %1035 = vmatpush2.msra.mxu0 0.0
        %1036 = vmatprep.subr.mxu0 0.0
        %1037 = vmatpush2.msra.mxu0 0.0
        %1038 = vmatprep.subr.mxu0 0.0
        %1039 = vmatpush2.msra.mxu0 0.0
        %1040 = vmatprep.subr.mxu0 0.0
        %1041 = vmatpush2.msra.mxu0 0.0
        %1042 = vmatprep.subr.mxu0 0.0
        %1043 = vmatpush2.msra.mxu0 0.0
        %1044 = vmatprep.subr.mxu0 0.0
        %1045 = vmatpush2.msra.mxu0 0.0
        %1046 = vmatprep.subr.mxu0 0.0
        %1047 = vmatpush2.msra.mxu0 0.0
        %1048 = vmatprep.subr.mxu0 0.0
        %1049 = vmatpush2.msra.mxu0 0.0
        %1050 = vmatprep.subr.mxu0 0.0
        %1051 = vmatpush2.msra.mxu0 0.0
        %1052 = vmatprep.subr.mxu0 0.0
        %1053 = vmatpush2.msra.mxu0 0.0
        %1054 = vmatprep.mubr.f32.mxu0 0.0
        %1055 = vmatmul.mubr.f32.gmra.mxu0 %v976
        %v1056 = vpop.f32.mrf.mxu0
        %v1057 = vadd.f32 0.0, %v1056
        %v1058 = vpop.f32.mrf.mxu0
        %v1059 = vadd.f32 0.0, %v1058
        %1060 = vmatprep.mubr.f32.mxu0 0.0
        %1061 = vmatmul.mubr.f32.gmra.mxu0 %v979
        %v1062 = vpop.f32.mrf.mxu0
        %v1063 = vadd.f32 0.0, %v1062
        %v1064 = vpop.f32.mrf.mxu0
        %v1065 = vadd.f32 0.0, %v1064
        %1066 = vmatprep.mubr.f32.mxu0 0.0
        %1067 = vmatmul.mubr.f32.gmra.mxu0 %v982
        %v1068 = vpop.f32.mrf.mxu0
        %v1069 = vadd.f32 0.0, %v1068
        %v1070 = vpop.f32.mrf.mxu0
        %v1071 = vadd.f32 0.0, %v1070
        %1072 = vdwg.mxu0
        %v1073 = vadd.f32 %v958, %v1057
        %v1074 = vadd.f32 %v959, %v1059
        %v1075 = vadd.f32 %v960, %v1063
        %v1076 = vadd.f32 %v961, %v1065
        %v1077 = vadd.f32 %v962, %v1069
        %v1078 = vadd.f32 %v963, %v1071
        %1079 = vrot.lane.b32.xlu0 %v263, 95
        %v1080 = vpop.permute.xlu0 %1079
        %1081 = vrot.lane.b32.xlu0 %v283, 95
        %v1082 = vpop.permute.xlu0 %1081
        %vm1083 = vcmp.lt.s32.totalorder %v232, 95
        %v1084 = vsel %vm1083, %v1080, %v1082
        %v1085 = vsel %vm1083, %v1082, %v1080
        %s1086 = scalar_lea.vmem %s1, 168
        %v1087 = vld [vmem:[%s1086] sm:$0xff]
        %v1088 = vld [vmem:[%s1086 + $0x8] sm:$0xff]
        %v1089 = vld [vmem:[%s1086 + $0x10] sm:$0xff]
        %v1091 = vsel %vm284, %v1087, 0
        %v1094 = vsel %vm284, %v1088, 0
        %v1097 = vsel %vm284, %v1089, 0
        %v1100 = vsel %vm294, %v1084, 0
        %v1103 = vsel %vm294, %v1085, 0
        %1105 = vmatprep.subr.mxu0 0.0
        %1106 = vmatpush1.msra.mxu0 0.0
        %1107 = vmatprep.subr.mxu0 0.0
        %1108 = vmatpush1.msra.mxu0 0.0
        %1109 = vmatprep.subr.mxu0 0.0
        %1110 = vmatpush1.msra.mxu0 0.0
        %1111 = vmatprep.subr.mxu0 0.0
        %1112 = vmatpush1.msra.mxu0 0.0
        %1113 = vmatprep.subr.mxu0 0.0
        %1114 = vmatpush1.msra.mxu0 0.0
        %1115 = vmatprep.subr.mxu0 0.0
        %1116 = vmatpush1.msra.mxu0 0.0
        %1117 = vmatprep.subr.mxu0 0.0
        %1118 = vmatpush1.msra.mxu0 0.0
        %1119 = vmatprep.subr.mxu0 0.0
        %1120 = vmatpush1.msra.mxu0 0.0
        %1121 = vmatprep.subr.mxu0 0.0
        %1122 = vmatpush1.msra.mxu0 0.0
        %1123 = vmatprep.subr.mxu0 0.0
        %1124 = vmatpush1.msra.mxu0 0.0
        %1125 = vmatprep.subr.mxu0 0.0
        %1126 = vmatpush1.msra.mxu0 0.0
        %1127 = vmatprep.subr.mxu0 0.0
        %1128 = vmatpush1.msra.mxu0 0.0
        %1129 = vmatprep.subr.mxu0 0.0
        %1130 = vmatpush1.msra.mxu0 0.0
        %1131 = vmatprep.subr.mxu0 0.0
        %1132 = vmatpush1.msra.mxu0 0.0
        %1133 = vmatprep.subr.mxu0 0.0
        %1134 = vmatpush1.msra.mxu0 0.0
        %1135 = vmatprep.subr.mxu0 %v1103
        %1136 = vmatpush1.msra.mxu0 %v1100
        %1137 = vmatprep.subr.mxu0 0.0
        %1138 = vmatpush2.msra.mxu0 0.0
        %1139 = vmatprep.subr.mxu0 0.0
        %1140 = vmatpush2.msra.mxu0 0.0
        %1141 = vmatprep.subr.mxu0 0.0
        %1142 = vmatpush2.msra.mxu0 0.0
        %1143 = vmatprep.subr.mxu0 0.0
        %1144 = vmatpush2.msra.mxu0 0.0
        %1145 = vmatprep.subr.mxu0 0.0
        %1146 = vmatpush2.msra.mxu0 0.0
        %1147 = vmatprep.subr.mxu0 0.0
        %1148 = vmatpush2.msra.mxu0 0.0
        %1149 = vmatprep.subr.mxu0 0.0
        %1150 = vmatpush2.msra.mxu0 0.0
        %1151 = vmatprep.subr.mxu0 0.0
        %1152 = vmatpush2.msra.mxu0 0.0
        %1153 = vmatprep.subr.mxu0 0.0
        %1154 = vmatpush2.msra.mxu0 0.0
        %1155 = vmatprep.subr.mxu0 0.0
        %1156 = vmatpush2.msra.mxu0 0.0
        %1157 = vmatprep.subr.mxu0 0.0
        %1158 = vmatpush2.msra.mxu0 0.0
        %1159 = vmatprep.subr.mxu0 0.0
        %1160 = vmatpush2.msra.mxu0 0.0
        %1161 = vmatprep.subr.mxu0 0.0
        %1162 = vmatpush2.msra.mxu0 0.0
        %1163 = vmatprep.subr.mxu0 0.0
        %1164 = vmatpush2.msra.mxu0 0.0
        %1165 = vmatprep.subr.mxu0 0.0
        %1166 = vmatpush2.msra.mxu0 0.0
        %1167 = vmatprep.subr.mxu0 0.0
        %1168 = vmatpush2.msra.mxu0 0.0
        %1169 = vmatprep.mubr.f32.mxu0 0.0
        %1170 = vmatmul.mubr.f32.gmra.mxu0 %v1091
        %v1171 = vpop.f32.mrf.mxu0
        %v1172 = vadd.f32 0.0, %v1171
        %v1173 = vpop.f32.mrf.mxu0
        %v1174 = vadd.f32 0.0, %v1173
        %1175 = vmatprep.mubr.f32.mxu0 0.0
        %1176 = vmatmul.mubr.f32.gmra.mxu0 %v1094
        %v1177 = vpop.f32.mrf.mxu0
        %v1178 = vadd.f32 0.0, %v1177
        %v1179 = vpop.f32.mrf.mxu0
        %v1180 = vadd.f32 0.0, %v1179
        %1181 = vmatprep.mubr.f32.mxu0 0.0
        %1182 = vmatmul.mubr.f32.gmra.mxu0 %v1097
        %v1183 = vpop.f32.mrf.mxu0
        %v1184 = vadd.f32 0.0, %v1183
        %v1185 = vpop.f32.mrf.mxu0
        %v1186 = vadd.f32 0.0, %v1185
        %1187 = vdwg.mxu0
        %v1188 = vadd.f32 %v1073, %v1172
        %v1189 = vadd.f32 %v1074, %v1174
        %v1190 = vadd.f32 %v1075, %v1178
        %v1191 = vadd.f32 %v1076, %v1180
        %v1192 = vadd.f32 %v1077, %v1184
        %v1193 = vadd.f32 %v1078, %v1186
        %1194 = vrot.lane.b32.xlu0 %v263, 94
        %v1195 = vpop.permute.xlu0 %1194
        %1196 = vrot.lane.b32.xlu0 %v283, 94
        %v1197 = vpop.permute.xlu0 %1196
        %vm1198 = vcmp.lt.s32.totalorder %v232, 94
        %v1199 = vsel %vm1198, %v1195, %v1197
        %v1200 = vsel %vm1198, %v1197, %v1195
        %s1201 = scalar_lea.vmem %s1, 192
        %v1202 = vld [vmem:[%s1201] sm:$0xff]
        %v1203 = vld [vmem:[%s1201 + $0x8] sm:$0xff]
        %v1204 = vld [vmem:[%s1201 + $0x10] sm:$0xff]
        %v1206 = vsel %vm284, %v1202, 0
        %v1209 = vsel %vm284, %v1203, 0
        %v1212 = vsel %vm284, %v1204, 0
        %v1215 = vsel %vm294, %v1199, 0
        %v1218 = vsel %vm294, %v1200, 0
        %1220 = vmatprep.subr.mxu0 0.0
        %1221 = vmatpush1.msra.mxu0 0.0
        %1222 = vmatprep.subr.mxu0 0.0
        %1223 = vmatpush1.msra.mxu0 0.0
        %1224 = vmatprep.subr.mxu0 0.0
        %1225 = vmatpush1.msra.mxu0 0.0
        %1226 = vmatprep.subr.mxu0 0.0
        %1227 = vmatpush1.msra.mxu0 0.0
        %1228 = vmatprep.subr.mxu0 0.0
        %1229 = vmatpush1.msra.mxu0 0.0
        %1230 = vmatprep.subr.mxu0 0.0
        %1231 = vmatpush1.msra.mxu0 0.0
        %1232 = vmatprep.subr.mxu0 0.0
        %1233 = vmatpush1.msra.mxu0 0.0
        %1234 = vmatprep.subr.mxu0 0.0
        %1235 = vmatpush1.msra.mxu0 0.0
        %1236 = vmatprep.subr.mxu0 0.0
        %1237 = vmatpush1.msra.mxu0 0.0
        %1238 = vmatprep.subr.mxu0 0.0
        %1239 = vmatpush1.msra.mxu0 0.0
        %1240 = vmatprep.subr.mxu0 0.0
        %1241 = vmatpush1.msra.mxu0 0.0
        %1242 = vmatprep.subr.mxu0 0.0
        %1243 = vmatpush1.msra.mxu0 0.0
        %1244 = vmatprep.subr.mxu0 0.0
        %1245 = vmatpush1.msra.mxu0 0.0
        %1246 = vmatprep.subr.mxu0 0.0
        %1247 = vmatpush1.msra.mxu0 0.0
        %1248 = vmatprep.subr.mxu0 0.0
        %1249 = vmatpush1.msra.mxu0 0.0
        %1250 = vmatprep.subr.mxu0 %v1218
        %1251 = vmatpush1.msra.mxu0 %v1215
        %1252 = vmatprep.subr.mxu0 0.0
        %1253 = vmatpush2.msra.mxu0 0.0
        %1254 = vmatprep.subr.mxu0 0.0
        %1255 = vmatpush2.msra.mxu0 0.0
        %1256 = vmatprep.subr.mxu0 0.0
        %1257 = vmatpush2.msra.mxu0 0.0
        %1258 = vmatprep.subr.mxu0 0.0
        %1259 = vmatpush2.msra.mxu0 0.0
        %1260 = vmatprep.subr.mxu0 0.0
        %1261 = vmatpush2.msra.mxu0 0.0
        %1262 = vmatprep.subr.mxu0 0.0
        %1263 = vmatpush2.msra.mxu0 0.0
        %1264 = vmatprep.subr.mxu0 0.0
        %1265 = vmatpush2.msra.mxu0 0.0
        %1266 = vmatprep.subr.mxu0 0.0
        %1267 = vmatpush2.msra.mxu0 0.0
        %1268 = vmatprep.subr.mxu0 0.0
        %1269 = vmatpush2.msra.mxu0 0.0
        %1270 = vmatprep.subr.mxu0 0.0
        %1271 = vmatpush2.msra.mxu0 0.0
        %1272 = vmatprep.subr.mxu0 0.0
        %1273 = vmatpush2.msra.mxu0 0.0
        %1274 = vmatprep.subr.mxu0 0.0
        %1275 = vmatpush2.msra.mxu0 0.0
        %1276 = vmatprep.subr.mxu0 0.0
        %1277 = vmatpush2.msra.mxu0 0.0
        %1278 = vmatprep.subr.mxu0 0.0
        %1279 = vmatpush2.msra.mxu0 0.0
        %1280 = vmatprep.subr.mxu0 0.0
        %1281 = vmatpush2.msra.mxu0 0.0
        %1282 = vmatprep.subr.mxu0 0.0
        %1283 = vmatpush2.msra.mxu0 0.0
        %1284 = vmatprep.mubr.f32.mxu0 0.0
        %1285 = vmatmul.mubr.f32.gmra.mxu0 %v1206
        %v1286 = vpop.f32.mrf.mxu0
        %v1287 = vadd.f32 0.0, %v1286
        %v1288 = vpop.f32.mrf.mxu0
        %v1289 = vadd.f32 0.0, %v1288
        %1290 = vmatprep.mubr.f32.mxu0 0.0
        %1291 = vmatmul.mubr.f32.gmra.mxu0 %v1209
        %v1292 = vpop.f32.mrf.mxu0
        %v1293 = vadd.f32 0.0, %v1292
        %v1294 = vpop.f32.mrf.mxu0
        %v1295 = vadd.f32 0.0, %v1294
        %1296 = vmatprep.mubr.f32.mxu0 0.0
        %1297 = vmatmul.mubr.f32.gmra.mxu0 %v1212
        %v1298 = vpop.f32.mrf.mxu0
        %v1299 = vadd.f32 0.0, %v1298
        %v1300 = vpop.f32.mrf.mxu0
        %v1301 = vadd.f32 0.0, %v1300
        %1302 = vdwg.mxu0
        %v1303 = vadd.f32 %v1188, %v1287
        %v1304 = vadd.f32 %v1189, %v1289
        %v1305 = vadd.f32 %v1190, %v1293
        %v1306 = vadd.f32 %v1191, %v1295
        %v1307 = vadd.f32 %v1192, %v1299
        %v1308 = vadd.f32 %v1193, %v1301
        %1309 = vmatprep.subr.mxu0 0.0
        %1310 = vmatpush1.msra.mxu0 %v214
        %1311 = vmatprep.subr.mxu0 0.0
        %1312 = vmatpush1.msra.mxu0 %v213
        %1313 = vmatprep.subr.mxu0 0.0
        %1314 = vmatpush1.msra.mxu0 %v212
        %1315 = vmatprep.subr.mxu0 0.0
        %1316 = vmatpush1.msra.mxu0 %v211
        %1317 = vmatprep.subr.mxu0 0.0
        %1318 = vmatpush1.msra.mxu0 %v210
        %1319 = vmatprep.subr.mxu0 0.0
        %1320 = vmatpush1.msra.mxu0 %v209
        %1321 = vmatprep.subr.mxu0 0.0
        %1322 = vmatpush1.msra.mxu0 %v208
        %1323 = vmatprep.subr.mxu0 0.0
        %1324 = vmatpush1.msra.mxu0 %v207
        %1325 = vmatprep.subr.mxu0 0.0
        %1326 = vmatpush1.msra.mxu0 %v206
        %1327 = vmatprep.subr.mxu0 0.0
        %1328 = vmatpush1.msra.mxu0 %v205
        %1329 = vmatprep.subr.mxu0 0.0
        %1330 = vmatpush1.msra.mxu0 %v204
        %1331 = vmatprep.subr.mxu0 0.0
        %1332 = vmatpush1.msra.mxu0 %v203
        %1333 = vmatprep.subr.mxu0 0.0
        %1334 = vmatpush1.msra.mxu0 %v202
        %1335 = vmatprep.subr.mxu0 0.0
        %1336 = vmatpush1.msra.mxu0 %v201
        %1337 = vmatprep.subr.mxu0 0.0
        %1338 = vmatpush1.msra.mxu0 %v200
        %1339 = vmatprep.subr.mxu0 0.0
        %1340 = vmatpush1.msra.mxu0 %v199
        %1341 = vmatprep.subr.mxu0 0.0
        %1342 = vmatpush2.msra.mxu0 %v230
        %1343 = vmatprep.subr.mxu0 0.0
        %1344 = vmatpush2.msra.mxu0 %v229
        %1345 = vmatprep.subr.mxu0 0.0
        %1346 = vmatpush2.msra.mxu0 %v228
        %1347 = vmatprep.subr.mxu0 0.0
        %1348 = vmatpush2.msra.mxu0 %v227
        %1349 = vmatprep.subr.mxu0 0.0
        %1350 = vmatpush2.msra.mxu0 %v226
        %1351 = vmatprep.subr.mxu0 0.0
        %1352 = vmatpush2.msra.mxu0 %v225
        %1353 = vmatprep.subr.mxu0 0.0
        %1354 = vmatpush2.msra.mxu0 %v224
        %1355 = vmatprep.subr.mxu0 0.0
        %1356 = vmatpush2.msra.mxu0 %v223
        %1357 = vmatprep.subr.mxu0 0.0
        %1358 = vmatpush2.msra.mxu0 %v222
        %1359 = vmatprep.subr.mxu0 0.0
        %1360 = vmatpush2.msra.mxu0 %v221
        %1361 = vmatprep.subr.mxu0 0.0
        %1362 = vmatpush2.msra.mxu0 %v220
        %1363 = vmatprep.subr.mxu0 0.0
        %1364 = vmatpush2.msra.mxu0 %v219
        %1365 = vmatprep.subr.mxu0 0.0
        %1366 = vmatpush2.msra.mxu0 %v218
        %1367 = vmatprep.subr.mxu0 0.0
        %1368 = vmatpush2.msra.mxu0 %v217
        %1369 = vmatprep.subr.mxu0 0.0
        %1370 = vmatpush2.msra.mxu0 %v216
        %1371 = vmatprep.subr.mxu0 0.0
        %1372 = vmatpush2.msra.mxu0 %v215
        %1373 = vmatprep.mubr.f32.mxu0 %v1304
        %1374 = vmatmul.mubr.f32.gmra.mxu0 %v1303
        %v1375 = vpop.f32.mrf.mxu0
        %v1376 = vadd.f32 0.0, %v1375
        %v1377 = vpop.f32.mrf.mxu0
        %1378 = vmatprep.mubr.f32.mxu0 %v1306
        %1379 = vmatmul.mubr.f32.gmra.mxu0 %v1305
        %v1380 = vpop.f32.mrf.mxu0
        %v1381 = vadd.f32 0.0, %v1380
        %v1382 = vpop.f32.mrf.mxu0
        %1383 = vmatprep.mubr.f32.mxu0 %v1308
        %1384 = vmatmul.mubr.f32.gmra.mxu0 %v1307
        %v1385 = vpop.f32.mrf.mxu0
        %v1386 = vadd.f32 0.0, %v1385
        %v1387 = vpop.f32.mrf.mxu0
        %1388 = vdwg.mxu0
        %vm1389 = vcmask 195584
        %v1391 = vsel %vm1389, %v242, 0
        %1393 = vmatprep.subr.mxu0 0.0
        %1394 = vmatpush1.msra.mxu0 0.0
        %1395 = vmatprep.subr.mxu0 0.0
        %1396 = vmatpush1.msra.mxu0 0.0
        %1397 = vmatprep.subr.mxu0 0.0
        %1398 = vmatpush1.msra.mxu0 0.0
        %1399 = vmatprep.subr.mxu0 0.0
        %1400 = vmatpush1.msra.mxu0 0.0
        %1401 = vmatprep.subr.mxu0 0.0
        %1402 = vmatpush1.msra.mxu0 0.0
        %1403 = vmatprep.subr.mxu0 0.0
        %1404 = vmatpush1.msra.mxu0 0.0
        %1405 = vmatprep.subr.mxu0 0.0
        %1406 = vmatpush1.msra.mxu0 0.0
        %1407 = vmatprep.subr.mxu0 0.0
        %1408 = vmatpush1.msra.mxu0 0.0
        %1409 = vmatprep.subr.mxu0 0.0
        %1410 = vmatpush1.msra.mxu0 0.0
        %1411 = vmatprep.subr.mxu0 0.0
        %1412 = vmatpush1.msra.mxu0 0.0
        %1413 = vmatprep.subr.mxu0 0.0
        %1414 = vmatpush1.msra.mxu0 0.0
        %1415 = vmatprep.subr.mxu0 0.0
        %1416 = vmatpush1.msra.mxu0 0.0
        %1417 = vmatprep.subr.mxu0 0.0
        %1418 = vmatpush1.msra.mxu0 0.0
        %1419 = vmatprep.subr.mxu0 0.0
        %1420 = vmatpush1.msra.mxu0 %v1386
        %1421 = vmatprep.subr.mxu0 0.0
        %1422 = vmatpush1.msra.mxu0 %v1381
        %1423 = vmatprep.subr.mxu0 0.0
        %1424 = vmatpush1.msra.mxu0 %v1376
        %1425 = vmatprep.subr.mxu0 0.0
        %1426 = vmatpush2.msra.mxu0 0.0
        %1427 = vmatprep.subr.mxu0 0.0
        %1428 = vmatpush2.msra.mxu0 0.0
        %1429 = vmatprep.subr.mxu0 0.0
        %1430 = vmatpush2.msra.mxu0 0.0
        %1431 = vmatprep.subr.mxu0 0.0
        %1432 = vmatpush2.msra.mxu0 0.0
        %1433 = vmatprep.subr.mxu0 0.0
        %1434 = vmatpush2.msra.mxu0 0.0
        %1435 = vmatprep.subr.mxu0 0.0
        %1436 = vmatpush2.msra.mxu0 0.0
        %1437 = vmatprep.subr.mxu0 0.0
        %1438 = vmatpush2.msra.mxu0 0.0
        %1439 = vmatprep.subr.mxu0 0.0
        %1440 = vmatpush2.msra.mxu0 0.0
        %1441 = vmatprep.subr.mxu0 0.0
        %1442 = vmatpush2.msra.mxu0 0.0
        %1443 = vmatprep.subr.mxu0 0.0
        %1444 = vmatpush2.msra.mxu0 0.0
        %1445 = vmatprep.subr.mxu0 0.0
        %1446 = vmatpush2.msra.mxu0 0.0
        %1447 = vmatprep.subr.mxu0 0.0
        %1448 = vmatpush2.msra.mxu0 0.0
        %1449 = vmatprep.subr.mxu0 0.0
        %1450 = vmatpush2.msra.mxu0 0.0
        %1451 = vmatprep.subr.mxu0 0.0
        %1452 = vmatpush2.msra.mxu0 0.0
        %1453 = vmatprep.subr.mxu0 0.0
        %1454 = vmatpush2.msra.mxu0 0.0
        %1455 = vmatprep.subr.mxu0 0.0
        %1456 = vmatpush2.msra.mxu0 0.0
        %1457 = vmatprep.mubr.f32.mxu0 0.0
        %1458 = vmatmul.mubr.f32.gmra.mxu0 %v1391
        %v1459 = vpop.f32.mrf.mxu0
        %v1460 = vadd.f32 0.0, %v1459
        %v1461 = vpop.f32.mrf.mxu0
        %1462 = vdwg.mxu0
        %v1463 = vmul.f32 %v1460, 0.0006377551
        %v1464 = vxor.u32 %v1463, 2147483648
        %v1465 = vmul.f32 %v1464, 1.442695
        %v1466 = vpow.pop %v1465
        %v1467 = vadd.f32 %v1466, 1.0
        %v1468 = vrcp.pop %v1467
        %v1469 = vmul.f32 1.0, %v1468
        %vm1470 = vcmask 23552
        %v1472 = vsel %vm1470, %v260, 0
        %v1475 = vsel %vm1470, %v261, 0
        %v1478 = vsel %vm1470, %v262, 0
        %vm1480 = vcmask 1042432
        %v1482 = vsel %vm1480, %v1469, 0
        %1484 = vmatprep.subr.mxu0 0.0
        %1485 = vmatpush1.msra.mxu0 0.0
        %1486 = vmatprep.subr.mxu0 0.0
        %1487 = vmatpush1.msra.mxu0 0.0
        %1488 = vmatprep.subr.mxu0 0.0
        %1489 = vmatpush1.msra.mxu0 0.0
        %1490 = vmatprep.subr.mxu0 0.0
        %1491 = vmatpush1.msra.mxu0 0.0
        %1492 = vmatprep.subr.mxu0 0.0
        %1493 = vmatpush1.msra.mxu0 0.0
        %1494 = vmatprep.subr.mxu0 0.0
        %1495 = vmatpush1.msra.mxu0 0.0
        %1496 = vmatprep.subr.mxu0 0.0
        %1497 = vmatpush1.msra.mxu0 0.0
        %1498 = vmatprep.subr.mxu0 0.0
        %1499 = vmatpush1.msra.mxu0 0.0
        %1500 = vmatprep.subr.mxu0 0.0
        %1501 = vmatpush1.msra.mxu0 0.0
        %1502 = vmatprep.subr.mxu0 0.0
        %1503 = vmatpush1.msra.mxu0 0.0
        %1504 = vmatprep.subr.mxu0 0.0
        %1505 = vmatpush1.msra.mxu0 0.0
        %1506 = vmatprep.subr.mxu0 0.0
        %1507 = vmatpush1.msra.mxu0 0.0
        %1508 = vmatprep.subr.mxu0 0.0
        %1509 = vmatpush1.msra.mxu0 0.0
        %1510 = vmatprep.subr.mxu0 0.0
        %1511 = vmatpush1.msra.mxu0 0.0
        %1512 = vmatprep.subr.mxu0 0.0
        %1513 = vmatpush1.msra.mxu0 0.0
        %1514 = vmatprep.subr.mxu0 0.0
        %1515 = vmatpush1.msra.mxu0 %v1482
        %1516 = vmatprep.subr.mxu0 0.0
        %1517 = vmatpush2.msra.mxu0 0.0
        %1518 = vmatprep.subr.mxu0 0.0
        %1519 = vmatpush2.msra.mxu0 0.0
        %1520 = vmatprep.subr.mxu0 0.0
        %1521 = vmatpush2.msra.mxu0 0.0
        %1522 = vmatprep.subr.mxu0 0.0
        %1523 = vmatpush2.msra.mxu0 0.0
        %1524 = vmatprep.subr.mxu0 0.0
        %1525 = vmatpush2.msra.mxu0 0.0
        %1526 = vmatprep.subr.mxu0 0.0
        %1527 = vmatpush2.msra.mxu0 0.0
        %1528 = vmatprep.subr.mxu0 0.0
        %1529 = vmatpush2.msra.mxu0 0.0
        %1530 = vmatprep.subr.mxu0 0.0
        %1531 = vmatpush2.msra.mxu0 0.0
        %1532 = vmatprep.subr.mxu0 0.0
        %1533 = vmatpush2.msra.mxu0 0.0
        %1534 = vmatprep.subr.mxu0 0.0
        %1535 = vmatpush2.msra.mxu0 0.0
        %1536 = vmatprep.subr.mxu0 0.0
        %1537 = vmatpush2.msra.mxu0 0.0
        %1538 = vmatprep.subr.mxu0 0.0
        %1539 = vmatpush2.msra.mxu0 0.0
        %1540 = vmatprep.subr.mxu0 0.0
        %1541 = vmatpush2.msra.mxu0 0.0
        %1542 = vmatprep.subr.mxu0 0.0
        %1543 = vmatpush2.msra.mxu0 0.0
        %1544 = vmatprep.subr.mxu0 0.0
        %1545 = vmatpush2.msra.mxu0 0.0
        %1546 = vmatprep.subr.mxu0 0.0
        %1547 = vmatpush2.msra.mxu0 0.0
        %1548 = vmatprep.mubr.f32.mxu0 0.0
        %1549 = vmatmul.mubr.f32.gmra.mxu0 %v1472
        %v1550 = vpop.f32.mrf.mxu0
        %v1551 = vadd.f32 0.0, %v1550
        %v1552 = vpop.f32.mrf.mxu0
        %1553 = vmatprep.mubr.f32.mxu0 0.0
        %1554 = vmatmul.mubr.f32.gmra.mxu0 %v1475
        %v1555 = vpop.f32.mrf.mxu0
        %v1556 = vadd.f32 0.0, %v1555
        %v1557 = vpop.f32.mrf.mxu0
        %1558 = vmatprep.mubr.f32.mxu0 0.0
        %1559 = vmatmul.mubr.f32.gmra.mxu0 %v1478
        %v1560 = vpop.f32.mrf.mxu0
        %v1561 = vadd.f32 0.0, %v1560
        %v1562 = vpop.f32.mrf.mxu0
        %1563 = vdwg.mxu0
        %1565 = vset.pattern.permute.xlu0 0
        %1566 = vperm.xlu0 %1565, %v1551
        %v1567 = vpop.permute.xlu0 %1566
        %1570 = vset.pattern.permute.xlu0 0
        %1571 = vperm.xlu0 %1570, %v1556
        %v1572 = vpop.permute.xlu0 %1571
        %1575 = vset.pattern.permute.xlu0 0
        %1576 = vperm.xlu0 %1575, %v1561
        %v1577 = vpop.permute.xlu0 %1576
        %v1579 = vmul.f32 %v1303, %v1567
        %v1580 = vmul.f32 %v1304, %v1567
        %v1581 = vmul.f32 %v1305, %v1572
        %v1582 = vmul.f32 %v1306, %v1572
        %v1583 = vmul.f32 %v1307, %v1577
        %v1584 = vmul.f32 %v1308, %v1577
        %v1585 = vadd.f32 %v1579, %v1581
        %v1586 = vadd.f32 %v1580, %v1582
        %v1587 = vadd.f32 %v1585, %v1583
        %v1588 = vadd.f32 %v1586, %v1584
        %1589 = vst [vmem:[%s190] sm:$0xff] %v1587
        %1590 = vst [vmem:[%s190 + $0x8] sm:$0xff] %v1588
        %s1591 = sand.u32 %s115, 1
        %s1592 = scalar_lea.sflag [#allocation3], %s1591
        %s1593 = sand.u32 %s115, 1
        %s1594 = smul.addr %s1593, 16
        %s1595 = scalar_lea.vmem [#allocation2], %s1594
        // Predicated region
        $region37: #{tpu_custom_call.1} parent=35 // pred_check
          %p1596 = pneg %p125
        $region38: #{tpu_custom_call.1} parent=35 // pred_check_branch
          %1598 = sbr.rel (%p1596) target = $region40
        $region39: #{tpu_custom_call.1} parent=35 // pred_region
          %s1600 = ssub.s32 256, 256
          %1601 = vsyncadd %s1592, %s1600
          %s1602 = smul.addr %s18, 2
          %s1603 = smul.addr %s1602, 128
          %s1604 = scalar_lea.hbm %s4, %s1603
          %s1606 = sshll.u32 %s1595, 4
          %s1607 = int_to_ptr.vmem [resolvable:$true] %s1606
          %1609 = dma.vmem_to_hbm [thread:$0]  %s1607, 256, %s1604, %s1592
        $region40: #{tpu_custom_call.1} parent=35 // pred_fallthru
          _
      $region36: #{tpu_custom_call.1} parent=5 // pred_fallthru
        _
      %p1610 = scmp.le.s32.totalorder 2, %s13
      // Predicated region
      $region41: #{tpu_custom_call.1} parent=5 // pred_check
        %p1611 = pneg %p1610
      $region42: #{tpu_custom_call.1} parent=5 // pred_check_branch
        %1613 = sbr.rel (%p1611) target = $region44
      $region43: #{tpu_custom_call.1} parent=5 // pred_region
        %s1614 = ssub.s32 %s13, 2
        // Predicated region
        $region45: #{tpu_custom_call.1} parent=43 // pred_check
          %p1615 = pneg %p131
        $region46: #{tpu_custom_call.1} parent=43 // pred_check_branch
          %1617 = sbr.rel (%p1615) target = $region48
        $region47: #{tpu_custom_call.1} parent=43 // pred_region
          %s1618 = sand.u32 %s116, 1
          %s1619 = scalar_lea.sflag [#allocation3], %s1618
          %s1620 = sand.u32 %s116, 1
          %s1621 = smul.addr %s1620, 16
          %s1622 = scalar_lea.vmem [#allocation2], %s1621
          %1623 = dma.done %s1619, 256
        $region48: #{tpu_custom_call.1} parent=43 // pred_fallthru
          _
      $region44: #{tpu_custom_call.1} parent=5 // pred_fallthru
        _
    $region6: #{tpu_custom_call.1} parent=1 // loop_footer
      %s17 = sadd.s32 1, %s13
    $region7: #{tpu_custom_call.1} parent=1 // loop_footer_branch
      %12 = sbr.rel target = $region3
    $region8: #{tpu_custom_call.1} parent=1 // loop_exit
      _
    %1624 = vsyncpa [#allocation3], 1
    %s1625 = scalar_lea.sflag [#allocation3], 1
    %1626 = vsyncpa %s1625, 1

// kernel: tpu_custom_call.1
$region0: #{tpu_custom_call.1}
  #allocation0 [shape = 'u32[]', space=smem, size = 0x4, offset = 0x4, fixed_abs, tag = 'smem constant byte address 0x4 - core index']
  #allocation1 [shape = 'u32[144,128]{1,0:T(1,128)}', space=vmem, size = 0x12000, scoped, tag = 'internal scratch']
  %s0 = inlined_call_operand.vmem [shape: f32[2,4,256], index: 0, kind: input, shape index: {}]
  %s1 = inlined_call_operand.vmem [shape: f32[9,24,4], index: 1, kind: input, shape index: {}]
  %s2 = inlined_call_operand.vmem [shape: f32[24,1], index: 2, kind: input, shape index: {}]
  %s3 = inlined_call_operand.vmem [shape: f32[256,1], index: 3, kind: input, shape index: {}]
  %s4 = inlined_call_operand.hbm [shape: f32[2,8,256], index: 4, kind: output, shape index: {}]
  %s5 = sld [smem:[#allocation0]]
  $region49: #{tpu_custom_call.1} parent=0
    _
  %s7 = ssub.s32 1, %s5
  %s8 = scalar_select 0, %s7, %s5
  $region1: #{tpu_custom_call.1} parent=0
    #allocation2 [shape = 'u8[16384]{0}', space=vmem, size = 0x4000, scoped, tag = 'output window, operand 0']
    #allocation3 [shape = 's32[2]{0}', space=sflag, size = 0x8, scoped, tag = 'scoped memory for tpu_custom_call.1']
    %9 = vsyncpa [#allocation3], 0
    %s10 = scalar_lea.sflag [#allocation3], 1
    %11 = vsyncpa %s10, 0
    loop: start=0, step=1, limit=4
    $region2: #{tpu_custom_call.1} parent=1 // loop_pre_header
      _
    $region3: #{tpu_custom_call.1} parent=1 // loop_header
      %s13 = sphi 0, %s17
      %p14 = scmp.ge.s32.totalorder %s13, 4
      %s23 = sphi 0, %s25
      %s26 = sphi 0, %s23
      %s27 = sphi 0, %s26
      %s43 = sphi 0, %s27
      %s47 = sphi 0, %s47
      %s49 = sphi 0, %s47
      %s50 = sphi 0, %s49
      %s64 = sphi 0, %s50
      %s68 = sphi 0, %s68
      %s70 = sphi 0, %s68
      %s71 = sphi 0, %s70
      %s85 = sphi 0, %s71
      %s89 = sphi 0, %s89
      %s91 = sphi 0, %s89
      %s92 = sphi 0, %s91
      %s106 = sphi 0, %s92
      %s112 = sphi 0, %s114
      %s115 = sphi 0, %s112
      %s116 = sphi 0, %s115
      %s132 = sphi 0, %s116
    $region4: #{tpu_custom_call.1} parent=1 // loop_header_branch
      %16 = sbr.rel (%p14) target = $region8
    $region5: #{tpu_custom_call.1} parent=1 // loop_body
      %s18 = ssub.s32 %s13, 1
      %s19 = ssub.s32 %s13, 2
      %s20 = sadd.s32 %s13, 1
      %s21 = ssub.s32 %s13, %s20
      %p22 = scmp.eq.s32.totalorder %s21, 0
      %s24 = sadd.s32 %s23, 1
      %s25 = scalar_select %p22, %s23, %s24
      %p28 = pneg %p22
      %p29 = scmp.eq.s32.totalorder %s13, 1
      %p30 = por %p28, %p29
      %p31 = scmp.ne.s32.totalorder %s23, %s26
      %p32 = scmp.eq.s32.totalorder %s13, 0
      %p33 = por %p31, %p32
      %p34 = scmp.ne.s32.totalorder %s23, %s26
      %p35 = scmp.eq.s32.totalorder %s18, 1
      %p36 = por %p34, %p35
      %p37 = scmp.ne.s32.totalorder %s26, %s27
      %p38 = scmp.eq.s32.totalorder %s18, 0
      %p39 = por %p37, %p38
      %p40 = scmp.ne.s32.totalorder %s26, %s27
      %p41 = scmp.eq.s32.totalorder %s19, 1
      %p42 = por %p40, %p41
      %p44 = scmp.ne.s32.totalorder %s27, %s43
      %p45 = scmp.eq.s32.totalorder %s19, 0
      %p46 = por %p44, %p45
      %s48 = sadd.s32 %s47, 1
      %p51 = scmp.eq.s32.totalorder %s13, 1
      %p52 = scmp.ne.s32.totalorder %s47, %s49
      %p53 = scmp.eq.s32.totalorder %s13, 0
      %p54 = por %p52, %p53
      %p55 = scmp.ne.s32.totalorder %s47, %s49
      %p56 = scmp.eq.s32.totalorder %s18, 1
      %p57 = por %p55, %p56
      %p58 = scmp.ne.s32.totalorder %s49, %s50
      %p59 = scmp.eq.s32.totalorder %s18, 0
      %p60 = por %p58, %p59
      %p61 = scmp.ne.s32.totalorder %s49, %s50
      %p62 = scmp.eq.s32.totalorder %s19, 1
      %p63 = por %p61, %p62
      %p65 = scmp.ne.s32.totalorder %s50, %s64
      %p66 = scmp.eq.s32.totalorder %s19, 0
      %p67 = por %p65, %p66
      %s69 = sadd.s32 %s68, 1
      %p72 = scmp.eq.s32.totalorder %s13, 1
      %p73 = scmp.ne.s32.totalorder %s68, %s70
      %p74 = scmp.eq.s32.totalorder %s13, 0
      %p75 = por %p73, %p74
      %p76 = scmp.ne.s32.totalorder %s68, %s70
      %p77 = scmp.eq.s32.totalorder %s18, 1
      %p78 = por %p76, %p77
      %p79 = scmp.ne.s32.totalorder %s70, %s71
      %p80 = scmp.eq.s32.totalorder %s18, 0
      %p81 = por %p79, %p80
      %p82 = scmp.ne.s32.totalorder %s70, %s71
      %p83 = scmp.eq.s32.totalorder %s19, 1
      %p84 = por %p82, %p83
      %p86 = scmp.ne.s32.totalorder %s71, %s85
      %p87 = scmp.eq.s32.totalorder %s19, 0
      %p88 = por %p86, %p87
      %s90 = sadd.s32 %s89, 1
      %p93 = scmp.eq.s32.totalorder %s13, 1
      %p94 = scmp.ne.s32.totalorder %s89, %s91
      %p95 = scmp.eq.s32.totalorder %s13, 0
      %p96 = por %p94, %p95
      %p97 = scmp.ne.s32.totalorder %s89, %s91
      %p98 = scmp.eq.s32.totalorder %s18, 1
      %p99 = por %p97, %p98
      %p100 = scmp.ne.s32.totalorder %s91, %s92
      %p101 = scmp.eq.s32.totalorder %s18, 0
      %p102 = por %p100, %p101
      %p103 = scmp.ne.s32.totalorder %s91, %s92
      %p104 = scmp.eq.s32.totalorder %s19, 1
      %p105 = por %p103, %p104
      %p107 = scmp.ne.s32.totalorder %s92, %s106
      %p108 = scmp.eq.s32.totalorder %s19, 0
      %p109 = por %p107, %p108
      %s110 = ssub.s32 %s13, %s20
      %p111 = scmp.eq.s32.totalorder %s110, 0
      %s113 = sadd.s32 %s112, 1
      %s114 = scalar_select %p111, %s112, %s113
      %p117 = pneg %p111
      %p118 = scmp.eq.s32.totalorder %s13, 1
      %p119 = por %p117, %p118
      %p120 = scmp.ne.s32.totalorder %s112, %s115
      %p121 = scmp.eq.s32.totalorder %s13, 0
      %p122 = por %p120, %p121
      %p123 = scmp.ne.s32.totalorder %s112, %s115
      %p124 = scmp.eq.s32.totalorder %s18, 1
      %p125 = por %p123, %p124
      %p126 = scmp.ne.s32.totalorder %s115, %s116
      %p127 = scmp.eq.s32.totalorder %s18, 0
      %p128 = por %p126, %p127
      %p129 = scmp.ne.s32.totalorder %s115, %s116
      %p130 = scmp.eq.s32.totalorder %s19, 1
      %p131 = por %p129, %p130
      %p133 = scmp.ne.s32.totalorder %s116, %s132
      %p134 = scmp.eq.s32.totalorder %s19, 0
      %p135 = por %p133, %p134
      %p136 = scmp.le.s32.totalorder 1, %s13
      %p137 = scmp.lt.s32.totalorder %s13, 3
      %p138 = pnand %p136, %p137
      %p139 = pneg %p138
      // Predicated region
      $region9: #{tpu_custom_call.1} parent=5 // pred_check
        _
      $region10: #{tpu_custom_call.1} parent=5 // pred_check_branch
        %141 = sbr.rel (%p138) target = $region12
      $region11: #{tpu_custom_call.1} parent=5 // pred_region
        %s142 = ssub.s32 %s13, 1
        // Predicated region
        $region13: #{tpu_custom_call.1} parent=11 // pred_check
          %p143 = pneg %p60
        $region14: #{tpu_custom_call.1} parent=11 // pred_check_branch
          %145 = sbr.rel (%p143) target = $region16
        $region15: #{tpu_custom_call.1} parent=11 // pred_region
          _
        $region16: #{tpu_custom_call.1} parent=11 // pred_fallthru
          _
        // Predicated region
        $region17: #{tpu_custom_call.1} parent=11 // pred_check
          %p146 = pneg %p81
        $region18: #{tpu_custom_call.1} parent=11 // pred_check_branch
          %148 = sbr.rel (%p146) target = $region20
        $region19: #{tpu_custom_call.1} parent=11 // pred_region
          _
        $region20: #{tpu_custom_call.1} parent=11 // pred_fallthru
          _
        // Predicated region
        $region21: #{tpu_custom_call.1} parent=11 // pred_check
          %p149 = pneg %p102
        $region22: #{tpu_custom_call.1} parent=11 // pred_check_branch
          %151 = sbr.rel (%p149) target = $region24
        $region23: #{tpu_custom_call.1} parent=11 // pred_region
          _
        $region24: #{tpu_custom_call.1} parent=11 // pred_fallthru
          _
      $region12: #{tpu_custom_call.1} parent=5 // pred_fallthru
        _
      %p152 = scmp.lt.s32.totalorder %s13, 2
      // Predicated region
      $region25: #{tpu_custom_call.1} parent=5 // pred_check
        %p153 = pneg %p152
      $region26: #{tpu_custom_call.1} parent=5 // pred_check_branch
        %155 = sbr.rel (%p153) target = $region28
      $region27: #{tpu_custom_call.1} parent=5 // pred_region
        // Predicated region
        $region29: #{tpu_custom_call.1} parent=27 // pred_check
          %p156 = pneg %p33
        $region30: #{tpu_custom_call.1} parent=27 // pred_check_branch
          %158 = sbr.rel (%p156) target = $region32
        $region31: #{tpu_custom_call.1} parent=27 // pred_region
          %p159 = scmp.lt.s32.totalorder %s13, 1
          %s160 = scalar_select %p159, %s13, 1
          %s161 = smul.addr %s160, 2
          %s162 = smul.addr %s161, 4
          %s163 = scalar_lea.vmem %s0, %s162
        $region32: #{tpu_custom_call.1} parent=27 // pred_fallthru
          _
      $region28: #{tpu_custom_call.1} parent=5 // pred_fallthru
        _
      %p164 = scmp.le.s32.totalorder 1, %s13
      %p165 = scmp.lt.s32.totalorder %s13, 3
      %p166 = pnand %p164, %p165
      %p167 = pneg %p166
      // Predicated region
      $region33: #{tpu_custom_call.1} parent=5 // pred_check
        _
      $region34: #{tpu_custom_call.1} parent=5 // pred_check_branch
        %169 = sbr.rel (%p166) target = $region36
      $region35: #{tpu_custom_call.1} parent=5 // pred_region
        %s170 = ssub.s32 %s13, 1
        %p171 = scmp.lt.s32.totalorder %s18, 1
        %s172 = scalar_select %p171, %s18, 1
        %s173 = smul.addr %s172, 2
        %s174 = smul.addr %s173, 4
        %s175 = scalar_lea.vmem %s0, %s174
        %p176 = pneg %p39
        %p177 = pneg %p36
        %p178 = pneg %p60
        %p179 = pneg %p57
        %p180 = pneg %p81
        %p181 = pneg %p78
        %p182 = pneg %p102
        %p183 = pneg %p99
        %p184 = pneg %p128
        %p185 = pneg %p125
        %s186 = sand.u32 %s115, 1
        %s187 = scalar_lea.sflag [#allocation3], %s186
        %s188 = sand.u32 %s115, 1
        %s189 = smul.addr %s188, 16
        %s190 = scalar_lea.vmem [#allocation2], %s189
        %p191 = scmp.lt.s32.totalorder %s18, 1
        %s192 = scalar_select %p191, %s18, 1
        %s193 = smul.addr %s192, 2
        %s194 = smul.addr %s193, 4
        %s195 = scalar_lea.vmem %s0, %s194
        %v196 = vld [vmem:[%s2] sm:$0xff]
        %v197 = vld [vmem:[%s2 + $0x8] sm:$0xff]
        %v198 = vld [vmem:[%s2 + $0x10] sm:$0xff]
        %v199 = vld [vmem:[%s3] sm:$0xff]
        %v200 = vld [vmem:[%s3 + $0x8] sm:$0xff]
        %v201 = vld [vmem:[%s3 + $0x10] sm:$0xff]
        %v202 = vld [vmem:[%s3 + $0x18] sm:$0xff]
        %v203 = vld [vmem:[%s3 + $0x20] sm:$0xff]
        %v204 = vld [vmem:[%s3 + $0x28] sm:$0xff]
        %v205 = vld [vmem:[%s3 + $0x30] sm:$0xff]
        %v206 = vld [vmem:[%s3 + $0x38] sm:$0xff]
        %v207 = vld [vmem:[%s3 + $0x40] sm:$0xff]
        %v208 = vld [vmem:[%s3 + $0x48] sm:$0xff]
        %v209 = vld [vmem:[%s3 + $0x50] sm:$0xff]
        %v210 = vld [vmem:[%s3 + $0x58] sm:$0xff]
        %v211 = vld [vmem:[%s3 + $0x60] sm:$0xff]
        %v212 = vld [vmem:[%s3 + $0x68] sm:$0xff]
        %v213 = vld [vmem:[%s3 + $0x70] sm:$0xff]
        %v214 = vld [vmem:[%s3 + $0x78] sm:$0xff]
        %v215 = vld [vmem:[%s3 + $0x80] sm:$0xff]
        %v216 = vld [vmem:[%s3 + $0x88] sm:$0xff]
        %v217 = vld [vmem:[%s3 + $0x90] sm:$0xff]
        %v218 = vld [vmem:[%s3 + $0x98] sm:$0xff]
        %v219 = vld [vmem:[%s3 + $0xa0] sm:$0xff]
        %v220 = vld [vmem:[%s3 + $0xa8] sm:$0xff]
        %v221 = vld [vmem:[%s3 + $0xb0] sm:$0xff]
        %v222 = vld [vmem:[%s3 + $0xb8] sm:$0xff]
        %v223 = vld [vmem:[%s3 + $0xc0] sm:$0xff]
        %v224 = vld [vmem:[%s3 + $0xc8] sm:$0xff]
        %v225 = vld [vmem:[%s3 + $0xd0] sm:$0xff]
        %v226 = vld [vmem:[%s3 + $0xd8] sm:$0xff]
        %v227 = vld [vmem:[%s3 + $0xe0] sm:$0xff]
        %v228 = vld [vmem:[%s3 + $0xe8] sm:$0xff]
        %v229 = vld [vmem:[%s3 + $0xf0] sm:$0xff]
        %v230 = vld [vmem:[%s3 + $0xf8] sm:$0xff]
        %v231 = vlaneseq
        %v232 = vand.u32 %v231, 127
        %v233 = vlaneseq
        %v234 = vshrl.u32 %v233, 7
        %v235 = vmul.u32 %v234, 8
        %vm236 = vcmp.ge.s32.totalorder %v232, %v235
        %v237 = vadd.s32 %v234, 1
        %v238 = vmul.u32 %v237, 8
        %vm239 = vcmp.lt.s32.totalorder %v232, %v238
        %vm240 = vmand %vm236, %vm239
        %v241 = vsel %vm240, 1, 0
        %v242 = vcvt.s32.f32 %v241
        %v243 = vadd.s32 %v234, 8
        %v244 = vadd.s32 %v234, 16
        %v245 = vmul.u32 %v232, 8
        %vm246 = vcmp.ge.s32.totalorder %v234, %v245
        %vm247 = vcmp.ge.s32.totalorder %v243, %v245
        %vm248 = vcmp.ge.s32.totalorder %v244, %v245
        %v249 = vadd.s32 %v232, 1
        %v250 = vmul.u32 %v249, 8
        %vm251 = vcmp.lt.s32.totalorder %v234, %v250
        %vm252 = vcmp.lt.s32.totalorder %v243, %v250
        %vm253 = vcmp.lt.s32.totalorder %v244, %v250
        %vm254 = vmand %vm246, %vm251
        %vm255 = vmand %vm247, %vm252
        %vm256 = vmand %vm248, %vm253
        %v257 = vsel %vm254, 1, 0
        %v258 = vsel %vm255, 1, 0
        %v259 = vsel %vm256, 1, 0
        %v260 = vcvt.s32.f32 %v257
        %v261 = vcvt.s32.f32 %v258
        %v262 = vcvt.s32.f32 %v259
        %v263 = vld [vmem:[%s195] sm:$0xff]
        %265 = vset.pattern.permute.xlu0 0
        %266 = vperm.xlu0 %265, %v196
        %v267 = vpop.permute.xlu0 %266
        %270 = vset.pattern.permute.xlu0 0
        %271 = vperm.xlu0 %270, %v197
        %v272 = vpop.permute.xlu0 %271
        %275 = vset.pattern.permute.xlu0 0
        %276 = vperm.xlu0 %275, %v198
        %v277 = vpop.permute.xlu0 %276
        %v279 = vld [vmem:[%s1] sm:$0xff]
        %v280 = vld [vmem:[%s1 + $0x8] sm:$0xff]
        %v281 = vld [vmem:[%s1 + $0x10] sm:$0xff]
        %v283 = vcombine.high %v263, %v263
        %vm284 = vcmask 31744
        %v286 = vsel %vm284, %v279, 0
        %v289 = vsel %vm284, %v280, 0
        %v292 = vsel %vm284, %v281, 0
        %vm294 = vcmask 1043456
        %v295 = vsel %vm294, %v263, 0
        %v297 = vsel %vm294, %v283, 0
        %299 = vmatprep.subr.mxu0 0.0
        %300 = vmatpush1.msra.mxu0 0.0
        %301 = vmatprep.subr.mxu0 0.0
        %302 = vmatpush1.msra.mxu0 0.0
        %303 = vmatprep.subr.mxu0 0.0
        %304 = vmatpush1.msra.mxu0 0.0
        %305 = vmatprep.subr.mxu0 0.0
        %306 = vmatpush1.msra.mxu0 0.0
        %307 = vmatprep.subr.mxu0 0.0
        %308 = vmatpush1.msra.mxu0 0.0
        %309 = vmatprep.subr.mxu0 0.0
        %310 = vmatpush1.msra.mxu0 0.0
        %311 = vmatprep.subr.mxu0 0.0
        %312 = vmatpush1.msra.mxu0 0.0
        %313 = vmatprep.subr.mxu0 0.0
        %314 = vmatpush1.msra.mxu0 0.0
        %315 = vmatprep.subr.mxu0 0.0
        %316 = vmatpush1.msra.mxu0 0.0
        %317 = vmatprep.subr.mxu0 0.0
        %318 = vmatpush1.msra.mxu0 0.0
        %319 = vmatprep.subr.mxu0 0.0
        %320 = vmatpush1.msra.mxu0 0.0
        %321 = vmatprep.subr.mxu0 0.0
        %322 = vmatpush1.msra.mxu0 0.0
        %323 = vmatprep.subr.mxu0 0.0
        %324 = vmatpush1.msra.mxu0 0.0
        %325 = vmatprep.subr.mxu0 0.0
        %326 = vmatpush1.msra.mxu0 0.0
        %327 = vmatprep.subr.mxu0 0.0
        %328 = vmatpush1.msra.mxu0 0.0
        %329 = vmatprep.subr.mxu0 %v297
        %330 = vmatpush1.msra.mxu0 %v295
        %331 = vmatprep.subr.mxu0 0.0
        %332 = vmatpush2.msra.mxu0 0.0
        %333 = vmatprep.subr.mxu0 0.0
        %334 = vmatpush2.msra.mxu0 0.0
        %335 = vmatprep.subr.mxu0 0.0
        %336 = vmatpush2.msra.mxu0 0.0
        %337 = vmatprep.subr.mxu0 0.0
        %338 = vmatpush2.msra.mxu0 0.0
        %339 = vmatprep.subr.mxu0 0.0
        %340 = vmatpush2.msra.mxu0 0.0
        %341 = vmatprep.subr.mxu0 0.0
        %342 = vmatpush2.msra.mxu0 0.0
        %343 = vmatprep.subr.mxu0 0.0
        %344 = vmatpush2.msra.mxu0 0.0
        %345 = vmatprep.subr.mxu0 0.0
        %346 = vmatpush2.msra.mxu0 0.0
        %347 = vmatprep.subr.mxu0 0.0
        %348 = vmatpush2.msra.mxu0 0.0
        %349 = vmatprep.subr.mxu0 0.0
        %350 = vmatpush2.msra.mxu0 0.0
        %351 = vmatprep.subr.mxu0 0.0
        %352 = vmatpush2.msra.mxu0 0.0
        %353 = vmatprep.subr.mxu0 0.0
        %354 = vmatpush2.msra.mxu0 0.0
        %355 = vmatprep.subr.mxu0 0.0
        %356 = vmatpush2.msra.mxu0 0.0
        %357 = vmatprep.subr.mxu0 0.0
        %358 = vmatpush2.msra.mxu0 0.0
        %359 = vmatprep.subr.mxu0 0.0
        %360 = vmatpush2.msra.mxu0 0.0
        %361 = vmatprep.subr.mxu0 0.0
        %362 = vmatpush2.msra.mxu0 0.0
        %363 = vmatprep.mubr.f32.mxu0 0.0
        %364 = vmatmul.mubr.f32.gmra.mxu0 %v286
        %v365 = vpop.f32.mrf.mxu0
        %v366 = vadd.f32 0.0, %v365
        %v367 = vpop.f32.mrf.mxu0
        %v368 = vadd.f32 0.0, %v367
        %369 = vmatprep.mubr.f32.mxu0 0.0
        %370 = vmatmul.mubr.f32.gmra.mxu0 %v289
        %v371 = vpop.f32.mrf.mxu0
        %v372 = vadd.f32 0.0, %v371
        %v373 = vpop.f32.mrf.mxu0
        %v374 = vadd.f32 0.0, %v373
        %375 = vmatprep.mubr.f32.mxu0 0.0
        %376 = vmatmul.mubr.f32.gmra.mxu0 %v292
        %v377 = vpop.f32.mrf.mxu0
        %v378 = vadd.f32 0.0, %v377
        %v379 = vpop.f32.mrf.mxu0
        %v380 = vadd.f32 0.0, %v379
        %381 = vdwg.mxu0
        %v382 = vadd.f32 %v267, %v366
        %v383 = vadd.f32 %v267, %v368
        %v384 = vadd.f32 %v272, %v372
        %v385 = vadd.f32 %v272, %v374
        %v386 = vadd.f32 %v277, %v378
        %v387 = vadd.f32 %v277, %v380
        %389 = vrot.lane.b32.xlu0 %v263, 127
        %v390 = vpop.permute.xlu0 %389
        %391 = vrot.lane.b32.xlu0 %v283, 127
        %v392 = vpop.permute.xlu0 %391
        %vm393 = vcmp.lt.s32.totalorder %v232, 127
        %v394 = vsel %vm393, %v390, %v392
        %v395 = vsel %vm393, %v392, %v390
        %s396 = scalar_lea.vmem %s1, 24
        %v397 = vld [vmem:[%s396] sm:$0xff]
        %v398 = vld [vmem:[%s396 + $0x8] sm:$0xff]
        %v399 = vld [vmem:[%s396 + $0x10] sm:$0xff]
        %v401 = vsel %vm284, %v397, 0
        %v404 = vsel %vm284, %v398, 0
        %v407 = vsel %vm284, %v399, 0
        %v410 = vsel %vm294, %v394, 0
        %v413 = vsel %vm294, %v395, 0
        %415 = vmatprep.subr.mxu0 0.0
        %416 = vmatpush1.msra.mxu0 0.0
        %417 = vmatprep.subr.mxu0 0.0
        %418 = vmatpush1.msra.mxu0 0.0
        %419 = vmatprep.subr.mxu0 0.0
        %420 = vmatpush1.msra.mxu0 0.0
        %421 = vmatprep.subr.mxu0 0.0
        %422 = vmatpush1.msra.mxu0 0.0
        %423 = vmatprep.subr.mxu0 0.0
        %424 = vmatpush1.msra.mxu0 0.0
        %425 = vmatprep.subr.mxu0 0.0
        %426 = vmatpush1.msra.mxu0 0.0
        %427 = vmatprep.subr.mxu0 0.0
        %428 = vmatpush1.msra.mxu0 0.0
        %429 = vmatprep.subr.mxu0 0.0
        %430 = vmatpush1.msra.mxu0 0.0
        %431 = vmatprep.subr.mxu0 0.0
        %432 = vmatpush1.msra.mxu0 0.0
        %433 = vmatprep.subr.mxu0 0.0
        %434 = vmatpush1.msra.mxu0 0.0
        %435 = vmatprep.subr.mxu0 0.0
        %436 = vmatpush1.msra.mxu0 0.0
        %437 = vmatprep.subr.mxu0 0.0
        %438 = vmatpush1.msra.mxu0 0.0
        %439 = vmatprep.subr.mxu0 0.0
        %440 = vmatpush1.msra.mxu0 0.0
        %441 = vmatprep.subr.mxu0 0.0
        %442 = vmatpush1.msra.mxu0 0.0
        %443 = vmatprep.subr.mxu0 0.0
        %444 = vmatpush1.msra.mxu0 0.0
        %445 = vmatprep.subr.mxu0 %v413
        %446 = vmatpush1.msra.mxu0 %v410
        %447 = vmatprep.subr.mxu0 0.0
        %448 = vmatpush2.msra.mxu0 0.0
        %449 = vmatprep.subr.mxu0 0.0
        %450 = vmatpush2.msra.mxu0 0.0
        %451 = vmatprep.subr.mxu0 0.0
        %452 = vmatpush2.msra.mxu0 0.0
        %453 = vmatprep.subr.mxu0 0.0
        %454 = vmatpush2.msra.mxu0 0.0
        %455 = vmatprep.subr.mxu0 0.0
        %456 = vmatpush2.msra.mxu0 0.0
        %457 = vmatprep.subr.mxu0 0.0
        %458 = vmatpush2.msra.mxu0 0.0
        %459 = vmatprep.subr.mxu0 0.0
        %460 = vmatpush2.msra.mxu0 0.0
        %461 = vmatprep.subr.mxu0 0.0
        %462 = vmatpush2.msra.mxu0 0.0
        %463 = vmatprep.subr.mxu0 0.0
        %464 = vmatpush2.msra.mxu0 0.0
        %465 = vmatprep.subr.mxu0 0.0
        %466 = vmatpush2.msra.mxu0 0.0
        %467 = vmatprep.subr.mxu0 0.0
        %468 = vmatpush2.msra.mxu0 0.0
        %469 = vmatprep.subr.mxu0 0.0
        %470 = vmatpush2.msra.mxu0 0.0
        %471 = vmatprep.subr.mxu0 0.0
        %472 = vmatpush2.msra.mxu0 0.0
        %473 = vmatprep.subr.mxu0 0.0
        %474 = vmatpush2.msra.mxu0 0.0
        %475 = vmatprep.subr.mxu0 0.0
        %476 = vmatpush2.msra.mxu0 0.0
        %477 = vmatprep.subr.mxu0 0.0
        %478 = vmatpush2.msra.mxu0 0.0
        %479 = vmatprep.mubr.f32.mxu0 0.0
        %480 = vmatmul.mubr.f32.gmra.mxu0 %v401
        %v481 = vpop.f32.mrf.mxu0
        %v482 = vadd.f32 0.0, %v481
        %v483 = vpop.f32.mrf.mxu0
        %v484 = vadd.f32 0.0, %v483
        %485 = vmatprep.mubr.f32.mxu0 0.0
        %486 = vmatmul.mubr.f32.gmra.mxu0 %v404
        %v487 = vpop.f32.mrf.mxu0
        %v488 = vadd.f32 0.0, %v487
        %v489 = vpop.f32.mrf.mxu0
        %v490 = vadd.f32 0.0, %v489
        %491 = vmatprep.mubr.f32.mxu0 0.0
        %492 = vmatmul.mubr.f32.gmra.mxu0 %v407
        %v493 = vpop.f32.mrf.mxu0
        %v494 = vadd.f32 0.0, %v493
        %v495 = vpop.f32.mrf.mxu0
        %v496 = vadd.f32 0.0, %v495
        %497 = vdwg.mxu0
        %v498 = vadd.f32 %v382, %v482
        %v499 = vadd.f32 %v383, %v484
        %v500 = vadd.f32 %v384, %v488
        %v501 = vadd.f32 %v385, %v490
        %v502 = vadd.f32 %v386, %v494
        %v503 = vadd.f32 %v387, %v496
        %504 = vrot.lane.b32.xlu0 %v263, 126
        %v505 = vpop.permute.xlu0 %504
        %506 = vrot.lane.b32.xlu0 %v283, 126
        %v507 = vpop.permute.xlu0 %506
        %vm508 = vcmp.lt.s32.totalorder %v232, 126
        %v509 = vsel %vm508, %v505, %v507
        %v510 = vsel %vm508, %v507, %v505
        %s511 = scalar_lea.vmem %s1, 48
        %v512 = vld [vmem:[%s511] sm:$0xff]
        %v513 = vld [vmem:[%s511 + $0x8] sm:$0xff]
        %v514 = vld [vmem:[%s511 + $0x10] sm:$0xff]
        %v516 = vsel %vm284, %v512, 0
        %v519 = vsel %vm284, %v513, 0
        %v522 = vsel %vm284, %v514, 0
        %v525 = vsel %vm294, %v509, 0
        %v528 = vsel %vm294, %v510, 0
        %530 = vmatprep.subr.mxu0 0.0
        %531 = vmatpush1.msra.mxu0 0.0
        %532 = vmatprep.subr.mxu0 0.0
        %533 = vmatpush1.msra.mxu0 0.0
        %534 = vmatprep.subr.mxu0 0.0
        %535 = vmatpush1.msra.mxu0 0.0
        %536 = vmatprep.subr.mxu0 0.0
        %537 = vmatpush1.msra.mxu0 0.0
        %538 = vmatprep.subr.mxu0 0.0
        %539 = vmatpush1.msra.mxu0 0.0
        %540 = vmatprep.subr.mxu0 0.0
        %541 = vmatpush1.msra.mxu0 0.0
        %542 = vmatprep.subr.mxu0 0.0
        %543 = vmatpush1.msra.mxu0 0.0
        %544 = vmatprep.subr.mxu0 0.0
        %545 = vmatpush1.msra.mxu0 0.0
        %546 = vmatprep.subr.mxu0 0.0
        %547 = vmatpush1.msra.mxu0 0.0
        %548 = vmatprep.subr.mxu0 0.0
        %549 = vmatpush1.msra.mxu0 0.0
        %550 = vmatprep.subr.mxu0 0.0
        %551 = vmatpush1.msra.mxu0 0.0
        %552 = vmatprep.subr.mxu0 0.0
        %553 = vmatpush1.msra.mxu0 0.0
        %554 = vmatprep.subr.mxu0 0.0
        %555 = vmatpush1.msra.mxu0 0.0
        %556 = vmatprep.subr.mxu0 0.0
        %557 = vmatpush1.msra.mxu0 0.0
        %558 = vmatprep.subr.mxu0 0.0
        %559 = vmatpush1.msra.mxu0 0.0
        %560 = vmatprep.subr.mxu0 %v528
        %561 = vmatpush1.msra.mxu0 %v525
        %562 = vmatprep.subr.mxu0 0.0
        %563 = vmatpush2.msra.mxu0 0.0
        %564 = vmatprep.subr.mxu0 0.0
        %565 = vmatpush2.msra.mxu0 0.0
        %566 = vmatprep.subr.mxu0 0.0
        %567 = vmatpush2.msra.mxu0 0.0
        %568 = vmatprep.subr.mxu0 0.0
        %569 = vmatpush2.msra.mxu0 0.0
        %570 = vmatprep.subr.mxu0 0.0
        %571 = vmatpush2.msra.mxu0 0.0
        %572 = vmatprep.subr.mxu0 0.0
        %573 = vmatpush2.msra.mxu0 0.0
        %574 = vmatprep.subr.mxu0 0.0
        %575 = vmatpush2.msra.mxu0 0.0
        %576 = vmatprep.subr.mxu0 0.0
        %577 = vmatpush2.msra.mxu0 0.0
        %578 = vmatprep.subr.mxu0 0.0
        %579 = vmatpush2.msra.mxu0 0.0
        %580 = vmatprep.subr.mxu0 0.0
        %581 = vmatpush2.msra.mxu0 0.0
        %582 = vmatprep.subr.mxu0 0.0
        %583 = vmatpush2.msra.mxu0 0.0
        %584 = vmatprep.subr.mxu0 0.0
        %585 = vmatpush2.msra.mxu0 0.0
        %586 = vmatprep.subr.mxu0 0.0
        %587 = vmatpush2.msra.mxu0 0.0
        %588 = vmatprep.subr.mxu0 0.0
        %589 = vmatpush2.msra.mxu0 0.0
        %590 = vmatprep.subr.mxu0 0.0
        %591 = vmatpush2.msra.mxu0 0.0
        %592 = vmatprep.subr.mxu0 0.0
        %593 = vmatpush2.msra.mxu0 0.0
        %594 = vmatprep.mubr.f32.mxu0 0.0
        %595 = vmatmul.mubr.f32.gmra.mxu0 %v516
        %v596 = vpop.f32.mrf.mxu0
        %v597 = vadd.f32 0.0, %v596
        %v598 = vpop.f32.mrf.mxu0
        %v599 = vadd.f32 0.0, %v598
        %600 = vmatprep.mubr.f32.mxu0 0.0
        %601 = vmatmul.mubr.f32.gmra.mxu0 %v519
        %v602 = vpop.f32.mrf.mxu0
        %v603 = vadd.f32 0.0, %v602
        %v604 = vpop.f32.mrf.mxu0
        %v605 = vadd.f32 0.0, %v604
        %606 = vmatprep.mubr.f32.mxu0 0.0
        %607 = vmatmul.mubr.f32.gmra.mxu0 %v522
        %v608 = vpop.f32.mrf.mxu0
        %v609 = vadd.f32 0.0, %v608
        %v610 = vpop.f32.mrf.mxu0
        %v611 = vadd.f32 0.0, %v610
        %612 = vdwg.mxu0
        %v613 = vadd.f32 %v498, %v597
        %v614 = vadd.f32 %v499, %v599
        %v615 = vadd.f32 %v500, %v603
        %v616 = vadd.f32 %v501, %v605
        %v617 = vadd.f32 %v502, %v609
        %v618 = vadd.f32 %v503, %v611
        %619 = vrot.lane.b32.xlu0 %v263, 112
        %v620 = vpop.permute.xlu0 %619
        %621 = vrot.lane.b32.xlu0 %v283, 112
        %v622 = vpop.permute.xlu0 %621
        %vm623 = vcmp.lt.s32.totalorder %v232, 112
        %v624 = vsel %vm623, %v620, %v622
        %v625 = vsel %vm623, %v622, %v620
        %s626 = scalar_lea.vmem %s1, 72
        %v627 = vld [vmem:[%s626] sm:$0xff]
        %v628 = vld [vmem:[%s626 + $0x8] sm:$0xff]
        %v629 = vld [vmem:[%s626 + $0x10] sm:$0xff]
        %v631 = vsel %vm284, %v627, 0
        %v634 = vsel %vm284, %v628, 0
        %v637 = vsel %vm284, %v629, 0
        %v640 = vsel %vm294, %v624, 0
        %v643 = vsel %vm294, %v625, 0
        %645 = vmatprep.subr.mxu0 0.0
        %646 = vmatpush1.msra.mxu0 0.0
        %647 = vmatprep.subr.mxu0 0.0
        %648 = vmatpush1.msra.mxu0 0.0
        %649 = vmatprep.subr.mxu0 0.0
        %650 = vmatpush1.msra.mxu0 0.0
        %651 = vmatprep.subr.mxu0 0.0
        %652 = vmatpush1.msra.mxu0 0.0
        %653 = vmatprep.subr.mxu0 0.0
        %654 = vmatpush1.msra.mxu0 0.0
        %655 = vmatprep.subr.mxu0 0.0
        %656 = vmatpush1.msra.mxu0 0.0
        %657 = vmatprep.subr.mxu0 0.0
        %658 = vmatpush1.msra.mxu0 0.0
        %659 = vmatprep.subr.mxu0 0.0
        %660 = vmatpush1.msra.mxu0 0.0
        %661 = vmatprep.subr.mxu0 0.0
        %662 = vmatpush1.msra.mxu0 0.0
        %663 = vmatprep.subr.mxu0 0.0
        %664 = vmatpush1.msra.mxu0 0.0
        %665 = vmatprep.subr.mxu0 0.0
        %666 = vmatpush1.msra.mxu0 0.0
        %667 = vmatprep.subr.mxu0 0.0
        %668 = vmatpush1.msra.mxu0 0.0
        %669 = vmatprep.subr.mxu0 0.0
        %670 = vmatpush1.msra.mxu0 0.0
        %671 = vmatprep.subr.mxu0 0.0
        %672 = vmatpush1.msra.mxu0 0.0
        %673 = vmatprep.subr.mxu0 0.0
        %674 = vmatpush1.msra.mxu0 0.0
        %675 = vmatprep.subr.mxu0 %v643
        %676 = vmatpush1.msra.mxu0 %v640
        %677 = vmatprep.subr.mxu0 0.0
        %678 = vmatpush2.msra.mxu0 0.0
        %679 = vmatprep.subr.mxu0 0.0
        %680 = vmatpush2.msra.mxu0 0.0
        %681 = vmatprep.subr.mxu0 0.0
        %682 = vmatpush2.msra.mxu0 0.0
        %683 = vmatprep.subr.mxu0 0.0
        %684 = vmatpush2.msra.mxu0 0.0
        %685 = vmatprep.subr.mxu0 0.0
        %686 = vmatpush2.msra.mxu0 0.0
        %687 = vmatprep.subr.mxu0 0.0
        %688 = vmatpush2.msra.mxu0 0.0
        %689 = vmatprep.subr.mxu0 0.0
        %690 = vmatpush2.msra.mxu0 0.0
        %691 = vmatprep.subr.mxu0 0.0
        %692 = vmatpush2.msra.mxu0 0.0
        %693 = vmatprep.subr.mxu0 0.0
        %694 = vmatpush2.msra.mxu0 0.0
        %695 = vmatprep.subr.mxu0 0.0
        %696 = vmatpush2.msra.mxu0 0.0
        %697 = vmatprep.subr.mxu0 0.0
        %698 = vmatpush2.msra.mxu0 0.0
        %699 = vmatprep.subr.mxu0 0.0
        %700 = vmatpush2.msra.mxu0 0.0
        %701 = vmatprep.subr.mxu0 0.0
        %702 = vmatpush2.msra.mxu0 0.0
        %703 = vmatprep.subr.mxu0 0.0
        %704 = vmatpush2.msra.mxu0 0.0
        %705 = vmatprep.subr.mxu0 0.0
        %706 = vmatpush2.msra.mxu0 0.0
        %707 = vmatprep.subr.mxu0 0.0
        %708 = vmatpush2.msra.mxu0 0.0
        %709 = vmatprep.mubr.f32.mxu0 0.0
        %710 = vmatmul.mubr.f32.gmra.mxu0 %v631
        %v711 = vpop.f32.mrf.mxu0
        %v712 = vadd.f32 0.0, %v711
        %v713 = vpop.f32.mrf.mxu0
        %v714 = vadd.f32 0.0, %v713
        %715 = vmatprep.mubr.f32.mxu0 0.0
        %716 = vmatmul.mubr.f32.gmra.mxu0 %v634
        %v717 = vpop.f32.mrf.mxu0
        %v718 = vadd.f32 0.0, %v717
        %v719 = vpop.f32.mrf.mxu0
        %v720 = vadd.f32 0.0, %v719
        %721 = vmatprep.mubr.f32.mxu0 0.0
        %722 = vmatmul.mubr.f32.gmra.mxu0 %v637
        %v723 = vpop.f32.mrf.mxu0
        %v724 = vadd.f32 0.0, %v723
        %v725 = vpop.f32.mrf.mxu0
        %v726 = vadd.f32 0.0, %v725
        %727 = vdwg.mxu0
        %v728 = vadd.f32 %v613, %v712
        %v729 = vadd.f32 %v614, %v714
        %v730 = vadd.f32 %v615, %v718
        %v731 = vadd.f32 %v616, %v720
        %v732 = vadd.f32 %v617, %v724
        %v733 = vadd.f32 %v618, %v726
        %734 = vrot.lane.b32.xlu0 %v263, 111
        %v735 = vpop.permute.xlu0 %734
        %736 = vrot.lane.b32.xlu0 %v283, 111
        %v737 = vpop.permute.xlu0 %736
        %vm738 = vcmp.lt.s32.totalorder %v232, 111
        %v739 = vsel %vm738, %v735, %v737
        %v740 = vsel %vm738, %v737, %v735
        %s741 = scalar_lea.vmem %s1, 96
        %v742 = vld [vmem:[%s741] sm:$0xff]
        %v743 = vld [vmem:[%s741 + $0x8] sm:$0xff]
        %v744 = vld [vmem:[%s741 + $0x10] sm:$0xff]
        %v746 = vsel %vm284, %v742, 0
        %v749 = vsel %vm284, %v743, 0
        %v752 = vsel %vm284, %v744, 0
        %v755 = vsel %vm294, %v739, 0
        %v758 = vsel %vm294, %v740, 0
        %760 = vmatprep.subr.mxu0 0.0
        %761 = vmatpush1.msra.mxu0 0.0
        %762 = vmatprep.subr.mxu0 0.0
        %763 = vmatpush1.msra.mxu0 0.0
        %764 = vmatprep.subr.mxu0 0.0
        %765 = vmatpush1.msra.mxu0 0.0
        %766 = vmatprep.subr.mxu0 0.0
        %767 = vmatpush1.msra.mxu0 0.0
        %768 = vmatprep.subr.mxu0 0.0
        %769 = vmatpush1.msra.mxu0 0.0
        %770 = vmatprep.subr.mxu0 0.0
        %771 = vmatpush1.msra.mxu0 0.0
        %772 = vmatprep.subr.mxu0 0.0
        %773 = vmatpush1.msra.mxu0 0.0
        %774 = vmatprep.subr.mxu0 0.0
        %775 = vmatpush1.msra.mxu0 0.0
        %776 = vmatprep.subr.mxu0 0.0
        %777 = vmatpush1.msra.mxu0 0.0
        %778 = vmatprep.subr.mxu0 0.0
        %779 = vmatpush1.msra.mxu0 0.0
        %780 = vmatprep.subr.mxu0 0.0
        %781 = vmatpush1.msra.mxu0 0.0
        %782 = vmatprep.subr.mxu0 0.0
        %783 = vmatpush1.msra.mxu0 0.0
        %784 = vmatprep.subr.mxu0 0.0
        %785 = vmatpush1.msra.mxu0 0.0
        %786 = vmatprep.subr.mxu0 0.0
        %787 = vmatpush1.msra.mxu0 0.0
        %788 = vmatprep.subr.mxu0 0.0
        %789 = vmatpush1.msra.mxu0 0.0
        %790 = vmatprep.subr.mxu0 %v758
        %791 = vmatpush1.msra.mxu0 %v755
        %792 = vmatprep.subr.mxu0 0.0
        %793 = vmatpush2.msra.mxu0 0.0
        %794 = vmatprep.subr.mxu0 0.0
        %795 = vmatpush2.msra.mxu0 0.0
        %796 = vmatprep.subr.mxu0 0.0
        %797 = vmatpush2.msra.mxu0 0.0
        %798 = vmatprep.subr.mxu0 0.0
        %799 = vmatpush2.msra.mxu0 0.0
        %800 = vmatprep.subr.mxu0 0.0
        %801 = vmatpush2.msra.mxu0 0.0
        %802 = vmatprep.subr.mxu0 0.0
        %803 = vmatpush2.msra.mxu0 0.0
        %804 = vmatprep.subr.mxu0 0.0
        %805 = vmatpush2.msra.mxu0 0.0
        %806 = vmatprep.subr.mxu0 0.0
        %807 = vmatpush2.msra.mxu0 0.0
        %808 = vmatprep.subr.mxu0 0.0
        %809 = vmatpush2.msra.mxu0 0.0
        %810 = vmatprep.subr.mxu0 0.0
        %811 = vmatpush2.msra.mxu0 0.0
        %812 = vmatprep.subr.mxu0 0.0
        %813 = vmatpush2.msra.mxu0 0.0
        %814 = vmatprep.subr.mxu0 0.0
        %815 = vmatpush2.msra.mxu0 0.0
        %816 = vmatprep.subr.mxu0 0.0
        %817 = vmatpush2.msra.mxu0 0.0
        %818 = vmatprep.subr.mxu0 0.0
        %819 = vmatpush2.msra.mxu0 0.0
        %820 = vmatprep.subr.mxu0 0.0
        %821 = vmatpush2.msra.mxu0 0.0
        %822 = vmatprep.subr.mxu0 0.0
        %823 = vmatpush2.msra.mxu0 0.0
        %824 = vmatprep.mubr.f32.mxu0 0.0
        %825 = vmatmul.mubr.f32.gmra.mxu0 %v746
        %v826 = vpop.f32.mrf.mxu0
        %v827 = vadd.f32 0.0, %v826
        %v828 = vpop.f32.mrf.mxu0
        %v829 = vadd.f32 0.0, %v828
        %830 = vmatprep.mubr.f32.mxu0 0.0
        %831 = vmatmul.mubr.f32.gmra.mxu0 %v749
        %v832 = vpop.f32.mrf.mxu0
        %v833 = vadd.f32 0.0, %v832
        %v834 = vpop.f32.mrf.mxu0
        %v835 = vadd.f32 0.0, %v834
        %836 = vmatprep.mubr.f32.mxu0 0.0
        %837 = vmatmul.mubr.f32.gmra.mxu0 %v752
        %v838 = vpop.f32.mrf.mxu0
        %v839 = vadd.f32 0.0, %v838
        %v840 = vpop.f32.mrf.mxu0
        %v841 = vadd.f32 0.0, %v840
        %842 = vdwg.mxu0
        %v843 = vadd.f32 %v728, %v827
        %v844 = vadd.f32 %v729, %v829
        %v845 = vadd.f32 %v730, %v833
        %v846 = vadd.f32 %v731, %v835
        %v847 = vadd.f32 %v732, %v839
        %v848 = vadd.f32 %v733, %v841
        %849 = vrot.lane.b32.xlu0 %v263, 110
        %v850 = vpop.permute.xlu0 %849
        %851 = vrot.lane.b32.xlu0 %v283, 110
        %v852 = vpop.permute.xlu0 %851
        %vm853 = vcmp.lt.s32.totalorder %v232, 110
        %v854 = vsel %vm853, %v850, %v852
        %v855 = vsel %vm853, %v852, %v850
        %s856 = scalar_lea.vmem %s1, 120
        %v857 = vld [vmem:[%s856] sm:$0xff]
        %v858 = vld [vmem:[%s856 + $0x8] sm:$0xff]
        %v859 = vld [vmem:[%s856 + $0x10] sm:$0xff]
        %v861 = vsel %vm284, %v857, 0
        %v864 = vsel %vm284, %v858, 0
        %v867 = vsel %vm284, %v859, 0
        %v870 = vsel %vm294, %v854, 0
        %v873 = vsel %vm294, %v855, 0
        %875 = vmatprep.subr.mxu0 0.0
        %876 = vmatpush1.msra.mxu0 0.0
        %877 = vmatprep.subr.mxu0 0.0
        %878 = vmatpush1.msra.mxu0 0.0
        %879 = vmatprep.subr.mxu0 0.0
        %880 = vmatpush1.msra.mxu0 0.0
        %881 = vmatprep.subr.mxu0 0.0
        %882 = vmatpush1.msra.mxu0 0.0
        %883 = vmatprep.subr.mxu0 0.0
        %884 = vmatpush1.msra.mxu0 0.0
        %885 = vmatprep.subr.mxu0 0.0
        %886 = vmatpush1.msra.mxu0 0.0
        %887 = vmatprep.subr.mxu0 0.0
        %888 = vmatpush1.msra.mxu0 0.0
        %889 = vmatprep.subr.mxu0 0.0
        %890 = vmatpush1.msra.mxu0 0.0
        %891 = vmatprep.subr.mxu0 0.0
        %892 = vmatpush1.msra.mxu0 0.0
        %893 = vmatprep.subr.mxu0 0.0
        %894 = vmatpush1.msra.mxu0 0.0
        %895 = vmatprep.subr.mxu0 0.0
        %896 = vmatpush1.msra.mxu0 0.0
        %897 = vmatprep.subr.mxu0 0.0
        %898 = vmatpush1.msra.mxu0 0.0
        %899 = vmatprep.subr.mxu0 0.0
        %900 = vmatpush1.msra.mxu0 0.0
        %901 = vmatprep.subr.mxu0 0.0
        %902 = vmatpush1.msra.mxu0 0.0
        %903 = vmatprep.subr.mxu0 0.0
        %904 = vmatpush1.msra.mxu0 0.0
        %905 = vmatprep.subr.mxu0 %v873
        %906 = vmatpush1.msra.mxu0 %v870
        %907 = vmatprep.subr.mxu0 0.0
        %908 = vmatpush2.msra.mxu0 0.0
        %909 = vmatprep.subr.mxu0 0.0
        %910 = vmatpush2.msra.mxu0 0.0
        %911 = vmatprep.subr.mxu0 0.0
        %912 = vmatpush2.msra.mxu0 0.0
        %913 = vmatprep.subr.mxu0 0.0
        %914 = vmatpush2.msra.mxu0 0.0
        %915 = vmatprep.subr.mxu0 0.0
        %916 = vmatpush2.msra.mxu0 0.0
        %917 = vmatprep.subr.mxu0 0.0
        %918 = vmatpush2.msra.mxu0 0.0
        %919 = vmatprep.subr.mxu0 0.0
        %920 = vmatpush2.msra.mxu0 0.0
        %921 = vmatprep.subr.mxu0 0.0
        %922 = vmatpush2.msra.mxu0 0.0
        %923 = vmatprep.subr.mxu0 0.0
        %924 = vmatpush2.msra.mxu0 0.0
        %925 = vmatprep.subr.mxu0 0.0
        %926 = vmatpush2.msra.mxu0 0.0
        %927 = vmatprep.subr.mxu0 0.0
        %928 = vmatpush2.msra.mxu0 0.0
        %929 = vmatprep.subr.mxu0 0.0
        %930 = vmatpush2.msra.mxu0 0.0
        %931 = vmatprep.subr.mxu0 0.0
        %932 = vmatpush2.msra.mxu0 0.0
        %933 = vmatprep.subr.mxu0 0.0
        %934 = vmatpush2.msra.mxu0 0.0
        %935 = vmatprep.subr.mxu0 0.0
        %936 = vmatpush2.msra.mxu0 0.0
        %937 = vmatprep.subr.mxu0 0.0
        %938 = vmatpush2.msra.mxu0 0.0
        %939 = vmatprep.mubr.f32.mxu0 0.0
        %940 = vmatmul.mubr.f32.gmra.mxu0 %v861
        %v941 = vpop.f32.mrf.mxu0
        %v942 = vadd.f32 0.0, %v941
        %v943 = vpop.f32.mrf.mxu0
        %v944 = vadd.f32 0.0, %v943
        %945 = vmatprep.mubr.f32.mxu0 0.0
        %946 = vmatmul.mubr.f32.gmra.mxu0 %v864
        %v947 = vpop.f32.mrf.mxu0
        %v948 = vadd.f32 0.0, %v947
        %v949 = vpop.f32.mrf.mxu0
        %v950 = vadd.f32 0.0, %v949
        %951 = vmatprep.mubr.f32.mxu0 0.0
        %952 = vmatmul.mubr.f32.gmra.mxu0 %v867
        %v953 = vpop.f32.mrf.mxu0
        %v954 = vadd.f32 0.0, %v953
        %v955 = vpop.f32.mrf.mxu0
        %v956 = vadd.f32 0.0, %v955
        %957 = vdwg.mxu0
        %v958 = vadd.f32 %v843, %v942
        %v959 = vadd.f32 %v844, %v944
        %v960 = vadd.f32 %v845, %v948
        %v961 = vadd.f32 %v846, %v950
        %v962 = vadd.f32 %v847, %v954
        %v963 = vadd.f32 %v848, %v956
        %964 = vrot.lane.b32.xlu0 %v263, 96
        %v965 = vpop.permute.xlu0 %964
        %966 = vrot.lane.b32.xlu0 %v283, 96
        %v967 = vpop.permute.xlu0 %966
        %vm968 = vcmp.lt.s32.totalorder %v232, 96
        %v969 = vsel %vm968, %v965, %v967
        %v970 = vsel %vm968, %v967, %v965
        %s971 = scalar_lea.vmem %s1, 144
        %v972 = vld [vmem:[%s971] sm:$0xff]
        %v973 = vld [vmem:[%s971 + $0x8] sm:$0xff]
        %v974 = vld [vmem:[%s971 + $0x10] sm:$0xff]
        %v976 = vsel %vm284, %v972, 0
        %v979 = vsel %vm284, %v973, 0
        %v982 = vsel %vm284, %v974, 0
        %v985 = vsel %vm294, %v969, 0
        %v988 = vsel %vm294, %v970, 0
        %990 = vmatprep.subr.mxu0 0.0
        %991 = vmatpush1.msra.mxu0 0.0
        %992 = vmatprep.subr.mxu0 0.0
        %993 = vmatpush1.msra.mxu0 0.0
        %994 = vmatprep.subr.mxu0 0.0
        %995 = vmatpush1.msra.mxu0 0.0
        %996 = vmatprep.subr.mxu0 0.0
        %997 = vmatpush1.msra.mxu0 0.0
        %998 = vmatprep.subr.mxu0 0.0
        %999 = vmatpush1.msra.mxu0 0.0
        %1000 = vmatprep.subr.mxu0 0.0
        %1001 = vmatpush1.msra.mxu0 0.0
        %1002 = vmatprep.subr.mxu0 0.0
        %1003 = vmatpush1.msra.mxu0 0.0
        %1004 = vmatprep.subr.mxu0 0.0
        %1005 = vmatpush1.msra.mxu0 0.0
        %1006 = vmatprep.subr.mxu0 0.0
        %1007 = vmatpush1.msra.mxu0 0.0
        %1008 = vmatprep.subr.mxu0 0.0
        %1009 = vmatpush1.msra.mxu0 0.0
        %1010 = vmatprep.subr.mxu0 0.0
        %1011 = vmatpush1.msra.mxu0 0.0
        %1012 = vmatprep.subr.mxu0 0.0
        %1013 = vmatpush1.msra.mxu0 0.0
        %1014 = vmatprep.subr.mxu0 0.0
        %1015 = vmatpush1.msra.mxu0 0.0
        %1016 = vmatprep.subr.mxu0 0.0
        %1017 = vmatpush1.msra.mxu0 0.0
        %1018 = vmatprep.subr.mxu0 0.0
        %1019 = vmatpush1.msra.mxu0 0.0
        %1020 = vmatprep.subr.mxu0 %v988
        %1021 = vmatpush1.msra.mxu0 %v985
        %1022 = vmatprep.subr.mxu0 0.0
        %1023 = vmatpush2.msra.mxu0 0.0
        %1024 = vmatprep.subr.mxu0 0.0
        %1025 = vmatpush2.msra.mxu0 0.0
        %1026 = vmatprep.subr.mxu0 0.0
        %1027 = vmatpush2.msra.mxu0 0.0
        %1028 = vmatprep.subr.mxu0 0.0
        %1029 = vmatpush2.msra.mxu0 0.0
        %1030 = vmatprep.subr.mxu0 0.0
        %1031 = vmatpush2.msra.mxu0 0.0
        %1032 = vmatprep.subr.mxu0 0.0
        %1033 = vmatpush2.msra.mxu0 0.0
        %1034 = vmatprep.subr.mxu0 0.0
        %1035 = vmatpush2.msra.mxu0 0.0
        %1036 = vmatprep.subr.mxu0 0.0
        %1037 = vmatpush2.msra.mxu0 0.0
        %1038 = vmatprep.subr.mxu0 0.0
        %1039 = vmatpush2.msra.mxu0 0.0
        %1040 = vmatprep.subr.mxu0 0.0
        %1041 = vmatpush2.msra.mxu0 0.0
        %1042 = vmatprep.subr.mxu0 0.0
        %1043 = vmatpush2.msra.mxu0 0.0
        %1044 = vmatprep.subr.mxu0 0.0
        %1045 = vmatpush2.msra.mxu0 0.0
        %1046 = vmatprep.subr.mxu0 0.0
        %1047 = vmatpush2.msra.mxu0 0.0
        %1048 = vmatprep.subr.mxu0 0.0
        %1049 = vmatpush2.msra.mxu0 0.0
        %1050 = vmatprep.subr.mxu0 0.0
        %1051 = vmatpush2.msra.mxu0 0.0
        %1052 = vmatprep.subr.mxu0 0.0
        %1053 = vmatpush2.msra.mxu0 0.0
        %1054 = vmatprep.mubr.f32.mxu0 0.0
        %1055 = vmatmul.mubr.f32.gmra.mxu0 %v976
        %v1056 = vpop.f32.mrf.mxu0
        %v1057 = vadd.f32 0.0, %v1056
        %v1058 = vpop.f32.mrf.mxu0
        %v1059 = vadd.f32 0.0, %v1058
        %1060 = vmatprep.mubr.f32.mxu0 0.0
        %1061 = vmatmul.mubr.f32.gmra.mxu0 %v979
        %v1062 = vpop.f32.mrf.mxu0
        %v1063 = vadd.f32 0.0, %v1062
        %v1064 = vpop.f32.mrf.mxu0
        %v1065 = vadd.f32 0.0, %v1064
        %1066 = vmatprep.mubr.f32.mxu0 0.0
        %1067 = vmatmul.mubr.f32.gmra.mxu0 %v982
        %v1068 = vpop.f32.mrf.mxu0
        %v1069 = vadd.f32 0.0, %v1068
        %v1070 = vpop.f32.mrf.mxu0
        %v1071 = vadd.f32 0.0, %v1070
        %1072 = vdwg.mxu0
        %v1073 = vadd.f32 %v958, %v1057
        %v1074 = vadd.f32 %v959, %v1059
        %v1075 = vadd.f32 %v960, %v1063
        %v1076 = vadd.f32 %v961, %v1065
        %v1077 = vadd.f32 %v962, %v1069
        %v1078 = vadd.f32 %v963, %v1071
        %1079 = vrot.lane.b32.xlu0 %v263, 95
        %v1080 = vpop.permute.xlu0 %1079
        %1081 = vrot.lane.b32.xlu0 %v283, 95
        %v1082 = vpop.permute.xlu0 %1081
        %vm1083 = vcmp.lt.s32.totalorder %v232, 95
        %v1084 = vsel %vm1083, %v1080, %v1082
        %v1085 = vsel %vm1083, %v1082, %v1080
        %s1086 = scalar_lea.vmem %s1, 168
        %v1087 = vld [vmem:[%s1086] sm:$0xff]
        %v1088 = vld [vmem:[%s1086 + $0x8] sm:$0xff]
        %v1089 = vld [vmem:[%s1086 + $0x10] sm:$0xff]
        %v1091 = vsel %vm284, %v1087, 0
        %v1094 = vsel %vm284, %v1088, 0
        %v1097 = vsel %vm284, %v1089, 0
        %v1100 = vsel %vm294, %v1084, 0
        %v1103 = vsel %vm294, %v1085, 0
        %1105 = vmatprep.subr.mxu0 0.0
        %1106 = vmatpush1.msra.mxu0 0.0
        %1107 = vmatprep.subr.mxu0 0.0
        %1108 = vmatpush1.msra.mxu0 0.0
        %1109 = vmatprep.subr.mxu0 0.0
        %1110 = vmatpush1.msra.mxu0 0.0
        %1111 = vmatprep.subr.mxu0 0.0
        %1112 = vmatpush1.msra.mxu0 0.0
        %1113 = vmatprep.subr.mxu0 0.0
        %1114 = vmatpush1.msra.mxu0 0.0
        %1115 = vmatprep.subr.mxu0 0.0
        %1116 = vmatpush1.msra.mxu0 0.0
        %1117 = vmatprep.subr.mxu0 0.0
        %1118 = vmatpush1.msra.mxu0 0.0
        %1119 = vmatprep.subr.mxu0 0.0
        %1120 = vmatpush1.msra.mxu0 0.0
        %1121 = vmatprep.subr.mxu0 0.0
        %1122 = vmatpush1.msra.mxu0 0.0
        %1123 = vmatprep.subr.mxu0 0.0
        %1124 = vmatpush1.msra.mxu0 0.0
        %1125 = vmatprep.subr.mxu0 0.0
        %1126 = vmatpush1.msra.mxu0 0.0
        %1127 = vmatprep.subr.mxu0 0.0
        %1128 = vmatpush1.msra.mxu0 0.0
        %1129 = vmatprep.subr.mxu0 0.0
        %1130 = vmatpush1.msra.mxu0 0.0
        %1131 = vmatprep.subr.mxu0 0.0
        %1132 = vmatpush1.msra.mxu0 0.0
        %1133 = vmatprep.subr.mxu0 0.0
        %1134 = vmatpush1.msra.mxu0 0.0
        %1135 = vmatprep.subr.mxu0 %v1103
        %1136 = vmatpush1.msra.mxu0 %v1100
        %1137 = vmatprep.subr.mxu0 0.0
        %1138 = vmatpush2.msra.mxu0 0.0
        %1139 = vmatprep.subr.mxu0 0.0
        %1140 = vmatpush2.msra.mxu0 0.0
        %1141 = vmatprep.subr.mxu0 0.0
        %1142 = vmatpush2.msra.mxu0 0.0
        %1143 = vmatprep.subr.mxu0 0.0
        %1144 = vmatpush2.msra.mxu0 0.0
        %1145 = vmatprep.subr.mxu0 0.0
        %1146 = vmatpush2.msra.mxu0 0.0
        %1147 = vmatprep.subr.mxu0 0.0
        %1148 = vmatpush2.msra.mxu0 0.0
        %1149 = vmatprep.subr.mxu0 0.0
        %1150 = vmatpush2.msra.mxu0 0.0
        %1151 = vmatprep.subr.mxu0 0.0
        %1152 = vmatpush2.msra.mxu0 0.0
        %1153 = vmatprep.subr.mxu0 0.0
        %1154 = vmatpush2.msra.mxu0 0.0
        %1155 = vmatprep.subr.mxu0 0.0
        %1156 = vmatpush2.msra.mxu0 0.0
        %1157 = vmatprep.subr.mxu0 0.0
        %1158 = vmatpush2.msra.mxu0 0.0
        %1159 = vmatprep.subr.mxu0 0.0
        %1160 = vmatpush2.msra.mxu0 0.0
        %1161 = vmatprep.subr.mxu0 0.0
        %1162 = vmatpush2.msra.mxu0 0.0
        %1163 = vmatprep.subr.mxu0 0.0
        %1164 = vmatpush2.msra.mxu0 0.0
        %1165 = vmatprep.subr.mxu0 0.0
        %1166 = vmatpush2.msra.mxu0 0.0
        %1167 = vmatprep.subr.mxu0 0.0
        %1168 = vmatpush2.msra.mxu0 0.0
        %1169 = vmatprep.mubr.f32.mxu0 0.0
        %1170 = vmatmul.mubr.f32.gmra.mxu0 %v1091
        %v1171 = vpop.f32.mrf.mxu0
        %v1172 = vadd.f32 0.0, %v1171
        %v1173 = vpop.f32.mrf.mxu0
        %v1174 = vadd.f32 0.0, %v1173
        %1175 = vmatprep.mubr.f32.mxu0 0.0
        %1176 = vmatmul.mubr.f32.gmra.mxu0 %v1094
        %v1177 = vpop.f32.mrf.mxu0
        %v1178 = vadd.f32 0.0, %v1177
        %v1179 = vpop.f32.mrf.mxu0
        %v1180 = vadd.f32 0.0, %v1179
        %1181 = vmatprep.mubr.f32.mxu0 0.0
        %1182 = vmatmul.mubr.f32.gmra.mxu0 %v1097
        %v1183 = vpop.f32.mrf.mxu0
        %v1184 = vadd.f32 0.0, %v1183
        %v1185 = vpop.f32.mrf.mxu0
        %v1186 = vadd.f32 0.0, %v1185
        %1187 = vdwg.mxu0
        %v1188 = vadd.f32 %v1073, %v1172
        %v1189 = vadd.f32 %v1074, %v1174
        %v1190 = vadd.f32 %v1075, %v1178
        %v1191 = vadd.f32 %v1076, %v1180
        %v1192 = vadd.f32 %v1077, %v1184
        %v1193 = vadd.f32 %v1078, %v1186
        %1194 = vrot.lane.b32.xlu0 %v263, 94
        %v1195 = vpop.permute.xlu0 %1194
        %1196 = vrot.lane.b32.xlu0 %v283, 94
        %v1197 = vpop.permute.xlu0 %1196
        %vm1198 = vcmp.lt.s32.totalorder %v232, 94
        %v1199 = vsel %vm1198, %v1195, %v1197
        %v1200 = vsel %vm1198, %v1197, %v1195
        %s1201 = scalar_lea.vmem %s1, 192
        %v1202 = vld [vmem:[%s1201] sm:$0xff]
        %v1203 = vld [vmem:[%s1201 + $0x8] sm:$0xff]
        %v1204 = vld [vmem:[%s1201 + $0x10] sm:$0xff]
        %v1206 = vsel %vm284, %v1202, 0
        %v1209 = vsel %vm284, %v1203, 0
        %v1212 = vsel %vm284, %v1204, 0
        %v1215 = vsel %vm294, %v1199, 0
        %v1218 = vsel %vm294, %v1200, 0
        %1220 = vmatprep.subr.mxu0 0.0
        %1221 = vmatpush1.msra.mxu0 0.0
        %1222 = vmatprep.subr.mxu0 0.0
        %1223 = vmatpush1.msra.mxu0 0.0
        %1224 = vmatprep.subr.mxu0 0.0
        %1225 = vmatpush1.msra.mxu0 0.0
        %1226 = vmatprep.subr.mxu0 0.0
        %1227 = vmatpush1.msra.mxu0 0.0
        %1228 = vmatprep.subr.mxu0 0.0
        %1229 = vmatpush1.msra.mxu0 0.0
        %1230 = vmatprep.subr.mxu0 0.0
        %1231 = vmatpush1.msra.mxu0 0.0
        %1232 = vmatprep.subr.mxu0 0.0
        %1233 = vmatpush1.msra.mxu0 0.0
        %1234 = vmatprep.subr.mxu0 0.0
        %1235 = vmatpush1.msra.mxu0 0.0
        %1236 = vmatprep.subr.mxu0 0.0
        %1237 = vmatpush1.msra.mxu0 0.0
        %1238 = vmatprep.subr.mxu0 0.0
        %1239 = vmatpush1.msra.mxu0 0.0
        %1240 = vmatprep.subr.mxu0 0.0
        %1241 = vmatpush1.msra.mxu0 0.0
        %1242 = vmatprep.subr.mxu0 0.0
        %1243 = vmatpush1.msra.mxu0 0.0
        %1244 = vmatprep.subr.mxu0 0.0
        %1245 = vmatpush1.msra.mxu0 0.0
        %1246 = vmatprep.subr.mxu0 0.0
        %1247 = vmatpush1.msra.mxu0 0.0
        %1248 = vmatprep.subr.mxu0 0.0
        %1249 = vmatpush1.msra.mxu0 0.0
        %1250 = vmatprep.subr.mxu0 %v1218
        %1251 = vmatpush1.msra.mxu0 %v1215
        %1252 = vmatprep.subr.mxu0 0.0
        %1253 = vmatpush2.msra.mxu0 0.0
        %1254 = vmatprep.subr.mxu0 0.0
        %1255 = vmatpush2.msra.mxu0 0.0
        %1256 = vmatprep.subr.mxu0 0.0
        %1257 = vmatpush2.msra.mxu0 0.0
        %1258 = vmatprep.subr.mxu0 0.0
        %1259 = vmatpush2.msra.mxu0 0.0
        %1260 = vmatprep.subr.mxu0 0.0
        %1261 = vmatpush2.msra.mxu0 0.0
        %1262 = vmatprep.subr.mxu0 0.0
        %1263 = vmatpush2.msra.mxu0 0.0
        %1264 = vmatprep.subr.mxu0 0.0
        %1265 = vmatpush2.msra.mxu0 0.0
        %1266 = vmatprep.subr.mxu0 0.0
        %1267 = vmatpush2.msra.mxu0 0.0
        %1268 = vmatprep.subr.mxu0 0.0
        %1269 = vmatpush2.msra.mxu0 0.0
        %1270 = vmatprep.subr.mxu0 0.0
        %1271 = vmatpush2.msra.mxu0 0.0
        %1272 = vmatprep.subr.mxu0 0.0
        %1273 = vmatpush2.msra.mxu0 0.0
        %1274 = vmatprep.subr.mxu0 0.0
        %1275 = vmatpush2.msra.mxu0 0.0
        %1276 = vmatprep.subr.mxu0 0.0
        %1277 = vmatpush2.msra.mxu0 0.0
        %1278 = vmatprep.subr.mxu0 0.0
        %1279 = vmatpush2.msra.mxu0 0.0
        %1280 = vmatprep.subr.mxu0 0.0
        %1281 = vmatpush2.msra.mxu0 0.0
        %1282 = vmatprep.subr.mxu0 0.0
        %1283 = vmatpush2.msra.mxu0 0.0
        %1284 = vmatprep.mubr.f32.mxu0 0.0
        %1285 = vmatmul.mubr.f32.gmra.mxu0 %v1206
        %v1286 = vpop.f32.mrf.mxu0
        %v1287 = vadd.f32 0.0, %v1286
        %v1288 = vpop.f32.mrf.mxu0
        %v1289 = vadd.f32 0.0, %v1288
        %1290 = vmatprep.mubr.f32.mxu0 0.0
        %1291 = vmatmul.mubr.f32.gmra.mxu0 %v1209
        %v1292 = vpop.f32.mrf.mxu0
        %v1293 = vadd.f32 0.0, %v1292
        %v1294 = vpop.f32.mrf.mxu0
        %v1295 = vadd.f32 0.0, %v1294
        %1296 = vmatprep.mubr.f32.mxu0 0.0
        %1297 = vmatmul.mubr.f32.gmra.mxu0 %v1212
        %v1298 = vpop.f32.mrf.mxu0
        %v1299 = vadd.f32 0.0, %v1298
        %v1300 = vpop.f32.mrf.mxu0
        %v1301 = vadd.f32 0.0, %v1300
        %1302 = vdwg.mxu0
        %v1303 = vadd.f32 %v1188, %v1287
        %v1304 = vadd.f32 %v1189, %v1289
        %v1305 = vadd.f32 %v1190, %v1293
        %v1306 = vadd.f32 %v1191, %v1295
        %v1307 = vadd.f32 %v1192, %v1299
        %v1308 = vadd.f32 %v1193, %v1301
        %1309 = vmatprep.subr.mxu0 0.0
        %1310 = vmatpush1.msra.mxu0 %v214
        %1311 = vmatprep.subr.mxu0 0.0
        %1312 = vmatpush1.msra.mxu0 %v213
        %1313 = vmatprep.subr.mxu0 0.0
        %1314 = vmatpush1.msra.mxu0 %v212
        %1315 = vmatprep.subr.mxu0 0.0
        %1316 = vmatpush1.msra.mxu0 %v211
        %1317 = vmatprep.subr.mxu0 0.0
        %1318 = vmatpush1.msra.mxu0 %v210
        %1319 = vmatprep.subr.mxu0 0.0
        %1320 = vmatpush1.msra.mxu0 %v209
        %1321 = vmatprep.subr.mxu0 0.0
        %1322 = vmatpush1.msra.mxu0 %v208
        %1323 = vmatprep.subr.mxu0 0.0
        %1324 = vmatpush1.msra.mxu0 %v207
        %1325 = vmatprep.subr.mxu0 0.0
        %1326 = vmatpush1.msra.mxu0 %v206
        %1327 = vmatprep.subr.mxu0 0.0
        %1328 = vmatpush1.msra.mxu0 %v205
        %1329 = vmatprep.subr.mxu0 0.0
        %1330 = vmatpush1.msra.mxu0 %v204
        %1331 = vmatprep.subr.mxu0 0.0
        %1332 = vmatpush1.msra.mxu0 %v203
        %1333 = vmatprep.subr.mxu0 0.0
        %1334 = vmatpush1.msra.mxu0 %v202
        %1335 = vmatprep.subr.mxu0 0.0
        %1336 = vmatpush1.msra.mxu0 %v201
        %1337 = vmatprep.subr.mxu0 0.0
        %1338 = vmatpush1.msra.mxu0 %v200
        %1339 = vmatprep.subr.mxu0 0.0
        %1340 = vmatpush1.msra.mxu0 %v199
        %1341 = vmatprep.subr.mxu0 0.0
        %1342 = vmatpush2.msra.mxu0 %v230
        %1343 = vmatprep.subr.mxu0 0.0
        %1344 = vmatpush2.msra.mxu0 %v229
        %1345 = vmatprep.subr.mxu0 0.0
        %1346 = vmatpush2.msra.mxu0 %v228
        %1347 = vmatprep.subr.mxu0 0.0
        %1348 = vmatpush2.msra.mxu0 %v227
        %1349 = vmatprep.subr.mxu0 0.0
        %1350 = vmatpush2.msra.mxu0 %v226
        %1351 = vmatprep.subr.mxu0 0.0
        %1352 = vmatpush2.msra.mxu0 %v225
        %1353 = vmatprep.subr.mxu0 0.0
        %1354 = vmatpush2.msra.mxu0 %v224
        %1355 = vmatprep.subr.mxu0 0.0
        %1356 = vmatpush2.msra.mxu0 %v223
        %1357 = vmatprep.subr.mxu0 0.0
        %1358 = vmatpush2.msra.mxu0 %v222
        %1359 = vmatprep.subr.mxu0 0.0
        %1360 = vmatpush2.msra.mxu0 %v221
        %1361 = vmatprep.subr.mxu0 0.0
        %1362 = vmatpush2.msra.mxu0 %v220
        %1363 = vmatprep.subr.mxu0 0.0
        %1364 = vmatpush2.msra.mxu0 %v219
        %1365 = vmatprep.subr.mxu0 0.0
        %1366 = vmatpush2.msra.mxu0 %v218
        %1367 = vmatprep.subr.mxu0 0.0
        %1368 = vmatpush2.msra.mxu0 %v217
        %1369 = vmatprep.subr.mxu0 0.0
        %1370 = vmatpush2.msra.mxu0 %v216
        %1371 = vmatprep.subr.mxu0 0.0
        %1372 = vmatpush2.msra.mxu0 %v215
        %1373 = vmatprep.mubr.f32.mxu0 %v1304
        %1374 = vmatmul.mubr.f32.gmra.mxu0 %v1303
        %v1375 = vpop.f32.mrf.mxu0
        %v1376 = vadd.f32 0.0, %v1375
        %v1377 = vpop.f32.mrf.mxu0
        %1378 = vmatprep.mubr.f32.mxu0 %v1306
        %1379 = vmatmul.mubr.f32.gmra.mxu0 %v1305
        %v1380 = vpop.f32.mrf.mxu0
        %v1381 = vadd.f32 0.0, %v1380
        %v1382 = vpop.f32.mrf.mxu0
        %1383 = vmatprep.mubr.f32.mxu0 %v1308
        %1384 = vmatmul.mubr.f32.gmra.mxu0 %v1307
        %v1385 = vpop.f32.mrf.mxu0
        %v1386 = vadd.f32 0.0, %v1385
        %v1387 = vpop.f32.mrf.mxu0
        %1388 = vdwg.mxu0
        %vm1389 = vcmask 195584
        %v1391 = vsel %vm1389, %v242, 0
        %1393 = vmatprep.subr.mxu0 0.0
        %1394 = vmatpush1.msra.mxu0 0.0
        %1395 = vmatprep.subr.mxu0 0.0
        %1396 = vmatpush1.msra.mxu0 0.0
        %1397 = vmatprep.subr.mxu0 0.0
        %1398 = vmatpush1.msra.mxu0 0.0
        %1399 = vmatprep.subr.mxu0 0.0
        %1400 = vmatpush1.msra.mxu0 0.0
        %1401 = vmatprep.subr.mxu0 0.0
        %1402 = vmatpush1.msra.mxu0 0.0
        %1403 = vmatprep.subr.mxu0 0.0
        %1404 = vmatpush1.msra.mxu0 0.0
        %1405 = vmatprep.subr.mxu0 0.0
        %1406 = vmatpush1.msra.mxu0 0.0
        %1407 = vmatprep.subr.mxu0 0.0
        %1408 = vmatpush1.msra.mxu0 0.0
        %1409 = vmatprep.subr.mxu0 0.0
        %1410 = vmatpush1.msra.mxu0 0.0
        %1411 = vmatprep.subr.mxu0 0.0
        %1412 = vmatpush1.msra.mxu0 0.0
        %1413 = vmatprep.subr.mxu0 0.0
        %1414 = vmatpush1.msra.mxu0 0.0
        %1415 = vmatprep.subr.mxu0 0.0
        %1416 = vmatpush1.msra.mxu0 0.0
        %1417 = vmatprep.subr.mxu0 0.0
        %1418 = vmatpush1.msra.mxu0 0.0
        %1419 = vmatprep.subr.mxu0 0.0
        %1420 = vmatpush1.msra.mxu0 %v1386
        %1421 = vmatprep.subr.mxu0 0.0
        %1422 = vmatpush1.msra.mxu0 %v1381
        %1423 = vmatprep.subr.mxu0 0.0
        %1424 = vmatpush1.msra.mxu0 %v1376
        %1425 = vmatprep.subr.mxu0 0.0
        %1426 = vmatpush2.msra.mxu0 0.0
        %1427 = vmatprep.subr.mxu0 0.0
        %1428 = vmatpush2.msra.mxu0 0.0
        %1429 = vmatprep.subr.mxu0 0.0
        %1430 = vmatpush2.msra.mxu0 0.0
        %1431 = vmatprep.subr.mxu0 0.0
        %1432 = vmatpush2.msra.mxu0 0.0
        %1433 = vmatprep.subr.mxu0 0.0
        %1434 = vmatpush2.msra.mxu0 0.0
        %1435 = vmatprep.subr.mxu0 0.0
        %1436 = vmatpush2.msra.mxu0 0.0
        %1437 = vmatprep.subr.mxu0 0.0
        %1438 = vmatpush2.msra.mxu0 0.0
        %1439 = vmatprep.subr.mxu0 0.0
        %1440 = vmatpush2.msra.mxu0 0.0
        %1441 = vmatprep.subr.mxu0 0.0
        %1442 = vmatpush2.msra.mxu0 0.0
        %1443 = vmatprep.subr.mxu0 0.0
        %1444 = vmatpush2.msra.mxu0 0.0
        %1445 = vmatprep.subr.mxu0 0.0
        %1446 = vmatpush2.msra.mxu0 0.0
        %1447 = vmatprep.subr.mxu0 0.0
        %1448 = vmatpush2.msra.mxu0 0.0
        %1449 = vmatprep.subr.mxu0 0.0
        %1450 = vmatpush2.msra.mxu0 0.0
        %1451 = vmatprep.subr.mxu0 0.0
        %1452 = vmatpush2.msra.mxu0 0.0
        %1453 = vmatprep.subr.mxu0 0.0
        %1454 = vmatpush2.msra.mxu0 0.0
        %1455 = vmatprep.subr.mxu0 0.0
        %1456 = vmatpush2.msra.mxu0 0.0
        %1457 = vmatprep.mubr.f32.mxu0 0.0
        %1458 = vmatmul.mubr.f32.gmra.mxu0 %v1391
        %v1459 = vpop.f32.mrf.mxu0
        %v1460 = vadd.f32 0.0, %v1459
        %v1461 = vpop.f32.mrf.mxu0
        %1462 = vdwg.mxu0
        %v1463 = vmul.f32 %v1460, 0.0006377551
        %v1464 = vxor.u32 %v1463, 2147483648
        %v1465 = vmul.f32 %v1464, 1.442695
        %v1466 = vpow.pop %v1465
        %v1467 = vadd.f32 %v1466, 1.0
        %v1468 = vrcp.pop %v1467
        %v1469 = vmul.f32 1.0, %v1468
        %vm1470 = vcmask 23552
        %v1472 = vsel %vm1470, %v260, 0
        %v1475 = vsel %vm1470, %v261, 0
        %v1478 = vsel %vm1470, %v262, 0
        %vm1480 = vcmask 1042432
        %v1482 = vsel %vm1480, %v1469, 0
        %1484 = vmatprep.subr.mxu0 0.0
        %1485 = vmatpush1.msra.mxu0 0.0
        %1486 = vmatprep.subr.mxu0 0.0
        %1487 = vmatpush1.msra.mxu0 0.0
        %1488 = vmatprep.subr.mxu0 0.0
        %1489 = vmatpush1.msra.mxu0 0.0
        %1490 = vmatprep.subr.mxu0 0.0
        %1491 = vmatpush1.msra.mxu0 0.0
        %1492 = vmatprep.subr.mxu0 0.0
        %1493 = vmatpush1.msra.mxu0 0.0
        %1494 = vmatprep.subr.mxu0 0.0
        %1495 = vmatpush1.msra.mxu0 0.0
        %1496 = vmatprep.subr.mxu0 0.0
        %1497 = vmatpush1.msra.mxu0 0.0
        %1498 = vmatprep.subr.mxu0 0.0
        %1499 = vmatpush1.msra.mxu0 0.0
        %1500 = vmatprep.subr.mxu0 0.0
        %1501 = vmatpush1.msra.mxu0 0.0
        %1502 = vmatprep.subr.mxu0 0.0
        %1503 = vmatpush1.msra.mxu0 0.0
        %1504 = vmatprep.subr.mxu0 0.0
        %1505 = vmatpush1.msra.mxu0 0.0
        %1506 = vmatprep.subr.mxu0 0.0
        %1507 = vmatpush1.msra.mxu0 0.0
        %1508 = vmatprep.subr.mxu0 0.0
        %1509 = vmatpush1.msra.mxu0 0.0
        %1510 = vmatprep.subr.mxu0 0.0
        %1511 = vmatpush1.msra.mxu0 0.0
        %1512 = vmatprep.subr.mxu0 0.0
        %1513 = vmatpush1.msra.mxu0 0.0
        %1514 = vmatprep.subr.mxu0 0.0
        %1515 = vmatpush1.msra.mxu0 %v1482
        %1516 = vmatprep.subr.mxu0 0.0
        %1517 = vmatpush2.msra.mxu0 0.0
        %1518 = vmatprep.subr.mxu0 0.0
        %1519 = vmatpush2.msra.mxu0 0.0
        %1520 = vmatprep.subr.mxu0 0.0
        %1521 = vmatpush2.msra.mxu0 0.0
        %1522 = vmatprep.subr.mxu0 0.0
        %1523 = vmatpush2.msra.mxu0 0.0
        %1524 = vmatprep.subr.mxu0 0.0
        %1525 = vmatpush2.msra.mxu0 0.0
        %1526 = vmatprep.subr.mxu0 0.0
        %1527 = vmatpush2.msra.mxu0 0.0
        %1528 = vmatprep.subr.mxu0 0.0
        %1529 = vmatpush2.msra.mxu0 0.0
        %1530 = vmatprep.subr.mxu0 0.0
        %1531 = vmatpush2.msra.mxu0 0.0
        %1532 = vmatprep.subr.mxu0 0.0
        %1533 = vmatpush2.msra.mxu0 0.0
        %1534 = vmatprep.subr.mxu0 0.0
        %1535 = vmatpush2.msra.mxu0 0.0
        %1536 = vmatprep.subr.mxu0 0.0
        %1537 = vmatpush2.msra.mxu0 0.0
        %1538 = vmatprep.subr.mxu0 0.0
        %1539 = vmatpush2.msra.mxu0 0.0
        %1540 = vmatprep.subr.mxu0 0.0
        %1541 = vmatpush2.msra.mxu0 0.0
        %1542 = vmatprep.subr.mxu0 0.0
        %1543 = vmatpush2.msra.mxu0 0.0
        %1544 = vmatprep.subr.mxu0 0.0
        %1545 = vmatpush2.msra.mxu0 0.0
        %1546 = vmatprep.subr.mxu0 0.0
        %1547 = vmatpush2.msra.mxu0 0.0
        %1548 = vmatprep.mubr.f32.mxu0 0.0
        %1549 = vmatmul.mubr.f32.gmra.mxu0 %v1472
        %v1550 = vpop.f32.mrf.mxu0
        %v1551 = vadd.f32 0.0, %v1550
        %v1552 = vpop.f32.mrf.mxu0
        %1553 = vmatprep.mubr.f32.mxu0 0.0
        %1554 = vmatmul.mubr.f32.gmra.mxu0 %v1475
        %v1555 = vpop.f32.mrf.mxu0
        %v1556 = vadd.f32 0.0, %v1555
        %v1557 = vpop.f32.mrf.mxu0
        %1558 = vmatprep.mubr.f32.mxu0 0.0
        %1559 = vmatmul.mubr.f32.gmra.mxu0 %v1478
        %v1560 = vpop.f32.mrf.mxu0
        %v1561 = vadd.f32 0.0, %v1560
        %v1562 = vpop.f32.mrf.mxu0
        %1563 = vdwg.mxu0
        %1565 = vset.pattern.permute.xlu0 0
        %1566 = vperm.xlu0 %1565, %v1551
        %v1567 = vpop.permute.xlu0 %1566
        %1570 = vset.pattern.permute.xlu0 0
        %1571 = vperm.xlu0 %1570, %v1556
        %v1572 = vpop.permute.xlu0 %1571
        %1575 = vset.pattern.permute.xlu0 0
        %1576 = vperm.xlu0 %1575, %v1561
        %v1577 = vpop.permute.xlu0 %1576
        %v1579 = vmul.f32 %v1303, %v1567
        %v1580 = vmul.f32 %v1304, %v1567
        %v1581 = vmul.f32 %v1305, %v1572
        %v1582 = vmul.f32 %v1306, %v1572
        %v1583 = vmul.f32 %v1307, %v1577
        %v1584 = vmul.f32 %v1308, %v1577
        %v1585 = vadd.f32 %v1579, %v1581
        %v1586 = vadd.f32 %v1580, %v1582
        %v1587 = vadd.f32 %v1585, %v1583
        %v1588 = vadd.f32 %v1586, %v1584
        %1589 = vst [vmem:[%s190] sm:$0xff] %v1587
        %1590 = vst [vmem:[%s190 + $0x8] sm:$0xff] %v1588
        %s1591 = sand.u32 %s115, 1
        %s1592 = scalar_lea.sflag [#allocation3], %s1591
        %s1593 = sand.u32 %s115, 1
        %s1594 = smul.addr %s1593, 16
        %s1595 = scalar_lea.vmem [#allocation2], %s1594
        // Predicated region
        $region37: #{tpu_custom_call.1} parent=35 // pred_check
          %p1596 = pneg %p125
        $region38: #{tpu_custom_call.1} parent=35 // pred_check_branch
          %1598 = sbr.rel (%p1596) target = $region40
        $region39: #{tpu_custom_call.1} parent=35 // pred_region
          %s1600 = ssub.s32 256, 256
          %1601 = vsyncadd %s1592, %s1600
          %s1602 = smul.addr %s18, 2
          %s1603 = smul.addr %s1602, 128
          %s1604 = scalar_lea.hbm %s4, %s1603
          %s1606 = sshll.u32 %s1595, 4
          %s1607 = int_to_ptr.vmem [resolvable:$true] %s1606
          %1609 = dma.vmem_to_hbm [thread:$0]  %s1607, 256, %s1604, %s1592
        $region40: #{tpu_custom_call.1} parent=35 // pred_fallthru
          _
      $region36: #{tpu_custom_call.1} parent=5 // pred_fallthru
        _
      %p1610 = scmp.le.s32.totalorder 2, %s13
      // Predicated region
      $region41: #{tpu_custom_call.1} parent=5 // pred_check
        %p1611 = pneg %p1610
      $region42: #{tpu_custom_call.1} parent=5 // pred_check_branch
        %1613 = sbr.rel (%p1611) target = $region44
      $region43: #{tpu_custom_call.1} parent=5 // pred_region
        %s1614 = ssub.s32 %s13, 2
        // Predicated region
        $region45: #{tpu_custom_call.1} parent=43 // pred_check
          %p1615 = pneg %p131
        $region46: #{tpu_custom_call.1} parent=43 // pred_check_branch
          %1617 = sbr.rel (%p1615) target = $region48
        $region47: #{tpu_custom_call.1} parent=43 // pred_region
          %s1618 = sand.u32 %s116, 1
          %s1619 = scalar_lea.sflag [#allocation3], %s1618
          %s1620 = sand.u32 %s116, 1
          %s1621 = smul.addr %s1620, 16
          %s1622 = scalar_lea.vmem [#allocation2], %s1621
          %1623 = dma.done %s1619, 256
        $region48: #{tpu_custom_call.1} parent=43 // pred_fallthru
          _
      $region44: #{tpu_custom_call.1} parent=5 // pred_fallthru
        _
    $region6: #{tpu_custom_call.1} parent=1 // loop_footer
      %s17 = sadd.s32 1, %s13
    $region7: #{tpu_custom_call.1} parent=1 // loop_footer_branch
      %12 = sbr.rel target = $region3
    $region8: #{tpu_custom_call.1} parent=1 // loop_exit
      _
    %1624 = vsyncpa [#allocation3], 1
    %s1625 = scalar_lea.sflag [#allocation3], 1
    %1626 = vsyncpa %s1625, 1

</llo_original>
